<compile_context>
chip_gen: v5e
topology: v5e:2x2
jax: 0.10.0
libtpu: 0.0.40
codegen_flags: <defaults>
</compile_context>

<pallas_src>
import functools
import numpy as np
import jax
import jax.numpy as jnp
from jax import lax
from jax.experimental import pallas as pl
from jax.experimental.pallas import tpu as pltpu

# Make XLA-reference matmuls and in-kernel matmuls numerically comparable.
jax.config.update("jax_default_matmul_precision", "highest")

_LN_EPS = 1e-5
_INV_SQRT2 = float(1.0 / np.sqrt(2.0))


def _round_up(x, m):
    return ((x + m - 1) // m) * m


def _erf(x):
    # Abramowitz & Stegun 7.1.26 polynomial (|err| < 1.5e-7), built only from
    # ops guaranteed to lower in Mosaic (exp, abs, select).
    a1, a2, a3, a4, a5 = 0.254829592, -0.284496736, 1.421413741, -1.453152027, 1.061405429
    p = 0.3275911
    ax = jnp.abs(x)
    t = 1.0 / (1.0 + p * ax)
    poly = ((((a5 * t + a4) * t + a3) * t + a2) * t + a1) * t
    y = 1.0 - poly * jnp.exp(-ax * ax)
    return jnp.where(x < 0.0, -y, y)


def _gelu_exact(x):
    # Matches torch.nn.functional.gelu default (erf-based, exact).
    return 0.5 * x * (1.0 + _erf(x * _INV_SQRT2))


def _bigru_kernel(x_ref, gamma_ref, beta_ref, wih_ref, whh_ref, bih_ref, bhh_ref,
                  out_ref, gx_scr, h_scr, *, T, TC, NC, Bp, Hg):
    # x_ref:   (TC*Bp, D)   time-major rows of this chunk
    # wih_ref: (D, 3*Hg)    this direction's input weights  (gate order r|z|n, lane-padded)
    # whh_ref: (Hg, 3*Hg)   this direction's recurrent weights
    # out_ref: (TC*Bp, Hg)  this direction's lane-dense output slab for this chunk
    d = pl.program_id(0)          # 0 = forward, 1 = backward
    c = pl.program_id(1)          # time-chunk index (grid order within a direction)

    # ---- fused LayerNorm + GELU + hoisted input projection (one MXU matmul / chunk) ----
    x = x_ref[...]
    mean = jnp.mean(x, axis=-1, keepdims=True)
    var = jnp.mean(jnp.square(x - mean), axis=-1, keepdims=True)
    xn = (x - mean) * lax.rsqrt(var + _LN_EPS)
    xg = _gelu_exact(xn * gamma_ref[...] + beta_ref[...])
    gx_scr[...] = (jnp.dot(xg, wih_ref[...], preferred_element_type=jnp.float32)
                   + bih_ref[...])                               # (TC*Bp, 3*Hg)

    # ---- recurrence: hidden state carried across chunks in VMEM scratch ----
    @pl.when(c == 0)
    def _():
        h_scr[...] = jnp.zeros_like(h_scr)

    whh = whh_ref[...]            # loop-invariant, hoisted out of the step
    bhh = bhh_ref[...]            # (1, 3*Hg)
    chunk_base = (c + d * (NC - 1 - 2 * c)) * TC   # first global t of this chunk

    def step(j, h):
        # forward: j,  backward: TC-1-j  (chunk order already reversed via index_map)
        j_eff = j + d * (TC - 1 - 2 * j)
        row = pl.multiple_of(j_eff * Bp, Bp)
        gx = gx_scr[pl.ds(row, Bp), :]                           # (Bp, 3*Hg) precomputed
        gh = jnp.dot(h, whh, preferred_element_type=jnp.float32) + bhh
        # lane-aligned gate slices (Hg is a multiple of 128)
        r = jax.nn.sigmoid(gx[:, 0:Hg] + gh[:, 0:Hg])
        z = jax.nn.sigmoid(gx[:, Hg:2 * Hg] + gh[:, Hg:2 * Hg])
        n = jnp.tanh(gx[:, 2 * Hg:3 * Hg] + r * gh[:, 2 * Hg:3 * Hg])
        h_new = (1.0 - z) * n + z * h
        if NC * TC != T:                                         # static: only if T was padded
            m = (chunk_base + j_eff < T).astype(jnp.float32)     # skip padded timesteps
            h_new = m * h_new + (1.0 - m) * h
        out_ref[pl.ds(row, Bp), :] = h_new                       # lane-dense (Bp, Hg) store
        return h_new

    # TC steps fully unrolled: the chunk grid axis is the real loop boundary, and the
    # hidden state stays in vregs within a chunk.  (For long chunks, switch to
    # lax.fori_loop(..., unroll=k).)
    h = h_scr[...]
    for j in range(TC):
        h = step(j, h)
    h_scr[...] = h
    # TODO(synk): nn.Dropout is identity here (eval-mode semantics); training-mode
    #             stochastic dropout (pltpu.prng_*) is not implemented.


def bidirectional_gru(x, params, *, time_chunk=4):
    """x: (B, T, D) batch-first float32. Returns (B, T, 2*H) float32."""
    B, T, D = x.shape
    H = params["whh_f"].shape[0]

    Bp = _round_up(B, 8)           # sublane-aligned batch
    Hg = _round_up(H, 128)         # lane-aligned per-gate width
    TC = min(time_chunk, T)        # timesteps per chunk
    NC = -(-T // TC)               # number of time chunks
    Tp = NC * TC                   # padded sequence length

    # time-major, batch/time padded, flattened to rows: (Tp*Bp, D)
    x_tm = jnp.transpose(x.astype(jnp.float32), (1, 0, 2))       # (T, B, D)
    x_tm = jnp.pad(x_tm, ((0, Tp - T), (0, Bp - B), (0, 0)))
    x2 = x_tm.reshape(Tp * Bp, D)

    # Pad each gate (PyTorch order r|z|n) to Hg lanes; stack directions (0=fwd, 1=bwd).
    def pad_cols(w):               # (rows, 3H) -> (rows, 3Hg), zero-padded gate columns
        gates = [jnp.pad(w[:, g * H:(g + 1) * H], ((0, 0), (0, Hg - H))) for g in range(3)]
        return jnp.concatenate(gates, axis=1)

    def pad_whh(w):                # (H, 3H) -> (Hg, 3Hg), zero rows for padded h lanes
        return jnp.pad(pad_cols(w), ((0, Hg - H), (0, 0)))

    wih = jnp.stack([pad_cols(params["wih_f"]), pad_cols(params["wih_b"])])   # (2, D, 3Hg)
    whh = jnp.stack([pad_whh(params["whh_f"]), pad_whh(params["whh_b"])])     # (2, Hg, 3Hg)
    bih = jnp.stack([pad_cols(params["bih_f"]), pad_cols(params["bih_b"])])   # (2, 1, 3Hg)
    bhh = jnp.stack([pad_cols(params["bhh_f"]), pad_cols(params["bhh_b"])])   # (2, 1, 3Hg)

    kernel = functools.partial(_bigru_kernel, T=T, TC=TC, NC=NC, Bp=Bp, Hg=Hg)

    def tmap(d, c):                # time-chunk block index (reversed traversal for bwd)
        return c + d * (NC - 1 - 2 * c)

    out = pl.pallas_call(
        kernel,
        out_shape=jax.ShapeDtypeStruct((2, Tp * Bp, Hg), jnp.float32),
        grid_spec=pltpu.PrefetchScalarGridSpec(
            num_scalar_prefetch=0,
            grid=(2, NC),          # (direction, time-chunk)
            in_specs=[
                pl.BlockSpec((TC * Bp, D), lambda d, c: (tmap(d, c), 0)),       # x chunk
                pl.BlockSpec((1, D), lambda d, c: (0, 0)),                      # gamma
                pl.BlockSpec((1, D), lambda d, c: (0, 0)),                      # beta
                pl.BlockSpec((None, D, 3 * Hg), lambda d, c: (d, 0, 0)),        # W_ih[d]
                pl.BlockSpec((None, Hg, 3 * Hg), lambda d, c: (d, 0, 0)),       # W_hh[d]
                pl.BlockSpec((None, 1, 3 * Hg), lambda d, c: (d, 0, 0)),        # b_ih[d]
                pl.BlockSpec((None, 1, 3 * Hg), lambda d, c: (d, 0, 0)),        # b_hh[d]
            ],
            out_specs=pl.BlockSpec((None, TC * Bp, Hg),
                                   lambda d, c: (d, tmap(d, c), 0)),
            scratch_shapes=[
                pltpu.VMEM((TC * Bp, 3 * Hg), jnp.float32),   # hoisted input projection gx
                pltpu.VMEM((Bp, Hg), jnp.float32),            # recurrent hidden-state carry
            ],
        ),
        compiler_params=pltpu.CompilerParams(
            dimension_semantics=("parallel", "arbitrary"),
            vmem_limit_bytes=32 * 1024 * 1024,
        ),
    )(x2, params["gamma"], params["beta"], wih, whh, bih, bhh)

    out = out.reshape(2, Tp, Bp, Hg)
    y = jnp.concatenate([out[0, :T, :B, :H], out[1, :T, :B, :H]], axis=-1)     # (T, B, 2H)
    return jnp.transpose(y, (1, 0, 2))                                         # (B, T, 2H)


# ---------------- pure-JAX reference (for numerical check) ----------------
def reference(x, params):
    H = params["whh_f"].shape[0]
    mean = jnp.mean(x, axis=-1, keepdims=True)
    var = jnp.mean(jnp.square(x - mean), axis=-1, keepdims=True)
    xn = (x - mean) / jnp.sqrt(var + _LN_EPS)
    xn = xn * params["gamma"][0] + params["beta"][0]
    xg = 0.5 * xn * (1.0 + jax.scipy.special.erf(xn * _INV_SQRT2))   # exact GELU

    def run_dir(wih, whh, bih, bhh, reverse):
        def step(h, x_t):
            gx = x_t @ wih + bih[0]
            gh = h @ whh + bhh[0]
            r = jax.nn.sigmoid(gx[:, 0:H] + gh[:, 0:H])
            z = jax.nn.sigmoid(gx[:, H:2 * H] + gh[:, H:2 * H])
            n = jnp.tanh(gx[:, 2 * H:] + r * gh[:, 2 * H:])
            h = (1.0 - z) * n + z * h
            return h, h
        xs = jnp.transpose(xg, (1, 0, 2))                      # (T,B,D)
        h0 = jnp.zeros((xg.shape[0], H), jnp.float32)
        _, ys = jax.lax.scan(step, h0, xs, reverse=reverse)
        return jnp.transpose(ys, (1, 0, 2))                    # (B,T,H)

    fwd = run_dir(params["wih_f"], params["whh_f"], params["bih_f"], params["bhh_f"], False)
    bwd = run_dir(params["wih_b"], params["whh_b"], params["bih_b"], params["bhh_b"], True)
    return jnp.concatenate([fwd, bwd], axis=-1)


def init_params(key, rnn_dim, hidden):
    # PyTorch-style GRU init: U(-1/sqrt(H), 1/sqrt(H)).  Deterministic via PRNGKey.
    bound = 1.0 / np.sqrt(hidden)
    keys = jax.random.split(key, 10)

    def u(kk, shape):
        return jax.random.uniform(kk, shape, jnp.float32, -bound, bound)

    return dict(
        gamma=(1.0 + 0.1 * jax.random.normal(keys[0], (1, rnn_dim))).astype(jnp.float32),
        beta=(0.1 * jax.random.normal(keys[1], (1, rnn_dim))).astype(jnp.float32),
        wih_f=u(keys[2], (rnn_dim, 3 * hidden)),
        whh_f=u(keys[3], (hidden, 3 * hidden)),
        bih_f=u(keys[4], (1, 3 * hidden)),
        bhh_f=u(keys[5], (1, 3 * hidden)),
        wih_b=u(keys[6], (rnn_dim, 3 * hidden)),
        whh_b=u(keys[7], (hidden, 3 * hidden)),
        bih_b=u(keys[8], (1, 3 * hidden)),
        bhh_b=u(keys[9], (1, 3 * hidden)),
    )


if __name__ == "__main__":
    B, T, D, H = 2, 8, 32, 32          # batch, seq, rnn_dim, hidden_size
    key = jax.random.PRNGKey(0)
    kx, kp = jax.random.split(key)
    x = jax.random.normal(kx, (B, T, D), jnp.float32)
    params = init_params(kp, D, H)

    out = jax.block_until_ready(bidirectional_gru(x, params, time_chunk=4))
    ref = jax.block_until_ready(reference(x, params))

    assert out.shape == (B, T, 2 * H), out.shape
    np.testing.assert_allclose(np.asarray(out), np.asarray(ref), rtol=2e-3, atol=2e-3)
    print("KERNEL_OK")
</pallas_src>

<mosaic_0001>
module attributes {stable_mosaic.version = 11 : i64} {
  func.func @_bigru_kernel(%arg0: i32, %arg1: i32, %arg2: memref<32x32xf32, #tpu.memory_space<vmem>>, %arg3: memref<1x32xf32, #tpu.memory_space<vmem>>, %arg4: memref<1x32xf32, #tpu.memory_space<vmem>>, %arg5: memref<1x32x384xf32, #tpu.memory_space<vmem>>, %arg6: memref<1x128x384xf32, #tpu.memory_space<vmem>>, %arg7: memref<1x1x384xf32, #tpu.memory_space<vmem>>, %arg8: memref<1x1x384xf32, #tpu.memory_space<vmem>>, %arg9: memref<1x32x128xf32, #tpu.memory_space<vmem>>, %arg10: memref<32x384xf32, #tpu.memory_space<vmem>>, %arg11: memref<8x128xf32, #tpu.memory_space<vmem>>) attributes {dimension_semantics = [#tpu.dimension_semantics<parallel>, #tpu.dimension_semantics<arbitrary>], iteration_bounds = array<i64: 2, 2>, scalar_prefetch = 0 : i64, scratch_operands = 2 : i64, tpu.core_type = #tpu.core_type<tc>, window_params = [{transform_indices = @transform_0, window_bounds = array<i64: 32, 32>}, {pipeline_mode = #tpu.pipeline_mode<synchronous>, transform_indices = @transform_1, window_bounds = array<i64: 1, 32>}, {pipeline_mode = #tpu.pipeline_mode<synchronous>, transform_indices = @transform_2, window_bounds = array<i64: 1, 32>}, {transform_indices = @transform_3, window_bounds = array<i64: 1, 32, 384>}, {transform_indices = @transform_4, window_bounds = array<i64: 1, 128, 384>}, {transform_indices = @transform_5, window_bounds = array<i64: 1, 1, 384>}, {transform_indices = @transform_6, window_bounds = array<i64: 1, 1, 384>}, {transform_indices = @transform_7, window_bounds = array<i64: 1, 32, 128>}]} {
    %c0 = arith.constant 0 : index
    %c0_0 = arith.constant 0 : index
    %0 = vector.load %arg2[%c0, %c0_0] : memref<32x32xf32, #tpu.memory_space<vmem>>, vector<32x32xf32>
    %cst = arith.constant dense<0.000000e+00> : vector<32xf32>
    %1 = vector.multi_reduction <add>, %0, %cst [1] : vector<32x32xf32> to vector<32xf32>
    %2 = vector.shape_cast %1 : vector<32xf32> to vector<32x1xf32>
    %cst_1 = arith.constant 3.200000e+01 : f32
    %3 = vector.broadcast %cst_1 : f32 to vector<32x1xf32>
    %4 = arith.divf %2, %3 : vector<32x1xf32>
    %5 = vector.broadcast %4 : vector<32x1xf32> to vector<32x32xf32>
    %6 = arith.subf %0, %5 : vector<32x32xf32>
    %7 = arith.mulf %6, %6 : vector<32x32xf32>
    %cst_2 = arith.constant dense<0.000000e+00> : vector<32xf32>
    %8 = vector.multi_reduction <add>, %7, %cst_2 [1] : vector<32x32xf32> to vector<32xf32>
    %9 = vector.shape_cast %8 : vector<32xf32> to vector<32x1xf32>
    %cst_3 = arith.constant 3.200000e+01 : f32
    %10 = vector.broadcast %cst_3 : f32 to vector<32x1xf32>
    %11 = arith.divf %9, %10 : vector<32x1xf32>
    %12 = vector.broadcast %4 : vector<32x1xf32> to vector<32x32xf32>
    %13 = arith.subf %0, %12 : vector<32x32xf32>
    %cst_4 = arith.constant 9.99999974E-6 : f32
    %14 = vector.broadcast %cst_4 : f32 to vector<32x1xf32>
    %15 = arith.addf %11, %14 : vector<32x1xf32>
    %16 = math.rsqrt %15 : vector<32x1xf32>
    %17 = vector.broadcast %16 : vector<32x1xf32> to vector<32x32xf32>
    %18 = arith.mulf %13, %17 : vector<32x32xf32>
    %c0_5 = arith.constant 0 : index
    %c0_6 = arith.constant 0 : index
    %19 = vector.load %arg3[%c0_5, %c0_6] : memref<1x32xf32, #tpu.memory_space<vmem>>, vector<1x32xf32>
    %20 = vector.broadcast %19 : vector<1x32xf32> to vector<32x32xf32>
    %21 = arith.mulf %18, %20 : vector<32x32xf32>
    %c0_7 = arith.constant 0 : index
    %c0_8 = arith.constant 0 : index
    %22 = vector.load %arg4[%c0_7, %c0_8] : memref<1x32xf32, #tpu.memory_space<vmem>>, vector<1x32xf32>
    %23 = vector.broadcast %22 : vector<1x32xf32> to vector<32x32xf32>
    %24 = arith.addf %21, %23 : vector<32x32xf32>
    %cst_9 = arith.constant 5.000000e-01 : f32
    %25 = vector.broadcast %cst_9 : f32 to vector<32x32xf32>
    %26 = arith.mulf %25, %24 : vector<32x32xf32>
    %cst_10 = arith.constant 0.707106769 : f32
    %27 = vector.broadcast %cst_10 : f32 to vector<32x32xf32>
    %28 = arith.mulf %24, %27 : vector<32x32xf32>
    %29 = math.absf %28 : vector<32x32xf32>
    %cst_11 = arith.constant 0.327591091 : f32
    %30 = vector.broadcast %cst_11 : f32 to vector<32x32xf32>
    %31 = arith.mulf %30, %29 : vector<32x32xf32>
    %cst_12 = arith.constant 1.000000e+00 : f32
    %32 = vector.broadcast %cst_12 : f32 to vector<32x32xf32>
    %33 = arith.addf %32, %31 : vector<32x32xf32>
    %cst_13 = arith.constant 1.000000e+00 : f32
    %34 = vector.broadcast %cst_13 : f32 to vector<32x32xf32>
    %35 = arith.divf %34, %33 : vector<32x32xf32>
    %cst_14 = arith.constant 1.06140542 : f32
    %36 = vector.broadcast %cst_14 : f32 to vector<32x32xf32>
    %37 = arith.mulf %36, %35 : vector<32x32xf32>
    %cst_15 = arith.constant -1.45315206 : f32
    %38 = vector.broadcast %cst_15 : f32 to vector<32x32xf32>
    %39 = arith.addf %37, %38 : vector<32x32xf32>
    %40 = arith.mulf %39, %35 : vector<32x32xf32>
    %cst_16 = arith.constant 1.42141378 : f32
    %41 = vector.broadcast %cst_16 : f32 to vector<32x32xf32>
    %42 = arith.addf %40, %41 : vector<32x32xf32>
    %43 = arith.mulf %42, %35 : vector<32x32xf32>
    %cst_17 = arith.constant -0.284496725 : f32
    %44 = vector.broadcast %cst_17 : f32 to vector<32x32xf32>
    %45 = arith.addf %43, %44 : vector<32x32xf32>
    %46 = arith.mulf %45, %35 : vector<32x32xf32>
    %cst_18 = arith.constant 0.254829586 : f32
    %47 = vector.broadcast %cst_18 : f32 to vector<32x32xf32>
    %48 = arith.addf %46, %47 : vector<32x32xf32>
    %49 = arith.mulf %48, %35 : vector<32x32xf32>
    %cst_19 = arith.constant 0.000000e+00 : f32
    %50 = vector.broadcast %cst_19 : f32 to vector<32x32xf32>
    %51 = arith.subf %50, %29 : vector<32x32xf32>
    %52 = arith.mulf %51, %29 : vector<32x32xf32>
    %53 = math.exp %52 : vector<32x32xf32>
    %54 = arith.mulf %49, %53 : vector<32x32xf32>
    %cst_20 = arith.constant 1.000000e+00 : f32
    %55 = vector.broadcast %cst_20 : f32 to vector<32x32xf32>
    %56 = arith.subf %55, %54 : vector<32x32xf32>
    %cst_21 = arith.constant 0.000000e+00 : f32
    %57 = vector.broadcast %cst_21 : f32 to vector<32x32xf32>
    %58 = arith.cmpf olt, %28, %57 : vector<32x32xf32>
    %cst_22 = arith.constant 0.000000e+00 : f32
    %59 = vector.broadcast %cst_22 : f32 to vector<32x32xf32>
    %60 = arith.subf %59, %56 : vector<32x32xf32>
    %61 = arith.select %58, %60, %56 : vector<32x32xi1>, vector<32x32xf32>
    %cst_23 = arith.constant 1.000000e+00 : f32
    %62 = vector.broadcast %cst_23 : f32 to vector<32x32xf32>
    %63 = arith.addf %62, %61 : vector<32x32xf32>
    %64 = arith.mulf %26, %63 : vector<32x32xf32>
    %c0_24 = arith.constant 0 : index
    %c0_25 = arith.constant 0 : index
    %c0_26 = arith.constant 0 : index
    %65 = vector.load %arg5[%c0_24, %c0_25, %c0_26] : memref<1x32x384xf32, #tpu.memory_space<vmem>>, vector<1x32x384xf32>
    %66 = vector.shape_cast %65 : vector<1x32x384xf32> to vector<32x384xf32>
    %cst_27 = arith.constant dense<0.000000e+00> : vector<32x384xf32>
    %67 = tpu.matmul %64, %66, %cst_27 {dimension_numbers = #tpu.dot_dimension_numbers<[1], [0], [0], [1], [0, 0, 1, 1], [], []>, precision = #tpu.contract_precision<fp32>} : vector<32x32xf32>, vector<32x384xf32>, vector<32x384xf32> -> vector<32x384xf32>
    %c0_28 = arith.constant 0 : index
    %c0_29 = arith.constant 0 : index
    %c0_30 = arith.constant 0 : index
    %68 = vector.load %arg7[%c0_28, %c0_29, %c0_30] : memref<1x1x384xf32, #tpu.memory_space<vmem>>, vector<1x1x384xf32>
    %69 = vector.shape_cast %68 : vector<1x1x384xf32> to vector<1x384xf32>
    %70 = vector.broadcast %69 : vector<1x384xf32> to vector<32x384xf32>
    %71 = arith.addf %67, %70 : vector<32x384xf32>
    %c0_31 = arith.constant 0 : index
    %c0_32 = arith.constant 0 : index
    %72 = vector.load %arg10[%c0_31, %c0_32] : memref<32x384xf32, #tpu.memory_space<vmem>>, vector<32x384xf32>
    tpu.vector_store %arg10[%c0_31, %c0_32], %71 {strides = array<i32>} : memref<32x384xf32, #tpu.memory_space<vmem>>, vector<32x384xf32>,
    %c0_i32 = arith.constant 0 : i32
    %73 = arith.cmpi eq, %arg1, %c0_i32 : i32
    %74 = arith.extui %73 : i1 to i32
    %c0_i32_33 = arith.constant 0 : i32
    %75 = arith.cmpi ne, %74, %c0_i32_33 : i32
    scf.if %75 {
      %cst_78 = arith.constant 0.000000e+00 : f32
      %238 = vector.broadcast %cst_78 : f32 to vector<8x128xf32>
      %c0_79 = arith.constant 0 : index
      %c0_80 = arith.constant 0 : index
      %239 = vector.load %arg11[%c0_79, %c0_80] : memref<8x128xf32, #tpu.memory_space<vmem>>, vector<8x128xf32>
      tpu.vector_store %arg11[%c0_79, %c0_80], %238 {strides = array<i32>} : memref<8x128xf32, #tpu.memory_space<vmem>>, vector<8x128xf32>,
    } else {
    }
    %c0_34 = arith.constant 0 : index
    %c0_35 = arith.constant 0 : index
    %c0_36 = arith.constant 0 : index
    %76 = vector.load %arg6[%c0_34, %c0_35, %c0_36] : memref<1x128x384xf32, #tpu.memory_space<vmem>>, vector<1x128x384xf32>
    %77 = vector.shape_cast %76 : vector<1x128x384xf32> to vector<128x384xf32>
    %c0_37 = arith.constant 0 : index
    %c0_38 = arith.constant 0 : index
    %c0_39 = arith.constant 0 : index
    %78 = vector.load %arg8[%c0_37, %c0_38, %c0_39] : memref<1x1x384xf32, #tpu.memory_space<vmem>>, vector<1x1x384xf32>
    %79 = vector.shape_cast %78 : vector<1x1x384xf32> to vector<1x384xf32>
    %c0_40 = arith.constant 0 : index
    %c0_41 = arith.constant 0 : index
    %80 = vector.load %arg11[%c0_40, %c0_41] : memref<8x128xf32, #tpu.memory_space<vmem>>, vector<8x128xf32>
    %c3_i32 = arith.constant 3 : i32
    %81 = arith.muli %arg0, %c3_i32 : i32
    %c0_i32_42 = arith.constant 0 : i32
    %82 = arith.addi %c0_i32_42, %81 : i32
    %c8_i32 = arith.constant 8 : i32
    %83 = arith.muli %82, %c8_i32 : i32
    %84 = tpu.assume_multiple %83, 8 : i32
    %85 = arith.index_cast %84 : i32 to index
    %c0_43 = arith.constant 0 : index
    %86 = vector.load %arg10[%85, %c0_43] : memref<32x384xf32, #tpu.memory_space<vmem>>, vector<8x384xf32>
    %cst_44 = arith.constant dense<0.000000e+00> : vector<8x384xf32>
    %87 = tpu.matmul %80, %77, %cst_44 {dimension_numbers = #tpu.dot_dimension_numbers<[1], [0], [0], [1], [0, 0, 1, 1], [], []>, precision = #tpu.contract_precision<fp32>} : vector<8x128xf32>, vector<128x384xf32>, vector<8x384xf32> -> vector<8x384xf32>
    %88 = vector.broadcast %79 : vector<1x384xf32> to vector<8x384xf32>
    %89 = arith.addf %87, %88 : vector<8x384xf32>
    %90 = vector.extract_strided_slice %86 {offsets = [0, 0], sizes = [8, 128], strides = [1, 1]} : vector<8x384xf32> to vector<8x128xf32>
    %91 = vector.extract_strided_slice %89 {offsets = [0, 0], sizes = [8, 128], strides = [1, 1]} : vector<8x384xf32> to vector<8x128xf32>
    %92 = arith.addf %90, %91 : vector<8x128xf32>
    %93 = arith.negf %92 : vector<8x128xf32>
    %94 = math.exp %93 : vector<8x128xf32>
    %cst_45 = arith.constant 1.000000e+00 : f32
    %95 = vector.broadcast %cst_45 : f32 to vector<8x128xf32>
    %96 = arith.addf %95, %94 : vector<8x128xf32>
    %97 = arith.divf %95, %96 : vector<8x128xf32>
    %98 = vector.extract_strided_slice %86 {offsets = [0, 128], sizes = [8, 128], strides = [1, 1]} : vector<8x384xf32> to vector<8x128xf32>
    %99 = vector.extract_strided_slice %89 {offsets = [0, 128], sizes = [8, 128], strides = [1, 1]} : vector<8x384xf32> to vector<8x128xf32>
    %100 = arith.addf %98, %99 : vector<8x128xf32>
    %101 = arith.negf %100 : vector<8x128xf32>
    %102 = math.exp %101 : vector<8x128xf32>
    %cst_46 = arith.constant 1.000000e+00 : f32
    %103 = vector.broadcast %cst_46 : f32 to vector<8x128xf32>
    %104 = arith.addf %103, %102 : vector<8x128xf32>
    %105 = arith.divf %103, %104 : vector<8x128xf32>
    %106 = vector.extract_strided_slice %86 {offsets = [0, 256], sizes = [8, 128], strides = [1, 1]} : vector<8x384xf32> to vector<8x128xf32>
    %107 = vector.extract_strided_slice %89 {offsets = [0, 256], sizes = [8, 128], strides = [1, 1]} : vector<8x384xf32> to vector<8x128xf32>
    %108 = arith.mulf %97, %107 : vector<8x128xf32>
    %109 = arith.addf %106, %108 : vector<8x128xf32>
    %110 = math.tanh %109 : vector<8x128xf32>
    %cst_47 = arith.constant 1.000000e+00 : f32
    %111 = vector.broadcast %cst_47 : f32 to vector<8x128xf32>
    %112 = arith.subf %111, %105 : vector<8x128xf32>
    %113 = arith.mulf %112, %110 : vector<8x128xf32>
    %114 = arith.mulf %105, %80 : vector<8x128xf32>
    %115 = arith.addf %113, %114 : vector<8x128xf32>
    %c0_48 = arith.constant 0 : index
    %116 = arith.index_cast %84 : i32 to index
    %c0_49 = arith.constant 0 : index
    %117 = vector.load %arg9[%c0_48, %116, %c0_49] : memref<1x32x128xf32, #tpu.memory_space<vmem>>, vector<1x8x128xf32>
    %118 = vector.shape_cast %117 : vector<1x8x128xf32> to vector<8x128xf32>
    %119 = vector.shape_cast %115 : vector<8x128xf32> to vector<1x8x128xf32>
    tpu.vector_store %arg9[%c0_48, %116, %c0_49], %119 {strides = array<i32>} : memref<1x32x128xf32, #tpu.memory_space<vmem>>, vector<1x8x128xf32>,
    %c1_i32 = arith.constant 1 : i32
    %120 = arith.muli %arg0, %c1_i32 : i32
    %c1_i32_50 = arith.constant 1 : i32
    %121 = arith.addi %c1_i32_50, %120 : i32
    %c8_i32_51 = arith.constant 8 : i32
    %122 = arith.muli %121, %c8_i32_51 : i32
    %123 = tpu.assume_multiple %122, 8 : i32
    %124 = arith.index_cast %123 : i32 to index
    %c0_52 = arith.constant 0 : index
    %125 = vector.load %arg10[%124, %c0_52] : memref<32x384xf32, #tpu.memory_space<vmem>>, vector<8x384xf32>
    %cst_53 = arith.constant dense<0.000000e+00> : vector<8x384xf32>
    %126 = tpu.matmul %115, %77, %cst_53 {dimension_numbers = #tpu.dot_dimension_numbers<[1], [0], [0], [1], [0, 0, 1, 1], [], []>, precision = #tpu.contract_precision<fp32>} : vector<8x128xf32>, vector<128x384xf32>, vector<8x384xf32> -> vector<8x384xf32>
    %127 = vector.broadcast %79 : vector<1x384xf32> to vector<8x384xf32>
    %128 = arith.addf %126, %127 : vector<8x384xf32>
    %129 = vector.extract_strided_slice %125 {offsets = [0, 0], sizes = [8, 128], strides = [1, 1]} : vector<8x384xf32> to vector<8x128xf32>
    %130 = vector.extract_strided_slice %128 {offsets = [0, 0], sizes = [8, 128], strides = [1, 1]} : vector<8x384xf32> to vector<8x128xf32>
    %131 = arith.addf %129, %130 : vector<8x128xf32>
    %132 = arith.negf %131 : vector<8x128xf32>
    %133 = math.exp %132 : vector<8x128xf32>
    %cst_54 = arith.constant 1.000000e+00 : f32
    %134 = vector.broadcast %cst_54 : f32 to vector<8x128xf32>
    %135 = arith.addf %134, %133 : vector<8x128xf32>
    %136 = arith.divf %134, %135 : vector<8x128xf32>
    %137 = vector.extract_strided_slice %125 {offsets = [0, 128], sizes = [8, 128], strides = [1, 1]} : vector<8x384xf32> to vector<8x128xf32>
    %138 = vector.extract_strided_slice %128 {offsets = [0, 128], sizes = [8, 128], strides = [1, 1]} : vector<8x384xf32> to vector<8x128xf32>
    %139 = arith.addf %137, %138 : vector<8x128xf32>
    %140 = arith.negf %139 : vector<8x128xf32>
    %141 = math.exp %140 : vector<8x128xf32>
    %cst_55 = arith.constant 1.000000e+00 : f32
    %142 = vector.broadcast %cst_55 : f32 to vector<8x128xf32>
    %143 = arith.addf %142, %141 : vector<8x128xf32>
    %144 = arith.divf %142, %143 : vector<8x128xf32>
    %145 = vector.extract_strided_slice %125 {offsets = [0, 256], sizes = [8, 128], strides = [1, 1]} : vector<8x384xf32> to vector<8x128xf32>
    %146 = vector.extract_strided_slice %128 {offsets = [0, 256], sizes = [8, 128], strides = [1, 1]} : vector<8x384xf32> to vector<8x128xf32>
    %147 = arith.mulf %136, %146 : vector<8x128xf32>
    %148 = arith.addf %145, %147 : vector<8x128xf32>
    %149 = math.tanh %148 : vector<8x128xf32>
    %cst_56 = arith.constant 1.000000e+00 : f32
    %150 = vector.broadcast %cst_56 : f32 to vector<8x128xf32>
    %151 = arith.subf %150, %144 : vector<8x128xf32>
    %152 = arith.mulf %151, %149 : vector<8x128xf32>
    %153 = arith.mulf %144, %115 : vector<8x128xf32>
    %154 = arith.addf %152, %153 : vector<8x128xf32>
    %c0_57 = arith.constant 0 : index
    %155 = arith.index_cast %123 : i32 to index
    %c0_58 = arith.constant 0 : index
    %156 = vector.load %arg9[%c0_57, %155, %c0_58] : memref<1x32x128xf32, #tpu.memory_space<vmem>>, vector<1x8x128xf32>
    %157 = vector.shape_cast %156 : vector<1x8x128xf32> to vector<8x128xf32>
    %158 = vector.shape_cast %154 : vector<8x128xf32> to vector<1x8x128xf32>
    tpu.vector_store %arg9[%c0_57, %155, %c0_58], %158 {strides = array<i32>} : memref<1x32x128xf32, #tpu.memory_space<vmem>>, vector<1x8x128xf32>,
    %c-1_i32 = arith.constant -1 : i32
    %159 = arith.muli %arg0, %c-1_i32 : i32
    %c2_i32 = arith.constant 2 : i32
    %160 = arith.addi %c2_i32, %159 : i32
    %c8_i32_59 = arith.constant 8 : i32
    %161 = arith.muli %160, %c8_i32_59 : i32
    %162 = tpu.assume_multiple %161, 8 : i32
    %163 = arith.index_cast %162 : i32 to index
    %c0_60 = arith.constant 0 : index
    %164 = vector.load %arg10[%163, %c0_60] : memref<32x384xf32, #tpu.memory_space<vmem>>, vector<8x384xf32>
    %cst_61 = arith.constant dense<0.000000e+00> : vector<8x384xf32>
    %165 = tpu.matmul %154, %77, %cst_61 {dimension_numbers = #tpu.dot_dimension_numbers<[1], [0], [0], [1], [0, 0, 1, 1], [], []>, precision = #tpu.contract_precision<fp32>} : vector<8x128xf32>, vector<128x384xf32>, vector<8x384xf32> -> vector<8x384xf32>
    %166 = vector.broadcast %79 : vector<1x384xf32> to vector<8x384xf32>
    %167 = arith.addf %165, %166 : vector<8x384xf32>
    %168 = vector.extract_strided_slice %164 {offsets = [0, 0], sizes = [8, 128], strides = [1, 1]} : vector<8x384xf32> to vector<8x128xf32>
    %169 = vector.extract_strided_slice %167 {offsets = [0, 0], sizes = [8, 128], strides = [1, 1]} : vector<8x384xf32> to vector<8x128xf32>
    %170 = arith.addf %168, %169 : vector<8x128xf32>
    %171 = arith.negf %170 : vector<8x128xf32>
    %172 = math.exp %171 : vector<8x128xf32>
    %cst_62 = arith.constant 1.000000e+00 : f32
    %173 = vector.broadcast %cst_62 : f32 to vector<8x128xf32>
    %174 = arith.addf %173, %172 : vector<8x128xf32>
    %175 = arith.divf %173, %174 : vector<8x128xf32>
    %176 = vector.extract_strided_slice %164 {offsets = [0, 128], sizes = [8, 128], strides = [1, 1]} : vector<8x384xf32> to vector<8x128xf32>
    %177 = vector.extract_strided_slice %167 {offsets = [0, 128], sizes = [8, 128], strides = [1, 1]} : vector<8x384xf32> to vector<8x128xf32>
    %178 = arith.addf %176, %177 : vector<8x128xf32>
    %179 = arith.negf %178 : vector<8x128xf32>
    %180 = math.exp %179 : vector<8x128xf32>
    %cst_63 = arith.constant 1.000000e+00 : f32
    %181 = vector.broadcast %cst_63 : f32 to vector<8x128xf32>
    %182 = arith.addf %181, %180 : vector<8x128xf32>
    %183 = arith.divf %181, %182 : vector<8x128xf32>
    %184 = vector.extract_strided_slice %164 {offsets = [0, 256], sizes = [8, 128], strides = [1, 1]} : vector<8x384xf32> to vector<8x128xf32>
    %185 = vector.extract_strided_slice %167 {offsets = [0, 256], sizes = [8, 128], strides = [1, 1]} : vector<8x384xf32> to vector<8x128xf32>
    %186 = arith.mulf %175, %185 : vector<8x128xf32>
    %187 = arith.addf %184, %186 : vector<8x128xf32>
    %188 = math.tanh %187 : vector<8x128xf32>
    %cst_64 = arith.constant 1.000000e+00 : f32
    %189 = vector.broadcast %cst_64 : f32 to vector<8x128xf32>
    %190 = arith.subf %189, %183 : vector<8x128xf32>
    %191 = arith.mulf %190, %188 : vector<8x128xf32>
    %192 = arith.mulf %183, %154 : vector<8x128xf32>
    %193 = arith.addf %191, %192 : vector<8x128xf32>
    %c0_65 = arith.constant 0 : index
    %194 = arith.index_cast %162 : i32 to index
    %c0_66 = arith.constant 0 : index
    %195 = vector.load %arg9[%c0_65, %194, %c0_66] : memref<1x32x128xf32, #tpu.memory_space<vmem>>, vector<1x8x128xf32>
    %196 = vector.shape_cast %195 : vector<1x8x128xf32> to vector<8x128xf32>
    %197 = vector.shape_cast %193 : vector<8x128xf32> to vector<1x8x128xf32>
    tpu.vector_store %arg9[%c0_65, %194, %c0_66], %197 {strides = array<i32>} : memref<1x32x128xf32, #tpu.memory_space<vmem>>, vector<1x8x128xf32>,
    %c-3_i32 = arith.constant -3 : i32
    %198 = arith.muli %arg0, %c-3_i32 : i32
    %c3_i32_67 = arith.constant 3 : i32
    %199 = arith.addi %c3_i32_67, %198 : i32
    %c8_i32_68 = arith.constant 8 : i32
    %200 = arith.muli %199, %c8_i32_68 : i32
    %201 = tpu.assume_multiple %200, 8 : i32
    %202 = arith.index_cast %201 : i32 to index
    %c0_69 = arith.constant 0 : index
    %203 = vector.load %arg10[%202, %c0_69] : memref<32x384xf32, #tpu.memory_space<vmem>>, vector<8x384xf32>
    %cst_70 = arith.constant dense<0.000000e+00> : vector<8x384xf32>
    %204 = tpu.matmul %193, %77, %cst_70 {dimension_numbers = #tpu.dot_dimension_numbers<[1], [0], [0], [1], [0, 0, 1, 1], [], []>, precision = #tpu.contract_precision<fp32>} : vector<8x128xf32>, vector<128x384xf32>, vector<8x384xf32> -> vector<8x384xf32>
    %205 = vector.broadcast %79 : vector<1x384xf32> to vector<8x384xf32>
    %206 = arith.addf %204, %205 : vector<8x384xf32>
    %207 = vector.extract_strided_slice %203 {offsets = [0, 0], sizes = [8, 128], strides = [1, 1]} : vector<8x384xf32> to vector<8x128xf32>
    %208 = vector.extract_strided_slice %206 {offsets = [0, 0], sizes = [8, 128], strides = [1, 1]} : vector<8x384xf32> to vector<8x128xf32>
    %209 = arith.addf %207, %208 : vector<8x128xf32>
    %210 = arith.negf %209 : vector<8x128xf32>
    %211 = math.exp %210 : vector<8x128xf32>
    %cst_71 = arith.constant 1.000000e+00 : f32
    %212 = vector.broadcast %cst_71 : f32 to vector<8x128xf32>
    %213 = arith.addf %212, %211 : vector<8x128xf32>
    %214 = arith.divf %212, %213 : vector<8x128xf32>
    %215 = vector.extract_strided_slice %203 {offsets = [0, 128], sizes = [8, 128], strides = [1, 1]} : vector<8x384xf32> to vector<8x128xf32>
    %216 = vector.extract_strided_slice %206 {offsets = [0, 128], sizes = [8, 128], strides = [1, 1]} : vector<8x384xf32> to vector<8x128xf32>
    %217 = arith.addf %215, %216 : vector<8x128xf32>
    %218 = arith.negf %217 : vector<8x128xf32>
    %219 = math.exp %218 : vector<8x128xf32>
    %cst_72 = arith.constant 1.000000e+00 : f32
    %220 = vector.broadcast %cst_72 : f32 to vector<8x128xf32>
    %221 = arith.addf %220, %219 : vector<8x128xf32>
    %222 = arith.divf %220, %221 : vector<8x128xf32>
    %223 = vector.extract_strided_slice %203 {offsets = [0, 256], sizes = [8, 128], strides = [1, 1]} : vector<8x384xf32> to vector<8x128xf32>
    %224 = vector.extract_strided_slice %206 {offsets = [0, 256], sizes = [8, 128], strides = [1, 1]} : vector<8x384xf32> to vector<8x128xf32>
    %225 = arith.mulf %214, %224 : vector<8x128xf32>
    %226 = arith.addf %223, %225 : vector<8x128xf32>
    %227 = math.tanh %226 : vector<8x128xf32>
    %cst_73 = arith.constant 1.000000e+00 : f32
    %228 = vector.broadcast %cst_73 : f32 to vector<8x128xf32>
    %229 = arith.subf %228, %222 : vector<8x128xf32>
    %230 = arith.mulf %229, %227 : vector<8x128xf32>
    %231 = arith.mulf %222, %193 : vector<8x128xf32>
    %232 = arith.addf %230, %231 : vector<8x128xf32>
    %c0_74 = arith.constant 0 : index
    %233 = arith.index_cast %201 : i32 to index
    %c0_75 = arith.constant 0 : index
    %234 = vector.load %arg9[%c0_74, %233, %c0_75] : memref<1x32x128xf32, #tpu.memory_space<vmem>>, vector<1x8x128xf32>
    %235 = vector.shape_cast %234 : vector<1x8x128xf32> to vector<8x128xf32>
    %236 = vector.shape_cast %232 : vector<8x128xf32> to vector<1x8x128xf32>
    tpu.vector_store %arg9[%c0_74, %233, %c0_75], %236 {strides = array<i32>} : memref<1x32x128xf32, #tpu.memory_space<vmem>>, vector<1x8x128xf32>,
    %c0_76 = arith.constant 0 : index
    %c0_77 = arith.constant 0 : index
    %237 = vector.load %arg11[%c0_76, %c0_77] : memref<8x128xf32, #tpu.memory_space<vmem>>, vector<8x128xf32>
    tpu.vector_store %arg11[%c0_76, %c0_77], %232 {strides = array<i32>} : memref<8x128xf32, #tpu.memory_space<vmem>>, vector<8x128xf32>,
    return
  }
  func.func @transform_0(%arg0: i32, %arg1: i32) -> (i32, i32) {
    %c2_i32 = arith.constant 2 : i32
    %0 = arith.muli %c2_i32, %arg1 : i32
    %c1_i32 = arith.constant 1 : i32
    %1 = arith.subi %c1_i32, %0 : i32
    %2 = arith.muli %arg0, %1 : i32
    %3 = arith.addi %arg1, %2 : i32
    %c0_i32 = arith.constant 0 : i32
    %c0_i32_0 = arith.constant 0 : i32
    return %3, %c0_i32 : i32, i32
  }
  func.func @transform_1(%arg0: i32, %arg1: i32) -> (i32, i32) {
    %c0_i32 = arith.constant 0 : i32
    %c0_i32_0 = arith.constant 0 : i32
    %c0_i32_1 = arith.constant 0 : i32
    return %c0_i32, %c0_i32_0 : i32, i32
  }
  func.func @transform_2(%arg0: i32, %arg1: i32) -> (i32, i32) {
    %c0_i32 = arith.constant 0 : i32
    %c0_i32_0 = arith.constant 0 : i32
    %c0_i32_1 = arith.constant 0 : i32
    return %c0_i32, %c0_i32_0 : i32, i32
  }
  func.func @transform_3(%arg0: i32, %arg1: i32) -> (i32, i32, i32) {
    %c0_i32 = arith.constant 0 : i32
    %c0_i32_0 = arith.constant 0 : i32
    %c0_i32_1 = arith.constant 0 : i32
    return %arg0, %c0_i32, %c0_i32_0 : i32, i32, i32
  }
  func.func @transform_4(%arg0: i32, %arg1: i32) -> (i32, i32, i32) {
    %c0_i32 = arith.constant 0 : i32
    %c0_i32_0 = arith.constant 0 : i32
    %c0_i32_1 = arith.constant 0 : i32
    return %arg0, %c0_i32, %c0_i32_0 : i32, i32, i32
  }
  func.func @transform_5(%arg0: i32, %arg1: i32) -> (i32, i32, i32) {
    %c0_i32 = arith.constant 0 : i32
    %c0_i32_0 = arith.constant 0 : i32
    %c0_i32_1 = arith.constant 0 : i32
    return %arg0, %c0_i32, %c0_i32_0 : i32, i32, i32
  }
  func.func @transform_6(%arg0: i32, %arg1: i32) -> (i32, i32, i32) {
    %c0_i32 = arith.constant 0 : i32
    %c0_i32_0 = arith.constant 0 : i32
    %c0_i32_1 = arith.constant 0 : i32
    return %arg0, %c0_i32, %c0_i32_0 : i32, i32, i32
  }
  func.func @transform_7(%arg0: i32, %arg1: i32) -> (i32, i32, i32) {
    %c2_i32 = arith.constant 2 : i32
    %0 = arith.muli %c2_i32, %arg1 : i32
    %c1_i32 = arith.constant 1 : i32
    %1 = arith.subi %c1_i32, %0 : i32
    %2 = arith.muli %arg0, %1 : i32
    %3 = arith.addi %arg1, %2 : i32
    %c0_i32 = arith.constant 0 : i32
    %c0_i32_0 = arith.constant 0 : i32
    return %arg0, %3, %c0_i32 : i32, i32, i32
  }
}

</mosaic_0001>

<llo_original>
// kernel: tpu_custom_call.1
$region0: #{tpu_custom_call.1}
  #allocation0 [shape = 'u32[]', space=smem, size = 0x4, offset = 0x4, fixed_abs, tag = 'smem constant byte address 0x4 - core index']
  #allocation1 [shape = 'u32[72,128]{1,0:T(1,128)}', space=vmem, size = 0x9000, scoped, tag = 'internal scratch']
  #allocation2 [shape = 'f32[32,384]{1,0:T(8,128)}', space=vmem, size = 0xc000, scoped, tag = 'scratch operand']
  #allocation3 [shape = 'f32[8,128]{1,0:T(8,128)}', space=vmem, size = 0x1000, scoped, tag = 'scratch operand']
  %s0 = inlined_call_operand.vmem [shape: f32[64,32], index: 0, kind: input, shape index: {}]
  %s1 = inlined_call_operand.vmem [shape: f32[1,32], index: 1, kind: input, shape index: {}]
  %s2 = inlined_call_operand.vmem [shape: f32[1,32], index: 2, kind: input, shape index: {}]
  %s3 = inlined_call_operand.hbm [shape: f32[2,32,384], index: 3, kind: input, shape index: {}]
  %s4 = inlined_call_operand.hbm [shape: f32[2,128,384], index: 4, kind: input, shape index: {}]
  %s5 = inlined_call_operand.vmem [shape: f32[2,1,384], index: 5, kind: input, shape index: {}]
  %s6 = inlined_call_operand.vmem [shape: f32[2,1,384], index: 6, kind: input, shape index: {}]
  %s7 = inlined_call_operand.hbm [shape: f32[2,64,128], index: 7, kind: output, shape index: {}]
  %s8 = sld [smem:[#allocation0]]
  $region73: #{tpu_custom_call.1} parent=0
    _
  %s10 = ssub.s32 1, %s8
  %s11 = scalar_select 0, %s10, %s8
  $region1: #{tpu_custom_call.1} parent=0
    #allocation4 [shape = 'u8[98304]{0}', space=vmem, size = 0x18000, scoped, tag = 'input window, operand 3']
    #allocation5 [shape = 's32[2]{0}', space=sflag, size = 0x8, scoped, tag = 'scoped memory for tpu_custom_call.1']
    #allocation6 [shape = 's32[2]{0}', space=sflag, size = 0x8, scoped, tag = 'scoped memory for tpu_custom_call.1']
    #allocation7 [shape = 'u8[393216]{0}', space=vmem, size = 0x60000, scoped, tag = 'input window, operand 4']
    #allocation8 [shape = 's32[2]{0}', space=sflag, size = 0x8, scoped, tag = 'scoped memory for tpu_custom_call.1']
    #allocation9 [shape = 'u8[32768]{0}', space=vmem, size = 0x8000, scoped, tag = 'output window, operand 0']
    %12 = vsyncpa [#allocation5], 0
    %s13 = scalar_lea.sflag [#allocation5], 1
    %14 = vsyncpa %s13, 0
    %15 = vsyncpa [#allocation8], 0
    %s16 = scalar_lea.sflag [#allocation8], 1
    %17 = vsyncpa %s16, 0
    %18 = vsyncpa [#allocation6], 0
    %s19 = scalar_lea.sflag [#allocation6], 1
    %20 = vsyncpa %s19, 0
    loop: start=0, step=1, limit=6
    $region2: #{tpu_custom_call.1} parent=1 // loop_pre_header
      _
    $region3: #{tpu_custom_call.1} parent=1 // loop_header
      %s22 = sphi 0, %s26
      %p23 = scmp.ge.s32.totalorder %s22, 6
      %s29 = sphi 0, %s41
      %s30 = sphi 0, %s37
      %s31 = sphi 0, %s29
      %s32 = sphi 0, %s30
      %s33 = sphi 0, %s31
      %s34 = sphi 0, %s32
      %s52 = sphi 0, %s54
      %s55 = sphi 0, %s52
      %s56 = sphi 0, %s55
      %s72 = sphi 0, %s56
      %s76 = sphi 0, %s76
      %s78 = sphi 0, %s76
      %s79 = sphi 0, %s78
      %s93 = sphi 0, %s79
      %s97 = sphi 0, %s97
      %s99 = sphi 0, %s97
      %s100 = sphi 0, %s99
      %s114 = sphi 0, %s100
      %s120 = sphi 0, %s122
      %s123 = sphi 0, %s120
      %s124 = sphi 0, %s123
      %s140 = sphi 0, %s124
      %s146 = sphi 0, %s148
      %s149 = sphi 0, %s146
      %s150 = sphi 0, %s149
      %s166 = sphi 0, %s150
      %s172 = sphi 0, %s174
      %s175 = sphi 0, %s172
      %s176 = sphi 0, %s175
      %s192 = sphi 0, %s176
      %s198 = sphi 0, %s200
      %s201 = sphi 0, %s198
      %s202 = sphi 0, %s201
      %s218 = sphi 0, %s202
      %s234 = sphi 0, %s236
      %s237 = sphi 0, %s234
      %s238 = sphi 0, %s237
      %s254 = sphi 0, %s238
    $region4: #{tpu_custom_call.1} parent=1 // loop_header_branch
      %25 = sbr.rel (%p23) target = $region8
    $region5: #{tpu_custom_call.1} parent=1 // loop_body
      %s27 = ssub.s32 %s22, 1
      %s28 = ssub.s32 %s22, 2
      %s35 = sadd.s32 1, %s30
      %p36 = scmp.ge.s32.totalorder %s35, 2
      %s37 = scalar_select %p36, 0, %s35
      %s38 = sadd.s32 1, %s29
      %s39 = scalar_select %p36, %s38, %s29
      %p40 = scmp.ge.s32.totalorder %s39, 2
      %s41 = scalar_select %p40, 0, %s39
      %s42 = smul.u32 %s30, 2
      %s43 = ssub.s32 1, %s42
      %s44 = smul.u32 %s29, %s43
      %s45 = sadd.s32 %s30, %s44
      %s46 = smul.u32 %s37, 2
      %s47 = ssub.s32 1, %s46
      %s48 = smul.u32 %s41, %s47
      %s49 = sadd.s32 %s37, %s48
      %s50 = ssub.s32 %s45, %s49
      %p51 = scmp.eq.s32.totalorder %s50, 0
      %s53 = sadd.s32 %s52, 1
      %s54 = scalar_select %p51, %s52, %s53
      %p57 = pneg %p51
      %p58 = scmp.eq.s32.totalorder %s22, 3
      %p59 = por %p57, %p58
      %p60 = scmp.ne.s32.totalorder %s52, %s55
      %p61 = scmp.eq.s32.totalorder %s22, 0
      %p62 = por %p60, %p61
      %p63 = scmp.ne.s32.totalorder %s52, %s55
      %p64 = scmp.eq.s32.totalorder %s27, 3
      %p65 = por %p63, %p64
      %p66 = scmp.ne.s32.totalorder %s55, %s56
      %p67 = scmp.eq.s32.totalorder %s27, 0
      %p68 = por %p66, %p67
      %p69 = scmp.ne.s32.totalorder %s55, %s56
      %p70 = scmp.eq.s32.totalorder %s28, 3
      %p71 = por %p69, %p70
      %p73 = scmp.ne.s32.totalorder %s56, %s72
      %p74 = scmp.eq.s32.totalorder %s28, 0
      %p75 = por %p73, %p74
      %s77 = sadd.s32 %s76, 1
      %p80 = scmp.eq.s32.totalorder %s22, 3
      %p81 = scmp.ne.s32.totalorder %s76, %s78
      %p82 = scmp.eq.s32.totalorder %s22, 0
      %p83 = por %p81, %p82
      %p84 = scmp.ne.s32.totalorder %s76, %s78
      %p85 = scmp.eq.s32.totalorder %s27, 3
      %p86 = por %p84, %p85
      %p87 = scmp.ne.s32.totalorder %s78, %s79
      %p88 = scmp.eq.s32.totalorder %s27, 0
      %p89 = por %p87, %p88
      %p90 = scmp.ne.s32.totalorder %s78, %s79
      %p91 = scmp.eq.s32.totalorder %s28, 3
      %p92 = por %p90, %p91
      %p94 = scmp.ne.s32.totalorder %s79, %s93
      %p95 = scmp.eq.s32.totalorder %s28, 0
      %p96 = por %p94, %p95
      %s98 = sadd.s32 %s97, 1
      %p101 = scmp.eq.s32.totalorder %s22, 3
      %p102 = scmp.ne.s32.totalorder %s97, %s99
      %p103 = scmp.eq.s32.totalorder %s22, 0
      %p104 = por %p102, %p103
      %p105 = scmp.ne.s32.totalorder %s97, %s99
      %p106 = scmp.eq.s32.totalorder %s27, 3
      %p107 = por %p105, %p106
      %p108 = scmp.ne.s32.totalorder %s99, %s100
      %p109 = scmp.eq.s32.totalorder %s27, 0
      %p110 = por %p108, %p109
      %p111 = scmp.ne.s32.totalorder %s99, %s100
      %p112 = scmp.eq.s32.totalorder %s28, 3
      %p113 = por %p111, %p112
      %p115 = scmp.ne.s32.totalorder %s100, %s114
      %p116 = scmp.eq.s32.totalorder %s28, 0
      %p117 = por %p115, %p116
      %s118 = ssub.s32 %s29, %s41
      %p119 = scmp.eq.s32.totalorder %s118, 0
      %s121 = sadd.s32 %s120, 1
      %s122 = scalar_select %p119, %s120, %s121
      %p125 = pneg %p119
      %p126 = scmp.eq.s32.totalorder %s22, 3
      %p127 = por %p125, %p126
      %p128 = scmp.ne.s32.totalorder %s120, %s123
      %p129 = scmp.eq.s32.totalorder %s22, 0
      %p130 = por %p128, %p129
      %p131 = scmp.ne.s32.totalorder %s120, %s123
      %p132 = scmp.eq.s32.totalorder %s27, 3
      %p133 = por %p131, %p132
      %p134 = scmp.ne.s32.totalorder %s123, %s124
      %p135 = scmp.eq.s32.totalorder %s27, 0
      %p136 = por %p134, %p135
      %p137 = scmp.ne.s32.totalorder %s123, %s124
      %p138 = scmp.eq.s32.totalorder %s28, 3
      %p139 = por %p137, %p138
      %p141 = scmp.ne.s32.totalorder %s124, %s140
      %p142 = scmp.eq.s32.totalorder %s28, 0
      %p143 = por %p141, %p142
      %s144 = ssub.s32 %s29, %s41
      %p145 = scmp.eq.s32.totalorder %s144, 0
      %s147 = sadd.s32 %s146, 1
      %s148 = scalar_select %p145, %s146, %s147
      %p151 = pneg %p145
      %p152 = scmp.eq.s32.totalorder %s22, 3
      %p153 = por %p151, %p152
      %p154 = scmp.ne.s32.totalorder %s146, %s149
      %p155 = scmp.eq.s32.totalorder %s22, 0
      %p156 = por %p154, %p155
      %p157 = scmp.ne.s32.totalorder %s146, %s149
      %p158 = scmp.eq.s32.totalorder %s27, 3
      %p159 = por %p157, %p158
      %p160 = scmp.ne.s32.totalorder %s149, %s150
      %p161 = scmp.eq.s32.totalorder %s27, 0
      %p162 = por %p160, %p161
      %p163 = scmp.ne.s32.totalorder %s149, %s150
      %p164 = scmp.eq.s32.totalorder %s28, 3
      %p165 = por %p163, %p164
      %p167 = scmp.ne.s32.totalorder %s150, %s166
      %p168 = scmp.eq.s32.totalorder %s28, 0
      %p169 = por %p167, %p168
      %s170 = ssub.s32 %s29, %s41
      %p171 = scmp.eq.s32.totalorder %s170, 0
      %s173 = sadd.s32 %s172, 1
      %s174 = scalar_select %p171, %s172, %s173
      %p177 = pneg %p171
      %p178 = scmp.eq.s32.totalorder %s22, 3
      %p179 = por %p177, %p178
      %p180 = scmp.ne.s32.totalorder %s172, %s175
      %p181 = scmp.eq.s32.totalorder %s22, 0
      %p182 = por %p180, %p181
      %p183 = scmp.ne.s32.totalorder %s172, %s175
      %p184 = scmp.eq.s32.totalorder %s27, 3
      %p185 = por %p183, %p184
      %p186 = scmp.ne.s32.totalorder %s175, %s176
      %p187 = scmp.eq.s32.totalorder %s27, 0
      %p188 = por %p186, %p187
      %p189 = scmp.ne.s32.totalorder %s175, %s176
      %p190 = scmp.eq.s32.totalorder %s28, 3
      %p191 = por %p189, %p190
      %p193 = scmp.ne.s32.totalorder %s176, %s192
      %p194 = scmp.eq.s32.totalorder %s28, 0
      %p195 = por %p193, %p194
      %s196 = ssub.s32 %s29, %s41
      %p197 = scmp.eq.s32.totalorder %s196, 0
      %s199 = sadd.s32 %s198, 1
      %s200 = scalar_select %p197, %s198, %s199
      %p203 = pneg %p197
      %p204 = scmp.eq.s32.totalorder %s22, 3
      %p205 = por %p203, %p204
      %p206 = scmp.ne.s32.totalorder %s198, %s201
      %p207 = scmp.eq.s32.totalorder %s22, 0
      %p208 = por %p206, %p207
      %p209 = scmp.ne.s32.totalorder %s198, %s201
      %p210 = scmp.eq.s32.totalorder %s27, 3
      %p211 = por %p209, %p210
      %p212 = scmp.ne.s32.totalorder %s201, %s202
      %p213 = scmp.eq.s32.totalorder %s27, 0
      %p214 = por %p212, %p213
      %p215 = scmp.ne.s32.totalorder %s201, %s202
      %p216 = scmp.eq.s32.totalorder %s28, 3
      %p217 = por %p215, %p216
      %p219 = scmp.ne.s32.totalorder %s202, %s218
      %p220 = scmp.eq.s32.totalorder %s28, 0
      %p221 = por %p219, %p220
      %s222 = smul.u32 %s30, 2
      %s223 = ssub.s32 1, %s222
      %s224 = smul.u32 %s29, %s223
      %s225 = sadd.s32 %s30, %s224
      %s226 = smul.u32 %s37, 2
      %s227 = ssub.s32 1, %s226
      %s228 = smul.u32 %s41, %s227
      %s229 = sadd.s32 %s37, %s228
      %s230 = ssub.s32 %s29, %s41
      %s231 = ssub.s32 %s225, %s229
      %s232 = sor.u32 %s230, %s231
      %p233 = scmp.eq.s32.totalorder %s232, 0
      %s235 = sadd.s32 %s234, 1
      %s236 = scalar_select %p233, %s234, %s235
      %p239 = pneg %p233
      %p240 = scmp.eq.s32.totalorder %s22, 3
      %p241 = por %p239, %p240
      %p242 = scmp.ne.s32.totalorder %s234, %s237
      %p243 = scmp.eq.s32.totalorder %s22, 0
      %p244 = por %p242, %p243
      %p245 = scmp.ne.s32.totalorder %s234, %s237
      %p246 = scmp.eq.s32.totalorder %s27, 3
      %p247 = por %p245, %p246
      %p248 = scmp.ne.s32.totalorder %s237, %s238
      %p249 = scmp.eq.s32.totalorder %s27, 0
      %p250 = por %p248, %p249
      %p251 = scmp.ne.s32.totalorder %s237, %s238
      %p252 = scmp.eq.s32.totalorder %s28, 3
      %p253 = por %p251, %p252
      %p255 = scmp.ne.s32.totalorder %s238, %s254
      %p256 = scmp.eq.s32.totalorder %s28, 0
      %p257 = por %p255, %p256
      %p258 = scmp.le.s32.totalorder 1, %s22
      %p259 = scmp.lt.s32.totalorder %s22, 5
      %p260 = pnand %p258, %p259
      %p261 = pneg %p260
      // Predicated region
      $region9: #{tpu_custom_call.1} parent=5 // pred_check
        _
      $region10: #{tpu_custom_call.1} parent=5 // pred_check_branch
        %263 = sbr.rel (%p260) target = $region12
      $region11: #{tpu_custom_call.1} parent=5 // pred_region
        %s264 = ssub.s32 %s22, 1
        // Predicated region
        $region13: #{tpu_custom_call.1} parent=11 // pred_check
          %p265 = pneg %p89
        $region14: #{tpu_custom_call.1} parent=11 // pred_check_branch
          %267 = sbr.rel (%p265) target = $region16
        $region15: #{tpu_custom_call.1} parent=11 // pred_region
          _
        $region16: #{tpu_custom_call.1} parent=11 // pred_fallthru
          _
        // Predicated region
        $region17: #{tpu_custom_call.1} parent=11 // pred_check
          %p268 = pneg %p110
        $region18: #{tpu_custom_call.1} parent=11 // pred_check_branch
          %270 = sbr.rel (%p268) target = $region20
        $region19: #{tpu_custom_call.1} parent=11 // pred_region
          _
        $region20: #{tpu_custom_call.1} parent=11 // pred_fallthru
          _
      $region12: #{tpu_custom_call.1} parent=5 // pred_fallthru
        _
      %p271 = scmp.lt.s32.totalorder %s22, 4
      // Predicated region
      $region21: #{tpu_custom_call.1} parent=5 // pred_check
        %p272 = pneg %p271
      $region22: #{tpu_custom_call.1} parent=5 // pred_check_branch
        %274 = sbr.rel (%p272) target = $region24
      $region23: #{tpu_custom_call.1} parent=5 // pred_region
        // Predicated region
        $region25: #{tpu_custom_call.1} parent=23 // pred_check
          %p275 = pneg %p62
        $region26: #{tpu_custom_call.1} parent=23 // pred_check_branch
          %277 = sbr.rel (%p275) target = $region28
        $region27: #{tpu_custom_call.1} parent=23 // pred_region
          %s278 = smul.u32 %s30, 2
          %s279 = ssub.s32 1, %s278
          %s280 = smul.u32 %s29, %s279
          %s281 = sadd.s32 %s30, %s280
          %s282 = smul.u32 4, %s281
          %p283 = scmp.lt.s32.totalorder %s282, 7
          %s284 = scalar_select %p283, %s282, 7
          %s285 = smul.addr %s284, 8
          %s286 = scalar_lea.vmem %s0, %s285
          %s287 = smul.u32 %s30, 2
          %s288 = ssub.s32 1, %s287
          %s289 = smul.u32 %s29, %s288
          %s290 = sadd.s32 %s30, %s289
          %s291 = smul.u32 4, %s290
        $region28: #{tpu_custom_call.1} parent=23 // pred_fallthru
          _
        // Predicated region
        $region29: #{tpu_custom_call.1} parent=23 // pred_check
          %p292 = pneg %p130
        $region30: #{tpu_custom_call.1} parent=23 // pred_check_branch
          %294 = sbr.rel (%p292) target = $region32
        $region31: #{tpu_custom_call.1} parent=23 // pred_region
          %s295 = sand.u32 %s120, 1
          %s296 = scalar_lea.sflag [#allocation5], %s295
          %s297 = sand.u32 %s120, 1
          %s298 = smul.addr %s297, 96
          %s299 = scalar_lea.vmem [#allocation4], %s298
          %301 = vsyncadd %s296, 0
          %s302 = smul.addr %s29, 12
          %s303 = smul.addr %s302, 8
          %s304 = scalar_lea.hbm %s3, %s303
          %s305 = sshll.u32 %s304, 4
          %s306 = int_to_ptr.hbm [resolvable:$true] %s305
          %s307 = sshll.u32 %s299, 4
          %s308 = int_to_ptr.vmem [resolvable:$true] %s307
          %313 = dma.hbm_to_vmem [thread:$0]  %s306, 1536, %s308, %s296, 384, 384, 24
        $region32: #{tpu_custom_call.1} parent=23 // pred_fallthru
          _
        // Predicated region
        $region33: #{tpu_custom_call.1} parent=23 // pred_check
          %p314 = pneg %p156
        $region34: #{tpu_custom_call.1} parent=23 // pred_check_branch
          %316 = sbr.rel (%p314) target = $region36
        $region35: #{tpu_custom_call.1} parent=23 // pred_region
          %s317 = sand.u32 %s146, 1
          %s318 = scalar_lea.sflag [#allocation8], %s317
          %s319 = sand.u32 %s146, 1
          %s320 = smul.addr %s319, 384
          %s321 = scalar_lea.vmem [#allocation7], %s320
          %323 = vsyncadd %s318, 0
          %s324 = smul.addr %s29, 48
          %s325 = smul.addr %s324, 8
          %s326 = scalar_lea.hbm %s4, %s325
          %s327 = sshll.u32 %s326, 4
          %s328 = int_to_ptr.hbm [resolvable:$true] %s327
          %s329 = sshll.u32 %s321, 4
          %s330 = int_to_ptr.vmem [resolvable:$true] %s329
          %335 = dma.hbm_to_vmem [thread:$0]  %s328, 6144, %s330, %s318, 384, 384, 24
        $region36: #{tpu_custom_call.1} parent=23 // pred_fallthru
          _
        // Predicated region
        $region37: #{tpu_custom_call.1} parent=23 // pred_check
          %p336 = pneg %p182
        $region38: #{tpu_custom_call.1} parent=23 // pred_check_branch
          %338 = sbr.rel (%p336) target = $region40
        $region39: #{tpu_custom_call.1} parent=23 // pred_region
          %p339 = scmp.lt.s32.totalorder %s29, 1
          %s340 = scalar_select %p339, %s29, 1
          %s341 = smul.addr %s340, 3
          %s342 = scalar_lea.vmem %s5, %s341
        $region40: #{tpu_custom_call.1} parent=23 // pred_fallthru
          _
        // Predicated region
        $region41: #{tpu_custom_call.1} parent=23 // pred_check
          %p343 = pneg %p208
        $region42: #{tpu_custom_call.1} parent=23 // pred_check_branch
          %345 = sbr.rel (%p343) target = $region44
        $region43: #{tpu_custom_call.1} parent=23 // pred_region
          %p346 = scmp.lt.s32.totalorder %s29, 1
          %s347 = scalar_select %p346, %s29, 1
          %s348 = smul.addr %s347, 3
          %s349 = scalar_lea.vmem %s6, %s348
        $region44: #{tpu_custom_call.1} parent=23 // pred_fallthru
          _
      $region24: #{tpu_custom_call.1} parent=5 // pred_fallthru
        _
      %p350 = scmp.le.s32.totalorder 1, %s22
      %p351 = scmp.lt.s32.totalorder %s22, 5
      %p352 = pnand %p350, %p351
      %p353 = pneg %p352
      // Predicated region
      $region45: #{tpu_custom_call.1} parent=5 // pred_check
        _
      $region46: #{tpu_custom_call.1} parent=5 // pred_check_branch
        %355 = sbr.rel (%p352) target = $region48
      $region47: #{tpu_custom_call.1} parent=5 // pred_region
        %s356 = ssub.s32 %s22, 1
        %s357 = sand.u32 %s123, 1
        %s358 = scalar_lea.sflag [#allocation5], %s357
        %s359 = sand.u32 %s123, 1
        %s360 = smul.addr %s359, 96
        %s361 = scalar_lea.vmem [#allocation4], %s360
        // Predicated region
        $region49: #{tpu_custom_call.1} parent=47 // pred_check
          %p362 = pneg %p136
        $region50: #{tpu_custom_call.1} parent=47 // pred_check_branch
          %364 = sbr.rel (%p362) target = $region52
        $region51: #{tpu_custom_call.1} parent=47 // pred_region
          %366 = dma.done %s358, 1536
        $region52: #{tpu_custom_call.1} parent=47 // pred_fallthru
          _
        %s367 = sand.u32 %s149, 1
        %s368 = scalar_lea.sflag [#allocation8], %s367
        %s369 = sand.u32 %s149, 1
        %s370 = smul.addr %s369, 384
        %s371 = scalar_lea.vmem [#allocation7], %s370
        // Predicated region
        $region53: #{tpu_custom_call.1} parent=47 // pred_check
          %p372 = pneg %p162
        $region54: #{tpu_custom_call.1} parent=47 // pred_check_branch
          %374 = sbr.rel (%p372) target = $region56
        $region55: #{tpu_custom_call.1} parent=47 // pred_region
          %376 = dma.done %s368, 6144
        $region56: #{tpu_custom_call.1} parent=47 // pred_fallthru
          _
        %s377 = smul.u32 %s32, 2
        %s378 = ssub.s32 1, %s377
        %s379 = smul.u32 %s31, %s378
        %s380 = sadd.s32 %s32, %s379
        %s381 = smul.u32 4, %s380
        %p382 = scmp.lt.s32.totalorder %s381, 7
        %s383 = scalar_select %p382, %s381, 7
        %s384 = smul.addr %s383, 8
        %s385 = scalar_lea.vmem %s0, %s384
        %p386 = pneg %p68
        %p387 = pneg %p65
        %p388 = pneg %p89
        %p389 = pneg %p86
        %p390 = pneg %p110
        %p391 = pneg %p107
        %s392 = sand.u32 %s123, 1
        %s393 = scalar_lea.sflag [#allocation5], %s392
        %s394 = sand.u32 %s123, 1
        %s395 = smul.addr %s394, 96
        %s396 = scalar_lea.vmem [#allocation4], %s395
        %p397 = pneg %p136
        %p398 = pneg %p133
        %s399 = sand.u32 %s149, 1
        %s400 = scalar_lea.sflag [#allocation8], %s399
        %s401 = sand.u32 %s149, 1
        %s402 = smul.addr %s401, 384
        %s403 = scalar_lea.vmem [#allocation7], %s402
        %p404 = pneg %p162
        %p405 = pneg %p159
        %p406 = scmp.lt.s32.totalorder %s31, 1
        %s407 = scalar_select %p406, %s31, 1
        %s408 = smul.addr %s407, 3
        %s409 = scalar_lea.vmem %s5, %s408
        %p410 = pneg %p188
        %p411 = pneg %p185
        %p412 = scmp.lt.s32.totalorder %s31, 1
        %s413 = scalar_select %p412, %s31, 1
        %s414 = smul.addr %s413, 3
        %s415 = scalar_lea.vmem %s6, %s414
        %p416 = pneg %p214
        %p417 = pneg %p211
        %p418 = pneg %p250
        %p419 = pneg %p247
        %s420 = sand.u32 %s237, 1
        %s421 = scalar_lea.sflag [#allocation6], %s420
        %s422 = sand.u32 %s237, 1
        %s423 = smul.addr %s422, 32
        %s424 = scalar_lea.vmem [#allocation9], %s423
        %s425 = smul.u32 %s32, 2
        %s426 = ssub.s32 1, %s425
        %s427 = smul.u32 %s31, %s426
        %s428 = sadd.s32 %s32, %s427
        %s429 = smul.u32 4, %s428
        %p430 = scmp.lt.s32.totalorder %s429, 7
        %s431 = scalar_select %p430, %s429, 7
        %s432 = smul.addr %s431, 8
        %s433 = scalar_lea.vmem %s0, %s432
        %s434 = smul.u32 %s32, 2
        %s435 = ssub.s32 1, %s434
        %s436 = smul.u32 %s31, %s435
        %s437 = sadd.s32 %s32, %s436
        %s438 = smul.u32 4, %s437
        %p439 = scmp.lt.s32.totalorder %s31, 1
        %s440 = scalar_select %p439, %s31, 1
        %s441 = smul.addr %s440, 3
        %s442 = scalar_lea.vmem %s5, %s441
        %p443 = scmp.lt.s32.totalorder %s31, 1
        %s444 = scalar_select %p443, %s31, 1
        %s445 = smul.addr %s444, 3
        %s446 = scalar_lea.vmem %s6, %s445
        %s447 = smul.u32 %s32, 2
        %s448 = ssub.s32 1, %s447
        %s449 = smul.u32 %s31, %s448
        %s450 = sadd.s32 %s32, %s449
        %s451 = smul.u32 4, %s450
        %v452 = vld [vmem:[%s433] sm:$0xff]
        %v453 = vld [vmem:[%s433 + $0x8] sm:$0xff]
        %v454 = vld [vmem:[%s433 + $0x10] sm:$0xff]
        %v455 = vld [vmem:[%s433 + $0x18] sm:$0xff]
        %vm456 = vcmask 261120
        %v457 = vsel %vm456, %v452, 0.0
        %458 = vadd.xlane.f32.xlu0 %v457
        %v459 = vpop.xlane.xlu0 %458
        %v460 = vsel %vm456, %v453, 0.0
        %461 = vadd.xlane.f32.xlu0 %v460
        %v462 = vpop.xlane.xlu0 %461
        %v463 = vsel %vm456, %v454, 0.0
        %464 = vadd.xlane.f32.xlu0 %v463
        %v465 = vpop.xlane.xlu0 %464
        %v466 = vsel %vm456, %v455, 0.0
        %467 = vadd.xlane.f32.xlu0 %v466
        %v468 = vpop.xlane.xlu0 %467
        %v469 = vrcp.pop 32.0
        %v470 = vmul.f32 32.0, %v469
        %v471 = vsub.f32 1.0, %v470
        %v472 = vmul.f32 %v469, %v471
        %v473 = vadd.f32 %v469, %v472
        %vm474 = vweird.f32 %v469
        %v475 = vsel %vm474, %v469, %v473
        %v476 = vmul.f32 %v459, %v475
        %v477 = vmul.f32 %v462, %v475
        %v478 = vmul.f32 %v465, %v475
        %v479 = vmul.f32 %v468, %v475
        %v480 = vsub.f32 %v452, %v476
        %v481 = vsub.f32 %v453, %v477
        %v482 = vsub.f32 %v454, %v478
        %v483 = vsub.f32 %v455, %v479
        %v484 = vmul.f32 %v480, %v480
        %v485 = vmul.f32 %v481, %v481
        %v486 = vmul.f32 %v482, %v482
        %v487 = vmul.f32 %v483, %v483
        %v488 = vsel %vm456, %v484, 0.0
        %489 = vadd.xlane.f32.xlu0 %v488
        %v490 = vpop.xlane.xlu0 %489
        %v491 = vsel %vm456, %v485, 0.0
        %492 = vadd.xlane.f32.xlu0 %v491
        %v493 = vpop.xlane.xlu0 %492
        %v494 = vsel %vm456, %v486, 0.0
        %495 = vadd.xlane.f32.xlu0 %v494
        %v496 = vpop.xlane.xlu0 %495
        %v497 = vsel %vm456, %v487, 0.0
        %498 = vadd.xlane.f32.xlu0 %v497
        %v499 = vpop.xlane.xlu0 %498
        %v500 = vmul.f32 %v490, %v475
        %v501 = vmul.f32 %v493, %v475
        %v502 = vmul.f32 %v496, %v475
        %v503 = vmul.f32 %v499, %v475
        %v504 = vadd.f32 %v500, 1e-05
        %v505 = vadd.f32 %v501, 1e-05
        %v506 = vadd.f32 %v502, 1e-05
        %v507 = vadd.f32 %v503, 1e-05
        %v508 = vrsqrt.pop %v504
        %v509 = vmul.f32 %v508, %v504
        %v510 = vmul.f32 %v509, %v508
        %v511 = vmul.f32 0.5, %v510
        %v512 = vsub.f32 1.5, %v511
        %v513 = vmul.f32 %v508, %v512
        %vm514 = vweird.f32 %v504
        %vm515 = vweird.f32 %v508
        %vm516 = vmor %vm514, %vm515
        %v517 = vsel %vm516, %v508, %v513
        %v518 = vrsqrt.pop %v505
        %v519 = vmul.f32 %v518, %v505
        %v520 = vmul.f32 %v519, %v518
        %v521 = vmul.f32 0.5, %v520
        %v522 = vsub.f32 1.5, %v521
        %v523 = vmul.f32 %v518, %v522
        %vm524 = vweird.f32 %v505
        %vm525 = vweird.f32 %v518
        %vm526 = vmor %vm524, %vm525
        %v527 = vsel %vm526, %v518, %v523
        %v528 = vrsqrt.pop %v506
        %v529 = vmul.f32 %v528, %v506
        %v530 = vmul.f32 %v529, %v528
        %v531 = vmul.f32 0.5, %v530
        %v532 = vsub.f32 1.5, %v531
        %v533 = vmul.f32 %v528, %v532
        %vm534 = vweird.f32 %v506
        %vm535 = vweird.f32 %v528
        %vm536 = vmor %vm534, %vm535
        %v537 = vsel %vm536, %v528, %v533
        %v538 = vrsqrt.pop %v507
        %v539 = vmul.f32 %v538, %v507
        %v540 = vmul.f32 %v539, %v538
        %v541 = vmul.f32 0.5, %v540
        %v542 = vsub.f32 1.5, %v541
        %v543 = vmul.f32 %v538, %v542
        %vm544 = vweird.f32 %v507
        %vm545 = vweird.f32 %v538
        %vm546 = vmor %vm544, %vm545
        %v547 = vsel %vm546, %v538, %v543
        %v548 = vmul.f32 %v480, %v517
        %v549 = vmul.f32 %v481, %v527
        %v550 = vmul.f32 %v482, %v537
        %v551 = vmul.f32 %v483, %v547
        %v552 = vld [vmem:[%s1] sm:$0x1]
        %v554 = vperm.slane %v552, 0
        %v556 = vmul.f32 %v548, %v554
        %v557 = vmul.f32 %v549, %v554
        %v558 = vmul.f32 %v550, %v554
        %v559 = vmul.f32 %v551, %v554
        %v560 = vld [vmem:[%s2] sm:$0x1]
        %v562 = vperm.slane %v560, 0
        %v564 = vadd.f32 %v556, %v562
        %v565 = vadd.f32 %v557, %v562
        %v566 = vadd.f32 %v558, %v562
        %v567 = vadd.f32 %v559, %v562
        %v568 = vmul.f32 %v564, 0.5
        %v569 = vmul.f32 %v565, 0.5
        %v570 = vmul.f32 %v566, 0.5
        %v571 = vmul.f32 %v567, 0.5
        %v572 = vmul.f32 %v564, 0.70710677
        %v573 = vmul.f32 %v565, 0.70710677
        %v574 = vmul.f32 %v566, 0.70710677
        %v575 = vmul.f32 %v567, 0.70710677
        %v576 = vand.u32 2147483647, %v572
        %v577 = vand.u32 2147483647, %v573
        %v578 = vand.u32 2147483647, %v574
        %v579 = vand.u32 2147483647, %v575
        %v580 = vmul.f32 %v576, 0.3275911
        %v581 = vmul.f32 %v577, 0.3275911
        %v582 = vmul.f32 %v578, 0.3275911
        %v583 = vmul.f32 %v579, 0.3275911
        %v584 = vadd.f32 %v580, 1.0
        %v585 = vadd.f32 %v581, 1.0
        %v586 = vadd.f32 %v582, 1.0
        %v587 = vadd.f32 %v583, 1.0
        %v588 = vrcp.pop %v584
        %v589 = vmul.f32 %v584, %v588
        %v590 = vsub.f32 1.0, %v589
        %v591 = vmul.f32 %v588, %v590
        %v592 = vadd.f32 %v588, %v591
        %vm593 = vweird.f32 %v584
        %vm594 = vweird.f32 %v588
        %vm595 = vmor %vm593, %vm594
        %v596 = vsel %vm595, %v588, %v592
        %v597 = vand.u32 2147483647, %v584
        %vm598 = vcmp.eq.f32.partialorder %v597, 8.507059e+37
        %v599 = vand.u32 %v584, 2147483648
        %v600 = vor.u32 1.1754944e-38, %v599
        %v601 = vsel %vm598, %v600, %v596
        %v602 = vmul.f32 1.0, %v601
        %v603 = vrcp.pop %v585
        %v604 = vmul.f32 %v585, %v603
        %v605 = vsub.f32 1.0, %v604
        %v606 = vmul.f32 %v603, %v605
        %v607 = vadd.f32 %v603, %v606
        %vm608 = vweird.f32 %v585
        %vm609 = vweird.f32 %v603
        %vm610 = vmor %vm608, %vm609
        %v611 = vsel %vm610, %v603, %v607
        %v612 = vand.u32 2147483647, %v585
        %vm613 = vcmp.eq.f32.partialorder %v612, 8.507059e+37
        %v614 = vand.u32 %v585, 2147483648
        %v615 = vor.u32 1.1754944e-38, %v614
        %v616 = vsel %vm613, %v615, %v611
        %v617 = vmul.f32 1.0, %v616
        %v618 = vrcp.pop %v586
        %v619 = vmul.f32 %v586, %v618
        %v620 = vsub.f32 1.0, %v619
        %v621 = vmul.f32 %v618, %v620
        %v622 = vadd.f32 %v618, %v621
        %vm623 = vweird.f32 %v586
        %vm624 = vweird.f32 %v618
        %vm625 = vmor %vm623, %vm624
        %v626 = vsel %vm625, %v618, %v622
        %v627 = vand.u32 2147483647, %v586
        %vm628 = vcmp.eq.f32.partialorder %v627, 8.507059e+37
        %v629 = vand.u32 %v586, 2147483648
        %v630 = vor.u32 1.1754944e-38, %v629
        %v631 = vsel %vm628, %v630, %v626
        %v632 = vmul.f32 1.0, %v631
        %v633 = vrcp.pop %v587
        %v634 = vmul.f32 %v587, %v633
        %v635 = vsub.f32 1.0, %v634
        %v636 = vmul.f32 %v633, %v635
        %v637 = vadd.f32 %v633, %v636
        %vm638 = vweird.f32 %v587
        %vm639 = vweird.f32 %v633
        %vm640 = vmor %vm638, %vm639
        %v641 = vsel %vm640, %v633, %v637
        %v642 = vand.u32 2147483647, %v587
        %vm643 = vcmp.eq.f32.partialorder %v642, 8.507059e+37
        %v644 = vand.u32 %v587, 2147483648
        %v645 = vor.u32 1.1754944e-38, %v644
        %v646 = vsel %vm643, %v645, %v641
        %v647 = vmul.f32 1.0, %v646
        %v648 = vmul.f32 %v602, 1.0614054
        %v649 = vmul.f32 %v617, 1.0614054
        %v650 = vmul.f32 %v632, 1.0614054
        %v651 = vmul.f32 %v647, 1.0614054
        %v652 = vadd.f32 %v648, -1.4531521
        %v653 = vadd.f32 %v649, -1.4531521
        %v654 = vadd.f32 %v650, -1.4531521
        %v655 = vadd.f32 %v651, -1.4531521
        %v656 = vmul.f32 %v652, %v602
        %v657 = vmul.f32 %v653, %v617
        %v658 = vmul.f32 %v654, %v632
        %v659 = vmul.f32 %v655, %v647
        %v660 = vadd.f32 %v656, 1.4214138
        %v661 = vadd.f32 %v657, 1.4214138
        %v662 = vadd.f32 %v658, 1.4214138
        %v663 = vadd.f32 %v659, 1.4214138
        %v664 = vmul.f32 %v660, %v602
        %v665 = vmul.f32 %v661, %v617
        %v666 = vmul.f32 %v662, %v632
        %v667 = vmul.f32 %v663, %v647
        %v668 = vadd.f32 %v664, -0.28449672
        %v669 = vadd.f32 %v665, -0.28449672
        %v670 = vadd.f32 %v666, -0.28449672
        %v671 = vadd.f32 %v667, -0.28449672
        %v672 = vmul.f32 %v668, %v602
        %v673 = vmul.f32 %v669, %v617
        %v674 = vmul.f32 %v670, %v632
        %v675 = vmul.f32 %v671, %v647
        %v676 = vadd.f32 %v672, 0.2548296
        %v677 = vadd.f32 %v673, 0.2548296
        %v678 = vadd.f32 %v674, 0.2548296
        %v679 = vadd.f32 %v675, 0.2548296
        %v680 = vmul.f32 %v676, %v602
        %v681 = vmul.f32 %v677, %v617
        %v682 = vmul.f32 %v678, %v632
        %v683 = vmul.f32 %v679, %v647
        %v684 = vsub.f32 0.0, %v576
        %v685 = vsub.f32 0.0, %v577
        %v686 = vsub.f32 0.0, %v578
        %v687 = vsub.f32 0.0, %v579
        %v688 = vmul.f32 %v684, %v576
        %v689 = vmul.f32 %v685, %v577
        %v690 = vmul.f32 %v686, %v578
        %v691 = vmul.f32 %v687, %v579
        %v692 = vmul.f32 %v688, 1.442695
        %v693 = vpow.pop %v692
        %v694 = vmul.f32 %v689, 1.442695
        %v695 = vpow.pop %v694
        %v696 = vmul.f32 %v690, 1.442695
        %v697 = vpow.pop %v696
        %v698 = vmul.f32 %v691, 1.442695
        %v699 = vpow.pop %v698
        %v700 = vmul.f32 %v680, %v693
        %v701 = vmul.f32 %v681, %v695
        %v702 = vmul.f32 %v682, %v697
        %v703 = vmul.f32 %v683, %v699
        %v704 = vsub.f32 1.0, %v700
        %v705 = vsub.f32 1.0, %v701
        %v706 = vsub.f32 1.0, %v702
        %v707 = vsub.f32 1.0, %v703
        %vm708 = vcmp.lt.f32.partialorder %v572, 0.0
        %vm709 = vcmp.lt.f32.partialorder %v573, 0.0
        %vm710 = vcmp.lt.f32.partialorder %v574, 0.0
        %vm711 = vcmp.lt.f32.partialorder %v575, 0.0
        %v712 = vsub.f32 0.0, %v704
        %v713 = vsub.f32 0.0, %v705
        %v714 = vsub.f32 0.0, %v706
        %v715 = vsub.f32 0.0, %v707
        %v716 = vsel %vm708, %v712, %v704
        %v717 = vsel %vm709, %v713, %v705
        %v718 = vsel %vm710, %v714, %v706
        %v719 = vsel %vm711, %v715, %v707
        %v720 = vadd.f32 %v716, 1.0
        %v721 = vadd.f32 %v717, 1.0
        %v722 = vadd.f32 %v718, 1.0
        %v723 = vadd.f32 %v719, 1.0
        %v724 = vmul.f32 %v568, %v720
        %v725 = vmul.f32 %v569, %v721
        %v726 = vmul.f32 %v570, %v722
        %v727 = vmul.f32 %v571, %v723
        %v728 = vld [vmem:[%s361] sm:$0xff]
        %v729 = vld [vmem:[%s361 + $0x8] sm:$0xff]
        %v730 = vld [vmem:[%s361 + $0x10] sm:$0xff]
        %v731 = vld [vmem:[%s361 + $0x18] sm:$0xff]
        %v732 = vld [vmem:[%s361 + $0x20] sm:$0xff]
        %v733 = vld [vmem:[%s361 + $0x28] sm:$0xff]
        %v734 = vld [vmem:[%s361 + $0x30] sm:$0xff]
        %v735 = vld [vmem:[%s361 + $0x38] sm:$0xff]
        %v736 = vld [vmem:[%s361 + $0x40] sm:$0xff]
        %v737 = vld [vmem:[%s361 + $0x48] sm:$0xff]
        %v738 = vld [vmem:[%s361 + $0x50] sm:$0xff]
        %v739 = vld [vmem:[%s361 + $0x58] sm:$0xff]
        %v740 = vld [vmem:[%s442] sm:$0x7]
        %v742 = vperm.slane %v740, 0
        %v743 = vperm.slane %v740, 1
        %v744 = vperm.slane %v740, 2
        %v749 = vsel %vm456, %v724, 0
        %v752 = vsel %vm456, %v725, 0
        %v755 = vsel %vm456, %v726, 0
        %v758 = vsel %vm456, %v727, 0
        %760 = vmatpush.msra.mxu0 0.0
        %761 = vmatpush.msra.mxu0 0.0
        %762 = vmatpush.msra.mxu0 0.0
        %763 = vmatpush.msra.mxu0 0.0
        %764 = vmatpush.msra.mxu0 0.0
        %765 = vmatpush.msra.mxu0 0.0
        %766 = vmatpush.msra.mxu0 0.0
        %767 = vmatpush.msra.mxu0 0.0
        %768 = vmatpush.msra.mxu0 0.0
        %769 = vmatpush.msra.mxu0 0.0
        %770 = vmatpush.msra.mxu0 0.0
        %771 = vmatpush.msra.mxu0 0.0
        %v772 = vand.u32 %v737, 4294901760
        %773 = vmatpush.msra.mxu0 %v772
        %v774 = vand.u32 %v734, 4294901760
        %775 = vmatpush.msra.mxu0 %v774
        %v776 = vand.u32 %v731, 4294901760
        %777 = vmatpush.msra.mxu0 %v776
        %v778 = vand.u32 %v728, 4294901760
        %779 = vmatpush.msra.mxu0 %v778
        %v780 = vand.u32 %v749, 4294901760
        %v781 = vsub.f32 %v749, %v780
        %v782 = vand.u32 %v781, 4294901760
        %v783 = vsub.f32 %v781, %v782
        %v784 = vand.u32 %v783, 4294901760
        %785 = vmatmul.f32.gmra.mxu0 %v784
        %v786 = vpop.f32.mrf.mxu0
        %v787 = vadd.f32 %v742, %v786
        %v788 = vand.u32 %v752, 4294901760
        %v789 = vsub.f32 %v752, %v788
        %v790 = vand.u32 %v789, 4294901760
        %v791 = vsub.f32 %v789, %v790
        %v792 = vand.u32 %v791, 4294901760
        %793 = vmatmul.f32.gmra.mxu0 %v792
        %v794 = vpop.f32.mrf.mxu0
        %v795 = vadd.f32 %v742, %v794
        %v796 = vand.u32 %v755, 4294901760
        %v797 = vsub.f32 %v755, %v796
        %v798 = vand.u32 %v797, 4294901760
        %v799 = vsub.f32 %v797, %v798
        %v800 = vand.u32 %v799, 4294901760
        %801 = vmatmul.f32.gmra.mxu0 %v800
        %v802 = vpop.f32.mrf.mxu0
        %v803 = vadd.f32 %v742, %v802
        %v804 = vand.u32 %v758, 4294901760
        %v805 = vsub.f32 %v758, %v804
        %v806 = vand.u32 %v805, 4294901760
        %v807 = vsub.f32 %v805, %v806
        %v808 = vand.u32 %v807, 4294901760
        %809 = vmatmul.f32.gmra.mxu0 %v808
        %v810 = vpop.f32.mrf.mxu0
        %v811 = vadd.f32 %v742, %v810
        %812 = vdwg.mxu0
        %813 = vmatpush.msra.mxu0 0.0
        %814 = vmatpush.msra.mxu0 0.0
        %815 = vmatpush.msra.mxu0 0.0
        %816 = vmatpush.msra.mxu0 0.0
        %817 = vmatpush.msra.mxu0 0.0
        %818 = vmatpush.msra.mxu0 0.0
        %819 = vmatpush.msra.mxu0 0.0
        %820 = vmatpush.msra.mxu0 0.0
        %821 = vmatpush.msra.mxu0 0.0
        %822 = vmatpush.msra.mxu0 0.0
        %823 = vmatpush.msra.mxu0 0.0
        %824 = vmatpush.msra.mxu0 0.0
        %v825 = vand.u32 %v737, 4294901760
        %v826 = vsub.f32 %v737, %v825
        %v827 = vand.u32 %v826, 4294901760
        %v828 = vsub.f32 %v826, %v827
        %v829 = vand.u32 %v828, 4294901760
        %830 = vmatpush.msra.mxu0 %v829
        %v831 = vand.u32 %v734, 4294901760
        %v832 = vsub.f32 %v734, %v831
        %v833 = vand.u32 %v832, 4294901760
        %v834 = vsub.f32 %v832, %v833
        %v835 = vand.u32 %v834, 4294901760
        %836 = vmatpush.msra.mxu0 %v835
        %v837 = vand.u32 %v731, 4294901760
        %v838 = vsub.f32 %v731, %v837
        %v839 = vand.u32 %v838, 4294901760
        %v840 = vsub.f32 %v838, %v839
        %v841 = vand.u32 %v840, 4294901760
        %842 = vmatpush.msra.mxu0 %v841
        %v843 = vand.u32 %v728, 4294901760
        %v844 = vsub.f32 %v728, %v843
        %v845 = vand.u32 %v844, 4294901760
        %v846 = vsub.f32 %v844, %v845
        %v847 = vand.u32 %v846, 4294901760
        %848 = vmatpush.msra.mxu0 %v847
        %v849 = vand.u32 %v749, 4294901760
        %850 = vmatmul.f32.gmra.mxu0 %v849
        %v851 = vpop.f32.mrf.mxu0
        %v852 = vadd.f32 %v787, %v851
        %v853 = vand.u32 %v752, 4294901760
        %854 = vmatmul.f32.gmra.mxu0 %v853
        %v855 = vpop.f32.mrf.mxu0
        %v856 = vadd.f32 %v795, %v855
        %v857 = vand.u32 %v755, 4294901760
        %858 = vmatmul.f32.gmra.mxu0 %v857
        %v859 = vpop.f32.mrf.mxu0
        %v860 = vadd.f32 %v803, %v859
        %v861 = vand.u32 %v758, 4294901760
        %862 = vmatmul.f32.gmra.mxu0 %v861
        %v863 = vpop.f32.mrf.mxu0
        %v864 = vadd.f32 %v811, %v863
        %865 = vdwg.mxu0
        %866 = vmatpush.msra.mxu0 0.0
        %867 = vmatpush.msra.mxu0 0.0
        %868 = vmatpush.msra.mxu0 0.0
        %869 = vmatpush.msra.mxu0 0.0
        %870 = vmatpush.msra.mxu0 0.0
        %871 = vmatpush.msra.mxu0 0.0
        %872 = vmatpush.msra.mxu0 0.0
        %873 = vmatpush.msra.mxu0 0.0
        %874 = vmatpush.msra.mxu0 0.0
        %875 = vmatpush.msra.mxu0 0.0
        %876 = vmatpush.msra.mxu0 0.0
        %877 = vmatpush.msra.mxu0 0.0
        %v878 = vand.u32 %v737, 4294901760
        %v879 = vsub.f32 %v737, %v878
        %880 = vmatpush.msra.mxu0 %v879
        %v881 = vand.u32 %v734, 4294901760
        %v882 = vsub.f32 %v734, %v881
        %883 = vmatpush.msra.mxu0 %v882
        %v884 = vand.u32 %v731, 4294901760
        %v885 = vsub.f32 %v731, %v884
        %886 = vmatpush.msra.mxu0 %v885
        %v887 = vand.u32 %v728, 4294901760
        %v888 = vsub.f32 %v728, %v887
        %889 = vmatpush.msra.mxu0 %v888
        %v890 = vand.u32 %v749, 4294901760
        %v891 = vsub.f32 %v749, %v890
        %892 = vmatmul.f32.gmra.mxu0 %v891
        %v893 = vpop.f32.mrf.mxu0
        %v894 = vadd.f32 %v852, %v893
        %v895 = vand.u32 %v752, 4294901760
        %v896 = vsub.f32 %v752, %v895
        %897 = vmatmul.f32.gmra.mxu0 %v896
        %v898 = vpop.f32.mrf.mxu0
        %v899 = vadd.f32 %v856, %v898
        %v900 = vand.u32 %v755, 4294901760
        %v901 = vsub.f32 %v755, %v900
        %902 = vmatmul.f32.gmra.mxu0 %v901
        %v903 = vpop.f32.mrf.mxu0
        %v904 = vadd.f32 %v860, %v903
        %v905 = vand.u32 %v758, 4294901760
        %v906 = vsub.f32 %v758, %v905
        %907 = vmatmul.f32.gmra.mxu0 %v906
        %v908 = vpop.f32.mrf.mxu0
        %v909 = vadd.f32 %v864, %v908
        %910 = vdwg.mxu0
        %911 = vmatpush.msra.mxu0 0.0
        %912 = vmatpush.msra.mxu0 0.0
        %913 = vmatpush.msra.mxu0 0.0
        %914 = vmatpush.msra.mxu0 0.0
        %915 = vmatpush.msra.mxu0 0.0
        %916 = vmatpush.msra.mxu0 0.0
        %917 = vmatpush.msra.mxu0 0.0
        %918 = vmatpush.msra.mxu0 0.0
        %919 = vmatpush.msra.mxu0 0.0
        %920 = vmatpush.msra.mxu0 0.0
        %921 = vmatpush.msra.mxu0 0.0
        %922 = vmatpush.msra.mxu0 0.0
        %v923 = vand.u32 %v737, 4294901760
        %924 = vmatpush.msra.mxu0 %v923
        %v925 = vand.u32 %v734, 4294901760
        %926 = vmatpush.msra.mxu0 %v925
        %v927 = vand.u32 %v731, 4294901760
        %928 = vmatpush.msra.mxu0 %v927
        %v929 = vand.u32 %v728, 4294901760
        %930 = vmatpush.msra.mxu0 %v929
        %v931 = vand.u32 %v749, 4294901760
        %v932 = vsub.f32 %v749, %v931
        %v933 = vand.u32 %v932, 4294901760
        %934 = vmatmul.f32.gmra.mxu0 %v933
        %v935 = vpop.f32.mrf.mxu0
        %v936 = vadd.f32 %v894, %v935
        %v937 = vand.u32 %v752, 4294901760
        %v938 = vsub.f32 %v752, %v937
        %v939 = vand.u32 %v938, 4294901760
        %940 = vmatmul.f32.gmra.mxu0 %v939
        %v941 = vpop.f32.mrf.mxu0
        %v942 = vadd.f32 %v899, %v941
        %v943 = vand.u32 %v755, 4294901760
        %v944 = vsub.f32 %v755, %v943
        %v945 = vand.u32 %v944, 4294901760
        %946 = vmatmul.f32.gmra.mxu0 %v945
        %v947 = vpop.f32.mrf.mxu0
        %v948 = vadd.f32 %v904, %v947
        %v949 = vand.u32 %v758, 4294901760
        %v950 = vsub.f32 %v758, %v949
        %v951 = vand.u32 %v950, 4294901760
        %952 = vmatmul.f32.gmra.mxu0 %v951
        %v953 = vpop.f32.mrf.mxu0
        %v954 = vadd.f32 %v909, %v953
        %955 = vdwg.mxu0
        %956 = vmatpush.msra.mxu0 0.0
        %957 = vmatpush.msra.mxu0 0.0
        %958 = vmatpush.msra.mxu0 0.0
        %959 = vmatpush.msra.mxu0 0.0
        %960 = vmatpush.msra.mxu0 0.0
        %961 = vmatpush.msra.mxu0 0.0
        %962 = vmatpush.msra.mxu0 0.0
        %963 = vmatpush.msra.mxu0 0.0
        %964 = vmatpush.msra.mxu0 0.0
        %965 = vmatpush.msra.mxu0 0.0
        %966 = vmatpush.msra.mxu0 0.0
        %967 = vmatpush.msra.mxu0 0.0
        %v968 = vand.u32 %v737, 4294901760
        %v969 = vsub.f32 %v737, %v968
        %v970 = vand.u32 %v969, 4294901760
        %971 = vmatpush.msra.mxu0 %v970
        %v972 = vand.u32 %v734, 4294901760
        %v973 = vsub.f32 %v734, %v972
        %v974 = vand.u32 %v973, 4294901760
        %975 = vmatpush.msra.mxu0 %v974
        %v976 = vand.u32 %v731, 4294901760
        %v977 = vsub.f32 %v731, %v976
        %v978 = vand.u32 %v977, 4294901760
        %979 = vmatpush.msra.mxu0 %v978
        %v980 = vand.u32 %v728, 4294901760
        %v981 = vsub.f32 %v728, %v980
        %v982 = vand.u32 %v981, 4294901760
        %983 = vmatpush.msra.mxu0 %v982
        %v984 = vand.u32 %v749, 4294901760
        %985 = vmatmul.f32.gmra.mxu0 %v984
        %v986 = vpop.f32.mrf.mxu0
        %v987 = vadd.f32 %v936, %v986
        %v988 = vand.u32 %v752, 4294901760
        %989 = vmatmul.f32.gmra.mxu0 %v988
        %v990 = vpop.f32.mrf.mxu0
        %v991 = vadd.f32 %v942, %v990
        %v992 = vand.u32 %v755, 4294901760
        %993 = vmatmul.f32.gmra.mxu0 %v992
        %v994 = vpop.f32.mrf.mxu0
        %v995 = vadd.f32 %v948, %v994
        %v996 = vand.u32 %v758, 4294901760
        %997 = vmatmul.f32.gmra.mxu0 %v996
        %v998 = vpop.f32.mrf.mxu0
        %v999 = vadd.f32 %v954, %v998
        %1000 = vdwg.mxu0
        %1001 = vmatpush.msra.mxu0 0.0
        %1002 = vmatpush.msra.mxu0 0.0
        %1003 = vmatpush.msra.mxu0 0.0
        %1004 = vmatpush.msra.mxu0 0.0
        %1005 = vmatpush.msra.mxu0 0.0
        %1006 = vmatpush.msra.mxu0 0.0
        %1007 = vmatpush.msra.mxu0 0.0
        %1008 = vmatpush.msra.mxu0 0.0
        %1009 = vmatpush.msra.mxu0 0.0
        %1010 = vmatpush.msra.mxu0 0.0
        %1011 = vmatpush.msra.mxu0 0.0
        %1012 = vmatpush.msra.mxu0 0.0
        %v1013 = vand.u32 %v737, 4294901760
        %1014 = vmatpush.msra.mxu0 %v1013
        %v1015 = vand.u32 %v734, 4294901760
        %1016 = vmatpush.msra.mxu0 %v1015
        %v1017 = vand.u32 %v731, 4294901760
        %1018 = vmatpush.msra.mxu0 %v1017
        %v1019 = vand.u32 %v728, 4294901760
        %1020 = vmatpush.msra.mxu0 %v1019
        %v1021 = vand.u32 %v749, 4294901760
        %1022 = vmatmul.f32.gmra.mxu0 %v1021
        %v1023 = vpop.f32.mrf.mxu0
        %v1024 = vadd.f32 %v987, %v1023
        %v1025 = vand.u32 %v752, 4294901760
        %1026 = vmatmul.f32.gmra.mxu0 %v1025
        %v1027 = vpop.f32.mrf.mxu0
        %v1028 = vadd.f32 %v991, %v1027
        %v1029 = vand.u32 %v755, 4294901760
        %1030 = vmatmul.f32.gmra.mxu0 %v1029
        %v1031 = vpop.f32.mrf.mxu0
        %v1032 = vadd.f32 %v995, %v1031
        %v1033 = vand.u32 %v758, 4294901760
        %1034 = vmatmul.f32.gmra.mxu0 %v1033
        %v1035 = vpop.f32.mrf.mxu0
        %v1036 = vadd.f32 %v999, %v1035
        %1037 = vdwg.mxu0
        %1038 = vmatpush.msra.mxu0 0.0
        %1039 = vmatpush.msra.mxu0 0.0
        %1040 = vmatpush.msra.mxu0 0.0
        %1041 = vmatpush.msra.mxu0 0.0
        %1042 = vmatpush.msra.mxu0 0.0
        %1043 = vmatpush.msra.mxu0 0.0
        %1044 = vmatpush.msra.mxu0 0.0
        %1045 = vmatpush.msra.mxu0 0.0
        %1046 = vmatpush.msra.mxu0 0.0
        %1047 = vmatpush.msra.mxu0 0.0
        %1048 = vmatpush.msra.mxu0 0.0
        %1049 = vmatpush.msra.mxu0 0.0
        %v1050 = vand.u32 %v738, 4294901760
        %1051 = vmatpush.msra.mxu0 %v1050
        %v1052 = vand.u32 %v735, 4294901760
        %1053 = vmatpush.msra.mxu0 %v1052
        %v1054 = vand.u32 %v732, 4294901760
        %1055 = vmatpush.msra.mxu0 %v1054
        %v1056 = vand.u32 %v729, 4294901760
        %1057 = vmatpush.msra.mxu0 %v1056
        %v1058 = vand.u32 %v749, 4294901760
        %v1059 = vsub.f32 %v749, %v1058
        %v1060 = vand.u32 %v1059, 4294901760
        %v1061 = vsub.f32 %v1059, %v1060
        %v1062 = vand.u32 %v1061, 4294901760
        %1063 = vmatmul.f32.gmra.mxu0 %v1062
        %v1064 = vpop.f32.mrf.mxu0
        %v1065 = vadd.f32 %v743, %v1064
        %v1066 = vand.u32 %v752, 4294901760
        %v1067 = vsub.f32 %v752, %v1066
        %v1068 = vand.u32 %v1067, 4294901760
        %v1069 = vsub.f32 %v1067, %v1068
        %v1070 = vand.u32 %v1069, 4294901760
        %1071 = vmatmul.f32.gmra.mxu0 %v1070
        %v1072 = vpop.f32.mrf.mxu0
        %v1073 = vadd.f32 %v743, %v1072
        %v1074 = vand.u32 %v755, 4294901760
        %v1075 = vsub.f32 %v755, %v1074
        %v1076 = vand.u32 %v1075, 4294901760
        %v1077 = vsub.f32 %v1075, %v1076
        %v1078 = vand.u32 %v1077, 4294901760
        %1079 = vmatmul.f32.gmra.mxu0 %v1078
        %v1080 = vpop.f32.mrf.mxu0
        %v1081 = vadd.f32 %v743, %v1080
        %v1082 = vand.u32 %v758, 4294901760
        %v1083 = vsub.f32 %v758, %v1082
        %v1084 = vand.u32 %v1083, 4294901760
        %v1085 = vsub.f32 %v1083, %v1084
        %v1086 = vand.u32 %v1085, 4294901760
        %1087 = vmatmul.f32.gmra.mxu0 %v1086
        %v1088 = vpop.f32.mrf.mxu0
        %v1089 = vadd.f32 %v743, %v1088
        %1090 = vdwg.mxu0
        %1091 = vmatpush.msra.mxu0 0.0
        %1092 = vmatpush.msra.mxu0 0.0
        %1093 = vmatpush.msra.mxu0 0.0
        %1094 = vmatpush.msra.mxu0 0.0
        %1095 = vmatpush.msra.mxu0 0.0
        %1096 = vmatpush.msra.mxu0 0.0
        %1097 = vmatpush.msra.mxu0 0.0
        %1098 = vmatpush.msra.mxu0 0.0
        %1099 = vmatpush.msra.mxu0 0.0
        %1100 = vmatpush.msra.mxu0 0.0
        %1101 = vmatpush.msra.mxu0 0.0
        %1102 = vmatpush.msra.mxu0 0.0
        %v1103 = vand.u32 %v738, 4294901760
        %v1104 = vsub.f32 %v738, %v1103
        %v1105 = vand.u32 %v1104, 4294901760
        %v1106 = vsub.f32 %v1104, %v1105
        %v1107 = vand.u32 %v1106, 4294901760
        %1108 = vmatpush.msra.mxu0 %v1107
        %v1109 = vand.u32 %v735, 4294901760
        %v1110 = vsub.f32 %v735, %v1109
        %v1111 = vand.u32 %v1110, 4294901760
        %v1112 = vsub.f32 %v1110, %v1111
        %v1113 = vand.u32 %v1112, 4294901760
        %1114 = vmatpush.msra.mxu0 %v1113
        %v1115 = vand.u32 %v732, 4294901760
        %v1116 = vsub.f32 %v732, %v1115
        %v1117 = vand.u32 %v1116, 4294901760
        %v1118 = vsub.f32 %v1116, %v1117
        %v1119 = vand.u32 %v1118, 4294901760
        %1120 = vmatpush.msra.mxu0 %v1119
        %v1121 = vand.u32 %v729, 4294901760
        %v1122 = vsub.f32 %v729, %v1121
        %v1123 = vand.u32 %v1122, 4294901760
        %v1124 = vsub.f32 %v1122, %v1123
        %v1125 = vand.u32 %v1124, 4294901760
        %1126 = vmatpush.msra.mxu0 %v1125
        %v1127 = vand.u32 %v749, 4294901760
        %1128 = vmatmul.f32.gmra.mxu0 %v1127
        %v1129 = vpop.f32.mrf.mxu0
        %v1130 = vadd.f32 %v1065, %v1129
        %v1131 = vand.u32 %v752, 4294901760
        %1132 = vmatmul.f32.gmra.mxu0 %v1131
        %v1133 = vpop.f32.mrf.mxu0
        %v1134 = vadd.f32 %v1073, %v1133
        %v1135 = vand.u32 %v755, 4294901760
        %1136 = vmatmul.f32.gmra.mxu0 %v1135
        %v1137 = vpop.f32.mrf.mxu0
        %v1138 = vadd.f32 %v1081, %v1137
        %v1139 = vand.u32 %v758, 4294901760
        %1140 = vmatmul.f32.gmra.mxu0 %v1139
        %v1141 = vpop.f32.mrf.mxu0
        %v1142 = vadd.f32 %v1089, %v1141
        %1143 = vdwg.mxu0
        %1144 = vmatpush.msra.mxu0 0.0
        %1145 = vmatpush.msra.mxu0 0.0
        %1146 = vmatpush.msra.mxu0 0.0
        %1147 = vmatpush.msra.mxu0 0.0
        %1148 = vmatpush.msra.mxu0 0.0
        %1149 = vmatpush.msra.mxu0 0.0
        %1150 = vmatpush.msra.mxu0 0.0
        %1151 = vmatpush.msra.mxu0 0.0
        %1152 = vmatpush.msra.mxu0 0.0
        %1153 = vmatpush.msra.mxu0 0.0
        %1154 = vmatpush.msra.mxu0 0.0
        %1155 = vmatpush.msra.mxu0 0.0
        %v1156 = vand.u32 %v738, 4294901760
        %v1157 = vsub.f32 %v738, %v1156
        %1158 = vmatpush.msra.mxu0 %v1157
        %v1159 = vand.u32 %v735, 4294901760
        %v1160 = vsub.f32 %v735, %v1159
        %1161 = vmatpush.msra.mxu0 %v1160
        %v1162 = vand.u32 %v732, 4294901760
        %v1163 = vsub.f32 %v732, %v1162
        %1164 = vmatpush.msra.mxu0 %v1163
        %v1165 = vand.u32 %v729, 4294901760
        %v1166 = vsub.f32 %v729, %v1165
        %1167 = vmatpush.msra.mxu0 %v1166
        %v1168 = vand.u32 %v749, 4294901760
        %v1169 = vsub.f32 %v749, %v1168
        %1170 = vmatmul.f32.gmra.mxu0 %v1169
        %v1171 = vpop.f32.mrf.mxu0
        %v1172 = vadd.f32 %v1130, %v1171
        %v1173 = vand.u32 %v752, 4294901760
        %v1174 = vsub.f32 %v752, %v1173
        %1175 = vmatmul.f32.gmra.mxu0 %v1174
        %v1176 = vpop.f32.mrf.mxu0
        %v1177 = vadd.f32 %v1134, %v1176
        %v1178 = vand.u32 %v755, 4294901760
        %v1179 = vsub.f32 %v755, %v1178
        %1180 = vmatmul.f32.gmra.mxu0 %v1179
        %v1181 = vpop.f32.mrf.mxu0
        %v1182 = vadd.f32 %v1138, %v1181
        %v1183 = vand.u32 %v758, 4294901760
        %v1184 = vsub.f32 %v758, %v1183
        %1185 = vmatmul.f32.gmra.mxu0 %v1184
        %v1186 = vpop.f32.mrf.mxu0
        %v1187 = vadd.f32 %v1142, %v1186
        %1188 = vdwg.mxu0
        %1189 = vmatpush.msra.mxu0 0.0
        %1190 = vmatpush.msra.mxu0 0.0
        %1191 = vmatpush.msra.mxu0 0.0
        %1192 = vmatpush.msra.mxu0 0.0
        %1193 = vmatpush.msra.mxu0 0.0
        %1194 = vmatpush.msra.mxu0 0.0
        %1195 = vmatpush.msra.mxu0 0.0
        %1196 = vmatpush.msra.mxu0 0.0
        %1197 = vmatpush.msra.mxu0 0.0
        %1198 = vmatpush.msra.mxu0 0.0
        %1199 = vmatpush.msra.mxu0 0.0
        %1200 = vmatpush.msra.mxu0 0.0
        %v1201 = vand.u32 %v738, 4294901760
        %1202 = vmatpush.msra.mxu0 %v1201
        %v1203 = vand.u32 %v735, 4294901760
        %1204 = vmatpush.msra.mxu0 %v1203
        %v1205 = vand.u32 %v732, 4294901760
        %1206 = vmatpush.msra.mxu0 %v1205
        %v1207 = vand.u32 %v729, 4294901760
        %1208 = vmatpush.msra.mxu0 %v1207
        %v1209 = vand.u32 %v749, 4294901760
        %v1210 = vsub.f32 %v749, %v1209
        %v1211 = vand.u32 %v1210, 4294901760
        %1212 = vmatmul.f32.gmra.mxu0 %v1211
        %v1213 = vpop.f32.mrf.mxu0
        %v1214 = vadd.f32 %v1172, %v1213
        %v1215 = vand.u32 %v752, 4294901760
        %v1216 = vsub.f32 %v752, %v1215
        %v1217 = vand.u32 %v1216, 4294901760
        %1218 = vmatmul.f32.gmra.mxu0 %v1217
        %v1219 = vpop.f32.mrf.mxu0
        %v1220 = vadd.f32 %v1177, %v1219
        %v1221 = vand.u32 %v755, 4294901760
        %v1222 = vsub.f32 %v755, %v1221
        %v1223 = vand.u32 %v1222, 4294901760
        %1224 = vmatmul.f32.gmra.mxu0 %v1223
        %v1225 = vpop.f32.mrf.mxu0
        %v1226 = vadd.f32 %v1182, %v1225
        %v1227 = vand.u32 %v758, 4294901760
        %v1228 = vsub.f32 %v758, %v1227
        %v1229 = vand.u32 %v1228, 4294901760
        %1230 = vmatmul.f32.gmra.mxu0 %v1229
        %v1231 = vpop.f32.mrf.mxu0
        %v1232 = vadd.f32 %v1187, %v1231
        %1233 = vdwg.mxu0
        %1234 = vmatpush.msra.mxu0 0.0
        %1235 = vmatpush.msra.mxu0 0.0
        %1236 = vmatpush.msra.mxu0 0.0
        %1237 = vmatpush.msra.mxu0 0.0
        %1238 = vmatpush.msra.mxu0 0.0
        %1239 = vmatpush.msra.mxu0 0.0
        %1240 = vmatpush.msra.mxu0 0.0
        %1241 = vmatpush.msra.mxu0 0.0
        %1242 = vmatpush.msra.mxu0 0.0
        %1243 = vmatpush.msra.mxu0 0.0
        %1244 = vmatpush.msra.mxu0 0.0
        %1245 = vmatpush.msra.mxu0 0.0
        %v1246 = vand.u32 %v738, 4294901760
        %v1247 = vsub.f32 %v738, %v1246
        %v1248 = vand.u32 %v1247, 4294901760
        %1249 = vmatpush.msra.mxu0 %v1248
        %v1250 = vand.u32 %v735, 4294901760
        %v1251 = vsub.f32 %v735, %v1250
        %v1252 = vand.u32 %v1251, 4294901760
        %1253 = vmatpush.msra.mxu0 %v1252
        %v1254 = vand.u32 %v732, 4294901760
        %v1255 = vsub.f32 %v732, %v1254
        %v1256 = vand.u32 %v1255, 4294901760
        %1257 = vmatpush.msra.mxu0 %v1256
        %v1258 = vand.u32 %v729, 4294901760
        %v1259 = vsub.f32 %v729, %v1258
        %v1260 = vand.u32 %v1259, 4294901760
        %1261 = vmatpush.msra.mxu0 %v1260
        %v1262 = vand.u32 %v749, 4294901760
        %1263 = vmatmul.f32.gmra.mxu0 %v1262
        %v1264 = vpop.f32.mrf.mxu0
        %v1265 = vadd.f32 %v1214, %v1264
        %v1266 = vand.u32 %v752, 4294901760
        %1267 = vmatmul.f32.gmra.mxu0 %v1266
        %v1268 = vpop.f32.mrf.mxu0
        %v1269 = vadd.f32 %v1220, %v1268
        %v1270 = vand.u32 %v755, 4294901760
        %1271 = vmatmul.f32.gmra.mxu0 %v1270
        %v1272 = vpop.f32.mrf.mxu0
        %v1273 = vadd.f32 %v1226, %v1272
        %v1274 = vand.u32 %v758, 4294901760
        %1275 = vmatmul.f32.gmra.mxu0 %v1274
        %v1276 = vpop.f32.mrf.mxu0
        %v1277 = vadd.f32 %v1232, %v1276
        %1278 = vdwg.mxu0
        %1279 = vmatpush.msra.mxu0 0.0
        %1280 = vmatpush.msra.mxu0 0.0
        %1281 = vmatpush.msra.mxu0 0.0
        %1282 = vmatpush.msra.mxu0 0.0
        %1283 = vmatpush.msra.mxu0 0.0
        %1284 = vmatpush.msra.mxu0 0.0
        %1285 = vmatpush.msra.mxu0 0.0
        %1286 = vmatpush.msra.mxu0 0.0
        %1287 = vmatpush.msra.mxu0 0.0
        %1288 = vmatpush.msra.mxu0 0.0
        %1289 = vmatpush.msra.mxu0 0.0
        %1290 = vmatpush.msra.mxu0 0.0
        %v1291 = vand.u32 %v738, 4294901760
        %1292 = vmatpush.msra.mxu0 %v1291
        %v1293 = vand.u32 %v735, 4294901760
        %1294 = vmatpush.msra.mxu0 %v1293
        %v1295 = vand.u32 %v732, 4294901760
        %1296 = vmatpush.msra.mxu0 %v1295
        %v1297 = vand.u32 %v729, 4294901760
        %1298 = vmatpush.msra.mxu0 %v1297
        %v1299 = vand.u32 %v749, 4294901760
        %1300 = vmatmul.f32.gmra.mxu0 %v1299
        %v1301 = vpop.f32.mrf.mxu0
        %v1302 = vadd.f32 %v1265, %v1301
        %v1303 = vand.u32 %v752, 4294901760
        %1304 = vmatmul.f32.gmra.mxu0 %v1303
        %v1305 = vpop.f32.mrf.mxu0
        %v1306 = vadd.f32 %v1269, %v1305
        %v1307 = vand.u32 %v755, 4294901760
        %1308 = vmatmul.f32.gmra.mxu0 %v1307
        %v1309 = vpop.f32.mrf.mxu0
        %v1310 = vadd.f32 %v1273, %v1309
        %v1311 = vand.u32 %v758, 4294901760
        %1312 = vmatmul.f32.gmra.mxu0 %v1311
        %v1313 = vpop.f32.mrf.mxu0
        %v1314 = vadd.f32 %v1277, %v1313
        %1315 = vdwg.mxu0
        %1316 = vmatpush.msra.mxu0 0.0
        %1317 = vmatpush.msra.mxu0 0.0
        %1318 = vmatpush.msra.mxu0 0.0
        %1319 = vmatpush.msra.mxu0 0.0
        %1320 = vmatpush.msra.mxu0 0.0
        %1321 = vmatpush.msra.mxu0 0.0
        %1322 = vmatpush.msra.mxu0 0.0
        %1323 = vmatpush.msra.mxu0 0.0
        %1324 = vmatpush.msra.mxu0 0.0
        %1325 = vmatpush.msra.mxu0 0.0
        %1326 = vmatpush.msra.mxu0 0.0
        %1327 = vmatpush.msra.mxu0 0.0
        %v1328 = vand.u32 %v739, 4294901760
        %1329 = vmatpush.msra.mxu0 %v1328
        %v1330 = vand.u32 %v736, 4294901760
        %1331 = vmatpush.msra.mxu0 %v1330
        %v1332 = vand.u32 %v733, 4294901760
        %1333 = vmatpush.msra.mxu0 %v1332
        %v1334 = vand.u32 %v730, 4294901760
        %1335 = vmatpush.msra.mxu0 %v1334
        %v1336 = vand.u32 %v749, 4294901760
        %v1337 = vsub.f32 %v749, %v1336
        %v1338 = vand.u32 %v1337, 4294901760
        %v1339 = vsub.f32 %v1337, %v1338
        %v1340 = vand.u32 %v1339, 4294901760
        %1341 = vmatmul.f32.gmra.mxu0 %v1340
        %v1342 = vpop.f32.mrf.mxu0
        %v1343 = vadd.f32 %v744, %v1342
        %v1344 = vand.u32 %v752, 4294901760
        %v1345 = vsub.f32 %v752, %v1344
        %v1346 = vand.u32 %v1345, 4294901760
        %v1347 = vsub.f32 %v1345, %v1346
        %v1348 = vand.u32 %v1347, 4294901760
        %1349 = vmatmul.f32.gmra.mxu0 %v1348
        %v1350 = vpop.f32.mrf.mxu0
        %v1351 = vadd.f32 %v744, %v1350
        %v1352 = vand.u32 %v755, 4294901760
        %v1353 = vsub.f32 %v755, %v1352
        %v1354 = vand.u32 %v1353, 4294901760
        %v1355 = vsub.f32 %v1353, %v1354
        %v1356 = vand.u32 %v1355, 4294901760
        %1357 = vmatmul.f32.gmra.mxu0 %v1356
        %v1358 = vpop.f32.mrf.mxu0
        %v1359 = vadd.f32 %v744, %v1358
        %v1360 = vand.u32 %v758, 4294901760
        %v1361 = vsub.f32 %v758, %v1360
        %v1362 = vand.u32 %v1361, 4294901760
        %v1363 = vsub.f32 %v1361, %v1362
        %v1364 = vand.u32 %v1363, 4294901760
        %1365 = vmatmul.f32.gmra.mxu0 %v1364
        %v1366 = vpop.f32.mrf.mxu0
        %v1367 = vadd.f32 %v744, %v1366
        %1368 = vdwg.mxu0
        %1369 = vmatpush.msra.mxu0 0.0
        %1370 = vmatpush.msra.mxu0 0.0
        %1371 = vmatpush.msra.mxu0 0.0
        %1372 = vmatpush.msra.mxu0 0.0
        %1373 = vmatpush.msra.mxu0 0.0
        %1374 = vmatpush.msra.mxu0 0.0
        %1375 = vmatpush.msra.mxu0 0.0
        %1376 = vmatpush.msra.mxu0 0.0
        %1377 = vmatpush.msra.mxu0 0.0
        %1378 = vmatpush.msra.mxu0 0.0
        %1379 = vmatpush.msra.mxu0 0.0
        %1380 = vmatpush.msra.mxu0 0.0
        %v1381 = vand.u32 %v739, 4294901760
        %v1382 = vsub.f32 %v739, %v1381
        %v1383 = vand.u32 %v1382, 4294901760
        %v1384 = vsub.f32 %v1382, %v1383
        %v1385 = vand.u32 %v1384, 4294901760
        %1386 = vmatpush.msra.mxu0 %v1385
        %v1387 = vand.u32 %v736, 4294901760
        %v1388 = vsub.f32 %v736, %v1387
        %v1389 = vand.u32 %v1388, 4294901760
        %v1390 = vsub.f32 %v1388, %v1389
        %v1391 = vand.u32 %v1390, 4294901760
        %1392 = vmatpush.msra.mxu0 %v1391
        %v1393 = vand.u32 %v733, 4294901760
        %v1394 = vsub.f32 %v733, %v1393
        %v1395 = vand.u32 %v1394, 4294901760
        %v1396 = vsub.f32 %v1394, %v1395
        %v1397 = vand.u32 %v1396, 4294901760
        %1398 = vmatpush.msra.mxu0 %v1397
        %v1399 = vand.u32 %v730, 4294901760
        %v1400 = vsub.f32 %v730, %v1399
        %v1401 = vand.u32 %v1400, 4294901760
        %v1402 = vsub.f32 %v1400, %v1401
        %v1403 = vand.u32 %v1402, 4294901760
        %1404 = vmatpush.msra.mxu0 %v1403
        %v1405 = vand.u32 %v749, 4294901760
        %1406 = vmatmul.f32.gmra.mxu0 %v1405
        %v1407 = vpop.f32.mrf.mxu0
        %v1408 = vadd.f32 %v1343, %v1407
        %v1409 = vand.u32 %v752, 4294901760
        %1410 = vmatmul.f32.gmra.mxu0 %v1409
        %v1411 = vpop.f32.mrf.mxu0
        %v1412 = vadd.f32 %v1351, %v1411
        %v1413 = vand.u32 %v755, 4294901760
        %1414 = vmatmul.f32.gmra.mxu0 %v1413
        %v1415 = vpop.f32.mrf.mxu0
        %v1416 = vadd.f32 %v1359, %v1415
        %v1417 = vand.u32 %v758, 4294901760
        %1418 = vmatmul.f32.gmra.mxu0 %v1417
        %v1419 = vpop.f32.mrf.mxu0
        %v1420 = vadd.f32 %v1367, %v1419
        %1421 = vdwg.mxu0
        %1422 = vmatpush.msra.mxu0 0.0
        %1423 = vmatpush.msra.mxu0 0.0
        %1424 = vmatpush.msra.mxu0 0.0
        %1425 = vmatpush.msra.mxu0 0.0
        %1426 = vmatpush.msra.mxu0 0.0
        %1427 = vmatpush.msra.mxu0 0.0
        %1428 = vmatpush.msra.mxu0 0.0
        %1429 = vmatpush.msra.mxu0 0.0
        %1430 = vmatpush.msra.mxu0 0.0
        %1431 = vmatpush.msra.mxu0 0.0
        %1432 = vmatpush.msra.mxu0 0.0
        %1433 = vmatpush.msra.mxu0 0.0
        %v1434 = vand.u32 %v739, 4294901760
        %v1435 = vsub.f32 %v739, %v1434
        %1436 = vmatpush.msra.mxu0 %v1435
        %v1437 = vand.u32 %v736, 4294901760
        %v1438 = vsub.f32 %v736, %v1437
        %1439 = vmatpush.msra.mxu0 %v1438
        %v1440 = vand.u32 %v733, 4294901760
        %v1441 = vsub.f32 %v733, %v1440
        %1442 = vmatpush.msra.mxu0 %v1441
        %v1443 = vand.u32 %v730, 4294901760
        %v1444 = vsub.f32 %v730, %v1443
        %1445 = vmatpush.msra.mxu0 %v1444
        %v1446 = vand.u32 %v749, 4294901760
        %v1447 = vsub.f32 %v749, %v1446
        %1448 = vmatmul.f32.gmra.mxu0 %v1447
        %v1449 = vpop.f32.mrf.mxu0
        %v1450 = vadd.f32 %v1408, %v1449
        %v1451 = vand.u32 %v752, 4294901760
        %v1452 = vsub.f32 %v752, %v1451
        %1453 = vmatmul.f32.gmra.mxu0 %v1452
        %v1454 = vpop.f32.mrf.mxu0
        %v1455 = vadd.f32 %v1412, %v1454
        %v1456 = vand.u32 %v755, 4294901760
        %v1457 = vsub.f32 %v755, %v1456
        %1458 = vmatmul.f32.gmra.mxu0 %v1457
        %v1459 = vpop.f32.mrf.mxu0
        %v1460 = vadd.f32 %v1416, %v1459
        %v1461 = vand.u32 %v758, 4294901760
        %v1462 = vsub.f32 %v758, %v1461
        %1463 = vmatmul.f32.gmra.mxu0 %v1462
        %v1464 = vpop.f32.mrf.mxu0
        %v1465 = vadd.f32 %v1420, %v1464
        %1466 = vdwg.mxu0
        %1467 = vmatpush.msra.mxu0 0.0
        %1468 = vmatpush.msra.mxu0 0.0
        %1469 = vmatpush.msra.mxu0 0.0
        %1470 = vmatpush.msra.mxu0 0.0
        %1471 = vmatpush.msra.mxu0 0.0
        %1472 = vmatpush.msra.mxu0 0.0
        %1473 = vmatpush.msra.mxu0 0.0
        %1474 = vmatpush.msra.mxu0 0.0
        %1475 = vmatpush.msra.mxu0 0.0
        %1476 = vmatpush.msra.mxu0 0.0
        %1477 = vmatpush.msra.mxu0 0.0
        %1478 = vmatpush.msra.mxu0 0.0
        %v1479 = vand.u32 %v739, 4294901760
        %1480 = vmatpush.msra.mxu0 %v1479
        %v1481 = vand.u32 %v736, 4294901760
        %1482 = vmatpush.msra.mxu0 %v1481
        %v1483 = vand.u32 %v733, 4294901760
        %1484 = vmatpush.msra.mxu0 %v1483
        %v1485 = vand.u32 %v730, 4294901760
        %1486 = vmatpush.msra.mxu0 %v1485
        %v1487 = vand.u32 %v749, 4294901760
        %v1488 = vsub.f32 %v749, %v1487
        %v1489 = vand.u32 %v1488, 4294901760
        %1490 = vmatmul.f32.gmra.mxu0 %v1489
        %v1491 = vpop.f32.mrf.mxu0
        %v1492 = vadd.f32 %v1450, %v1491
        %v1493 = vand.u32 %v752, 4294901760
        %v1494 = vsub.f32 %v752, %v1493
        %v1495 = vand.u32 %v1494, 4294901760
        %1496 = vmatmul.f32.gmra.mxu0 %v1495
        %v1497 = vpop.f32.mrf.mxu0
        %v1498 = vadd.f32 %v1455, %v1497
        %v1499 = vand.u32 %v755, 4294901760
        %v1500 = vsub.f32 %v755, %v1499
        %v1501 = vand.u32 %v1500, 4294901760
        %1502 = vmatmul.f32.gmra.mxu0 %v1501
        %v1503 = vpop.f32.mrf.mxu0
        %v1504 = vadd.f32 %v1460, %v1503
        %v1505 = vand.u32 %v758, 4294901760
        %v1506 = vsub.f32 %v758, %v1505
        %v1507 = vand.u32 %v1506, 4294901760
        %1508 = vmatmul.f32.gmra.mxu0 %v1507
        %v1509 = vpop.f32.mrf.mxu0
        %v1510 = vadd.f32 %v1465, %v1509
        %1511 = vdwg.mxu0
        %1512 = vmatpush.msra.mxu0 0.0
        %1513 = vmatpush.msra.mxu0 0.0
        %1514 = vmatpush.msra.mxu0 0.0
        %1515 = vmatpush.msra.mxu0 0.0
        %1516 = vmatpush.msra.mxu0 0.0
        %1517 = vmatpush.msra.mxu0 0.0
        %1518 = vmatpush.msra.mxu0 0.0
        %1519 = vmatpush.msra.mxu0 0.0
        %1520 = vmatpush.msra.mxu0 0.0
        %1521 = vmatpush.msra.mxu0 0.0
        %1522 = vmatpush.msra.mxu0 0.0
        %1523 = vmatpush.msra.mxu0 0.0
        %v1524 = vand.u32 %v739, 4294901760
        %v1525 = vsub.f32 %v739, %v1524
        %v1526 = vand.u32 %v1525, 4294901760
        %1527 = vmatpush.msra.mxu0 %v1526
        %v1528 = vand.u32 %v736, 4294901760
        %v1529 = vsub.f32 %v736, %v1528
        %v1530 = vand.u32 %v1529, 4294901760
        %1531 = vmatpush.msra.mxu0 %v1530
        %v1532 = vand.u32 %v733, 4294901760
        %v1533 = vsub.f32 %v733, %v1532
        %v1534 = vand.u32 %v1533, 4294901760
        %1535 = vmatpush.msra.mxu0 %v1534
        %v1536 = vand.u32 %v730, 4294901760
        %v1537 = vsub.f32 %v730, %v1536
        %v1538 = vand.u32 %v1537, 4294901760
        %1539 = vmatpush.msra.mxu0 %v1538
        %v1540 = vand.u32 %v749, 4294901760
        %1541 = vmatmul.f32.gmra.mxu0 %v1540
        %v1542 = vpop.f32.mrf.mxu0
        %v1543 = vadd.f32 %v1492, %v1542
        %v1544 = vand.u32 %v752, 4294901760
        %1545 = vmatmul.f32.gmra.mxu0 %v1544
        %v1546 = vpop.f32.mrf.mxu0
        %v1547 = vadd.f32 %v1498, %v1546
        %v1548 = vand.u32 %v755, 4294901760
        %1549 = vmatmul.f32.gmra.mxu0 %v1548
        %v1550 = vpop.f32.mrf.mxu0
        %v1551 = vadd.f32 %v1504, %v1550
        %v1552 = vand.u32 %v758, 4294901760
        %1553 = vmatmul.f32.gmra.mxu0 %v1552
        %v1554 = vpop.f32.mrf.mxu0
        %v1555 = vadd.f32 %v1510, %v1554
        %1556 = vdwg.mxu0
        %1557 = vmatpush.msra.mxu0 0.0
        %1558 = vmatpush.msra.mxu0 0.0
        %1559 = vmatpush.msra.mxu0 0.0
        %1560 = vmatpush.msra.mxu0 0.0
        %1561 = vmatpush.msra.mxu0 0.0
        %1562 = vmatpush.msra.mxu0 0.0
        %1563 = vmatpush.msra.mxu0 0.0
        %1564 = vmatpush.msra.mxu0 0.0
        %1565 = vmatpush.msra.mxu0 0.0
        %1566 = vmatpush.msra.mxu0 0.0
        %1567 = vmatpush.msra.mxu0 0.0
        %1568 = vmatpush.msra.mxu0 0.0
        %v1569 = vand.u32 %v739, 4294901760
        %1570 = vmatpush.msra.mxu0 %v1569
        %v1571 = vand.u32 %v736, 4294901760
        %1572 = vmatpush.msra.mxu0 %v1571
        %v1573 = vand.u32 %v733, 4294901760
        %1574 = vmatpush.msra.mxu0 %v1573
        %v1575 = vand.u32 %v730, 4294901760
        %1576 = vmatpush.msra.mxu0 %v1575
        %v1577 = vand.u32 %v749, 4294901760
        %1578 = vmatmul.f32.gmra.mxu0 %v1577
        %v1579 = vpop.f32.mrf.mxu0
        %v1580 = vadd.f32 %v1543, %v1579
        %v1581 = vand.u32 %v752, 4294901760
        %1582 = vmatmul.f32.gmra.mxu0 %v1581
        %v1583 = vpop.f32.mrf.mxu0
        %v1584 = vadd.f32 %v1547, %v1583
        %v1585 = vand.u32 %v755, 4294901760
        %1586 = vmatmul.f32.gmra.mxu0 %v1585
        %v1587 = vpop.f32.mrf.mxu0
        %v1588 = vadd.f32 %v1551, %v1587
        %v1589 = vand.u32 %v758, 4294901760
        %1590 = vmatmul.f32.gmra.mxu0 %v1589
        %v1591 = vpop.f32.mrf.mxu0
        %v1592 = vadd.f32 %v1555, %v1591
        %1593 = vdwg.mxu0
        %1594 = vst [vmem:[#allocation2] sm:$0xff] %v1024
        %1595 = vst [vmem:[#allocation2 + $0x8] sm:$0xff] %v1302
        %1596 = vst [vmem:[#allocation2 + $0x10] sm:$0xff] %v1580
        %1597 = vst [vmem:[#allocation2 + $0x18] sm:$0xff] %v1028
        %1598 = vst [vmem:[#allocation2 + $0x20] sm:$0xff] %v1306
        %1599 = vst [vmem:[#allocation2 + $0x28] sm:$0xff] %v1584
        %1600 = vst [vmem:[#allocation2 + $0x30] sm:$0xff] %v1032
        %1601 = vst [vmem:[#allocation2 + $0x38] sm:$0xff] %v1310
        %1602 = vst [vmem:[#allocation2 + $0x40] sm:$0xff] %v1588
        %1603 = vst [vmem:[#allocation2 + $0x48] sm:$0xff] %v1036
        %1604 = vst [vmem:[#allocation2 + $0x50] sm:$0xff] %v1314
        %1605 = vst [vmem:[#allocation2 + $0x58] sm:$0xff] %v1592
        %p1606 = scmp.eq.s32.totalorder %s32, 0
        // Predicated region
        $region57: #{tpu_custom_call.1} parent=47 // pred_check
          %p1607 = pneg %p1606
        $region58: #{tpu_custom_call.1} parent=47 // pred_check_branch
          %1609 = sbr.rel (%p1607) target = $region60
        $region59: #{tpu_custom_call.1} parent=47 // pred_region
          %1610 = vst [vmem:[#allocation3] sm:$0xff] 0.0
        $region60: #{tpu_custom_call.1} parent=47 // pred_fallthru
          _
        %v1611 = vld [vmem:[%s371] sm:$0xff]
        %v1612 = vld [vmem:[%s371 + $0x8] sm:$0xff]
        %v1613 = vld [vmem:[%s371 + $0x10] sm:$0xff]
        %v1614 = vld [vmem:[%s371 + $0x18] sm:$0xff]
        %v1615 = vld [vmem:[%s371 + $0x20] sm:$0xff]
        %v1616 = vld [vmem:[%s371 + $0x28] sm:$0xff]
        %v1617 = vld [vmem:[%s371 + $0x30] sm:$0xff]
        %v1618 = vld [vmem:[%s371 + $0x38] sm:$0xff]
        %v1619 = vld [vmem:[%s371 + $0x40] sm:$0xff]
        %v1620 = vld [vmem:[%s371 + $0x48] sm:$0xff]
        %v1621 = vld [vmem:[%s371 + $0x50] sm:$0xff]
        %v1622 = vld [vmem:[%s371 + $0x58] sm:$0xff]
        %v1623 = vld [vmem:[%s371 + $0x60] sm:$0xff]
        %v1624 = vld [vmem:[%s371 + $0x68] sm:$0xff]
        %v1625 = vld [vmem:[%s371 + $0x70] sm:$0xff]
        %v1626 = vld [vmem:[%s371 + $0x78] sm:$0xff]
        %v1627 = vld [vmem:[%s371 + $0x80] sm:$0xff]
        %v1628 = vld [vmem:[%s371 + $0x88] sm:$0xff]
        %v1629 = vld [vmem:[%s371 + $0x90] sm:$0xff]
        %v1630 = vld [vmem:[%s371 + $0x98] sm:$0xff]
        %v1631 = vld [vmem:[%s371 + $0xa0] sm:$0xff]
        %v1632 = vld [vmem:[%s371 + $0xa8] sm:$0xff]
        %v1633 = vld [vmem:[%s371 + $0xb0] sm:$0xff]
        %v1634 = vld [vmem:[%s371 + $0xb8] sm:$0xff]
        %v1635 = vld [vmem:[%s371 + $0xc0] sm:$0xff]
        %v1636 = vld [vmem:[%s371 + $0xc8] sm:$0xff]
        %v1637 = vld [vmem:[%s371 + $0xd0] sm:$0xff]
        %v1638 = vld [vmem:[%s371 + $0xd8] sm:$0xff]
        %v1639 = vld [vmem:[%s371 + $0xe0] sm:$0xff]
        %v1640 = vld [vmem:[%s371 + $0xe8] sm:$0xff]
        %v1641 = vld [vmem:[%s371 + $0xf0] sm:$0xff]
        %v1642 = vld [vmem:[%s371 + $0xf8] sm:$0xff]
        %v1643 = vld [vmem:[%s371 + $0x100] sm:$0xff]
        %v1644 = vld [vmem:[%s371 + $0x108] sm:$0xff]
        %v1645 = vld [vmem:[%s371 + $0x110] sm:$0xff]
        %v1646 = vld [vmem:[%s371 + $0x118] sm:$0xff]
        %v1647 = vld [vmem:[%s371 + $0x120] sm:$0xff]
        %v1648 = vld [vmem:[%s371 + $0x128] sm:$0xff]
        %v1649 = vld [vmem:[%s371 + $0x130] sm:$0xff]
        %v1650 = vld [vmem:[%s371 + $0x138] sm:$0xff]
        %v1651 = vld [vmem:[%s371 + $0x140] sm:$0xff]
        %v1652 = vld [vmem:[%s371 + $0x148] sm:$0xff]
        %v1653 = vld [vmem:[%s371 + $0x150] sm:$0xff]
        %v1654 = vld [vmem:[%s371 + $0x158] sm:$0xff]
        %v1655 = vld [vmem:[%s371 + $0x160] sm:$0xff]
        %v1656 = vld [vmem:[%s371 + $0x168] sm:$0xff]
        %v1657 = vld [vmem:[%s371 + $0x170] sm:$0xff]
        %v1658 = vld [vmem:[%s371 + $0x178] sm:$0xff]
        %v1659 = vld [vmem:[%s446] sm:$0x7]
        %v1660 = vld [vmem:[#allocation3] sm:$0xff]
        %s1661 = smul.u32 %s31, 24
        %s1662 = sshra.s32 %s1661, 3
        %s1663 = sand.u32 %s1661, 7
        %s1664 = smul.u32 %s1662, 3
        %s1665 = smul.addr %s1664, 8
        %s1666 = scalar_lea.vmem [#allocation2], %s1665
        %v1667 = vld [vmem:[%s1666] sm:$0xff]
        %v1668 = vld [vmem:[%s1666 + $0x8] sm:$0xff]
        %v1669 = vld [vmem:[%s1666 + $0x10] sm:$0xff]
        %v1671 = vperm.slane %v1659, 0
        %v1672 = vperm.slane %v1659, 1
        %v1673 = vperm.slane %v1659, 2
        %v1677 = vand.u32 %v1656, 4294901760
        %1678 = vmatpush.msra.mxu0 %v1677
        %v1679 = vand.u32 %v1653, 4294901760
        %1680 = vmatpush.msra.mxu0 %v1679
        %v1681 = vand.u32 %v1650, 4294901760
        %1682 = vmatpush.msra.mxu0 %v1681
        %v1683 = vand.u32 %v1647, 4294901760
        %1684 = vmatpush.msra.mxu0 %v1683
        %v1685 = vand.u32 %v1644, 4294901760
        %1686 = vmatpush.msra.mxu0 %v1685
        %v1687 = vand.u32 %v1641, 4294901760
        %1688 = vmatpush.msra.mxu0 %v1687
        %v1689 = vand.u32 %v1638, 4294901760
        %1690 = vmatpush.msra.mxu0 %v1689
        %v1691 = vand.u32 %v1635, 4294901760
        %1692 = vmatpush.msra.mxu0 %v1691
        %v1693 = vand.u32 %v1632, 4294901760
        %1694 = vmatpush.msra.mxu0 %v1693
        %v1695 = vand.u32 %v1629, 4294901760
        %1696 = vmatpush.msra.mxu0 %v1695
        %v1697 = vand.u32 %v1626, 4294901760
        %1698 = vmatpush.msra.mxu0 %v1697
        %v1699 = vand.u32 %v1623, 4294901760
        %1700 = vmatpush.msra.mxu0 %v1699
        %v1701 = vand.u32 %v1620, 4294901760
        %1702 = vmatpush.msra.mxu0 %v1701
        %v1703 = vand.u32 %v1617, 4294901760
        %1704 = vmatpush.msra.mxu0 %v1703
        %v1705 = vand.u32 %v1614, 4294901760
        %1706 = vmatpush.msra.mxu0 %v1705
        %v1707 = vand.u32 %v1611, 4294901760
        %1708 = vmatpush.msra.mxu0 %v1707
        %v1709 = vand.u32 %v1660, 4294901760
        %v1710 = vsub.f32 %v1660, %v1709
        %v1711 = vand.u32 %v1710, 4294901760
        %v1712 = vsub.f32 %v1710, %v1711
        %v1713 = vand.u32 %v1712, 4294901760
        %1714 = vmatmul.f32.gmra.mxu0 %v1713
        %v1715 = vpop.f32.mrf.mxu0
        %v1716 = vadd.f32 %v1671, %v1715
        %1717 = vdwg.mxu0
        %v1718 = vand.u32 %v1656, 4294901760
        %v1719 = vsub.f32 %v1656, %v1718
        %v1720 = vand.u32 %v1719, 4294901760
        %v1721 = vsub.f32 %v1719, %v1720
        %v1722 = vand.u32 %v1721, 4294901760
        %1723 = vmatpush.msra.mxu0 %v1722
        %v1724 = vand.u32 %v1653, 4294901760
        %v1725 = vsub.f32 %v1653, %v1724
        %v1726 = vand.u32 %v1725, 4294901760
        %v1727 = vsub.f32 %v1725, %v1726
        %v1728 = vand.u32 %v1727, 4294901760
        %1729 = vmatpush.msra.mxu0 %v1728
        %v1730 = vand.u32 %v1650, 4294901760
        %v1731 = vsub.f32 %v1650, %v1730
        %v1732 = vand.u32 %v1731, 4294901760
        %v1733 = vsub.f32 %v1731, %v1732
        %v1734 = vand.u32 %v1733, 4294901760
        %1735 = vmatpush.msra.mxu0 %v1734
        %v1736 = vand.u32 %v1647, 4294901760
        %v1737 = vsub.f32 %v1647, %v1736
        %v1738 = vand.u32 %v1737, 4294901760
        %v1739 = vsub.f32 %v1737, %v1738
        %v1740 = vand.u32 %v1739, 4294901760
        %1741 = vmatpush.msra.mxu0 %v1740
        %v1742 = vand.u32 %v1644, 4294901760
        %v1743 = vsub.f32 %v1644, %v1742
        %v1744 = vand.u32 %v1743, 4294901760
        %v1745 = vsub.f32 %v1743, %v1744
        %v1746 = vand.u32 %v1745, 4294901760
        %1747 = vmatpush.msra.mxu0 %v1746
        %v1748 = vand.u32 %v1641, 4294901760
        %v1749 = vsub.f32 %v1641, %v1748
        %v1750 = vand.u32 %v1749, 4294901760
        %v1751 = vsub.f32 %v1749, %v1750
        %v1752 = vand.u32 %v1751, 4294901760
        %1753 = vmatpush.msra.mxu0 %v1752
        %v1754 = vand.u32 %v1638, 4294901760
        %v1755 = vsub.f32 %v1638, %v1754
        %v1756 = vand.u32 %v1755, 4294901760
        %v1757 = vsub.f32 %v1755, %v1756
        %v1758 = vand.u32 %v1757, 4294901760
        %1759 = vmatpush.msra.mxu0 %v1758
        %v1760 = vand.u32 %v1635, 4294901760
        %v1761 = vsub.f32 %v1635, %v1760
        %v1762 = vand.u32 %v1761, 4294901760
        %v1763 = vsub.f32 %v1761, %v1762
        %v1764 = vand.u32 %v1763, 4294901760
        %1765 = vmatpush.msra.mxu0 %v1764
        %v1766 = vand.u32 %v1632, 4294901760
        %v1767 = vsub.f32 %v1632, %v1766
        %v1768 = vand.u32 %v1767, 4294901760
        %v1769 = vsub.f32 %v1767, %v1768
        %v1770 = vand.u32 %v1769, 4294901760
        %1771 = vmatpush.msra.mxu0 %v1770
        %v1772 = vand.u32 %v1629, 4294901760
        %v1773 = vsub.f32 %v1629, %v1772
        %v1774 = vand.u32 %v1773, 4294901760
        %v1775 = vsub.f32 %v1773, %v1774
        %v1776 = vand.u32 %v1775, 4294901760
        %1777 = vmatpush.msra.mxu0 %v1776
        %v1778 = vand.u32 %v1626, 4294901760
        %v1779 = vsub.f32 %v1626, %v1778
        %v1780 = vand.u32 %v1779, 4294901760
        %v1781 = vsub.f32 %v1779, %v1780
        %v1782 = vand.u32 %v1781, 4294901760
        %1783 = vmatpush.msra.mxu0 %v1782
        %v1784 = vand.u32 %v1623, 4294901760
        %v1785 = vsub.f32 %v1623, %v1784
        %v1786 = vand.u32 %v1785, 4294901760
        %v1787 = vsub.f32 %v1785, %v1786
        %v1788 = vand.u32 %v1787, 4294901760
        %1789 = vmatpush.msra.mxu0 %v1788
        %v1790 = vand.u32 %v1620, 4294901760
        %v1791 = vsub.f32 %v1620, %v1790
        %v1792 = vand.u32 %v1791, 4294901760
        %v1793 = vsub.f32 %v1791, %v1792
        %v1794 = vand.u32 %v1793, 4294901760
        %1795 = vmatpush.msra.mxu0 %v1794
        %v1796 = vand.u32 %v1617, 4294901760
        %v1797 = vsub.f32 %v1617, %v1796
        %v1798 = vand.u32 %v1797, 4294901760
        %v1799 = vsub.f32 %v1797, %v1798
        %v1800 = vand.u32 %v1799, 4294901760
        %1801 = vmatpush.msra.mxu0 %v1800
        %v1802 = vand.u32 %v1614, 4294901760
        %v1803 = vsub.f32 %v1614, %v1802
        %v1804 = vand.u32 %v1803, 4294901760
        %v1805 = vsub.f32 %v1803, %v1804
        %v1806 = vand.u32 %v1805, 4294901760
        %1807 = vmatpush.msra.mxu0 %v1806
        %v1808 = vand.u32 %v1611, 4294901760
        %v1809 = vsub.f32 %v1611, %v1808
        %v1810 = vand.u32 %v1809, 4294901760
        %v1811 = vsub.f32 %v1809, %v1810
        %v1812 = vand.u32 %v1811, 4294901760
        %1813 = vmatpush.msra.mxu0 %v1812
        %v1814 = vand.u32 %v1660, 4294901760
        %1815 = vmatmul.f32.gmra.mxu0 %v1814
        %v1816 = vpop.f32.mrf.mxu0
        %v1817 = vadd.f32 %v1716, %v1816
        %1818 = vdwg.mxu0
        %v1819 = vand.u32 %v1656, 4294901760
        %v1820 = vsub.f32 %v1656, %v1819
        %1821 = vmatpush.msra.mxu0 %v1820
        %v1822 = vand.u32 %v1653, 4294901760
        %v1823 = vsub.f32 %v1653, %v1822
        %1824 = vmatpush.msra.mxu0 %v1823
        %v1825 = vand.u32 %v1650, 4294901760
        %v1826 = vsub.f32 %v1650, %v1825
        %1827 = vmatpush.msra.mxu0 %v1826
        %v1828 = vand.u32 %v1647, 4294901760
        %v1829 = vsub.f32 %v1647, %v1828
        %1830 = vmatpush.msra.mxu0 %v1829
        %v1831 = vand.u32 %v1644, 4294901760
        %v1832 = vsub.f32 %v1644, %v1831
        %1833 = vmatpush.msra.mxu0 %v1832
        %v1834 = vand.u32 %v1641, 4294901760
        %v1835 = vsub.f32 %v1641, %v1834
        %1836 = vmatpush.msra.mxu0 %v1835
        %v1837 = vand.u32 %v1638, 4294901760
        %v1838 = vsub.f32 %v1638, %v1837
        %1839 = vmatpush.msra.mxu0 %v1838
        %v1840 = vand.u32 %v1635, 4294901760
        %v1841 = vsub.f32 %v1635, %v1840
        %1842 = vmatpush.msra.mxu0 %v1841
        %v1843 = vand.u32 %v1632, 4294901760
        %v1844 = vsub.f32 %v1632, %v1843
        %1845 = vmatpush.msra.mxu0 %v1844
        %v1846 = vand.u32 %v1629, 4294901760
        %v1847 = vsub.f32 %v1629, %v1846
        %1848 = vmatpush.msra.mxu0 %v1847
        %v1849 = vand.u32 %v1626, 4294901760
        %v1850 = vsub.f32 %v1626, %v1849
        %1851 = vmatpush.msra.mxu0 %v1850
        %v1852 = vand.u32 %v1623, 4294901760
        %v1853 = vsub.f32 %v1623, %v1852
        %1854 = vmatpush.msra.mxu0 %v1853
        %v1855 = vand.u32 %v1620, 4294901760
        %v1856 = vsub.f32 %v1620, %v1855
        %1857 = vmatpush.msra.mxu0 %v1856
        %v1858 = vand.u32 %v1617, 4294901760
        %v1859 = vsub.f32 %v1617, %v1858
        %1860 = vmatpush.msra.mxu0 %v1859
        %v1861 = vand.u32 %v1614, 4294901760
        %v1862 = vsub.f32 %v1614, %v1861
        %1863 = vmatpush.msra.mxu0 %v1862
        %v1864 = vand.u32 %v1611, 4294901760
        %v1865 = vsub.f32 %v1611, %v1864
        %1866 = vmatpush.msra.mxu0 %v1865
        %v1867 = vand.u32 %v1660, 4294901760
        %v1868 = vsub.f32 %v1660, %v1867
        %1869 = vmatmul.f32.gmra.mxu0 %v1868
        %v1870 = vpop.f32.mrf.mxu0
        %v1871 = vadd.f32 %v1817, %v1870
        %1872 = vdwg.mxu0
        %v1873 = vand.u32 %v1656, 4294901760
        %1874 = vmatpush.msra.mxu0 %v1873
        %v1875 = vand.u32 %v1653, 4294901760
        %1876 = vmatpush.msra.mxu0 %v1875
        %v1877 = vand.u32 %v1650, 4294901760
        %1878 = vmatpush.msra.mxu0 %v1877
        %v1879 = vand.u32 %v1647, 4294901760
        %1880 = vmatpush.msra.mxu0 %v1879
        %v1881 = vand.u32 %v1644, 4294901760
        %1882 = vmatpush.msra.mxu0 %v1881
        %v1883 = vand.u32 %v1641, 4294901760
        %1884 = vmatpush.msra.mxu0 %v1883
        %v1885 = vand.u32 %v1638, 4294901760
        %1886 = vmatpush.msra.mxu0 %v1885
        %v1887 = vand.u32 %v1635, 4294901760
        %1888 = vmatpush.msra.mxu0 %v1887
        %v1889 = vand.u32 %v1632, 4294901760
        %1890 = vmatpush.msra.mxu0 %v1889
        %v1891 = vand.u32 %v1629, 4294901760
        %1892 = vmatpush.msra.mxu0 %v1891
        %v1893 = vand.u32 %v1626, 4294901760
        %1894 = vmatpush.msra.mxu0 %v1893
        %v1895 = vand.u32 %v1623, 4294901760
        %1896 = vmatpush.msra.mxu0 %v1895
        %v1897 = vand.u32 %v1620, 4294901760
        %1898 = vmatpush.msra.mxu0 %v1897
        %v1899 = vand.u32 %v1617, 4294901760
        %1900 = vmatpush.msra.mxu0 %v1899
        %v1901 = vand.u32 %v1614, 4294901760
        %1902 = vmatpush.msra.mxu0 %v1901
        %v1903 = vand.u32 %v1611, 4294901760
        %1904 = vmatpush.msra.mxu0 %v1903
        %v1905 = vand.u32 %v1660, 4294901760
        %v1906 = vsub.f32 %v1660, %v1905
        %v1907 = vand.u32 %v1906, 4294901760
        %1908 = vmatmul.f32.gmra.mxu0 %v1907
        %v1909 = vpop.f32.mrf.mxu0
        %v1910 = vadd.f32 %v1871, %v1909
        %1911 = vdwg.mxu0
        %v1912 = vand.u32 %v1656, 4294901760
        %v1913 = vsub.f32 %v1656, %v1912
        %v1914 = vand.u32 %v1913, 4294901760
        %1915 = vmatpush.msra.mxu0 %v1914
        %v1916 = vand.u32 %v1653, 4294901760
        %v1917 = vsub.f32 %v1653, %v1916
        %v1918 = vand.u32 %v1917, 4294901760
        %1919 = vmatpush.msra.mxu0 %v1918
        %v1920 = vand.u32 %v1650, 4294901760
        %v1921 = vsub.f32 %v1650, %v1920
        %v1922 = vand.u32 %v1921, 4294901760
        %1923 = vmatpush.msra.mxu0 %v1922
        %v1924 = vand.u32 %v1647, 4294901760
        %v1925 = vsub.f32 %v1647, %v1924
        %v1926 = vand.u32 %v1925, 4294901760
        %1927 = vmatpush.msra.mxu0 %v1926
        %v1928 = vand.u32 %v1644, 4294901760
        %v1929 = vsub.f32 %v1644, %v1928
        %v1930 = vand.u32 %v1929, 4294901760
        %1931 = vmatpush.msra.mxu0 %v1930
        %v1932 = vand.u32 %v1641, 4294901760
        %v1933 = vsub.f32 %v1641, %v1932
        %v1934 = vand.u32 %v1933, 4294901760
        %1935 = vmatpush.msra.mxu0 %v1934
        %v1936 = vand.u32 %v1638, 4294901760
        %v1937 = vsub.f32 %v1638, %v1936
        %v1938 = vand.u32 %v1937, 4294901760
        %1939 = vmatpush.msra.mxu0 %v1938
        %v1940 = vand.u32 %v1635, 4294901760
        %v1941 = vsub.f32 %v1635, %v1940
        %v1942 = vand.u32 %v1941, 4294901760
        %1943 = vmatpush.msra.mxu0 %v1942
        %v1944 = vand.u32 %v1632, 4294901760
        %v1945 = vsub.f32 %v1632, %v1944
        %v1946 = vand.u32 %v1945, 4294901760
        %1947 = vmatpush.msra.mxu0 %v1946
        %v1948 = vand.u32 %v1629, 4294901760
        %v1949 = vsub.f32 %v1629, %v1948
        %v1950 = vand.u32 %v1949, 4294901760
        %1951 = vmatpush.msra.mxu0 %v1950
        %v1952 = vand.u32 %v1626, 4294901760
        %v1953 = vsub.f32 %v1626, %v1952
        %v1954 = vand.u32 %v1953, 4294901760
        %1955 = vmatpush.msra.mxu0 %v1954
        %v1956 = vand.u32 %v1623, 4294901760
        %v1957 = vsub.f32 %v1623, %v1956
        %v1958 = vand.u32 %v1957, 4294901760
        %1959 = vmatpush.msra.mxu0 %v1958
        %v1960 = vand.u32 %v1620, 4294901760
        %v1961 = vsub.f32 %v1620, %v1960
        %v1962 = vand.u32 %v1961, 4294901760
        %1963 = vmatpush.msra.mxu0 %v1962
        %v1964 = vand.u32 %v1617, 4294901760
        %v1965 = vsub.f32 %v1617, %v1964
        %v1966 = vand.u32 %v1965, 4294901760
        %1967 = vmatpush.msra.mxu0 %v1966
        %v1968 = vand.u32 %v1614, 4294901760
        %v1969 = vsub.f32 %v1614, %v1968
        %v1970 = vand.u32 %v1969, 4294901760
        %1971 = vmatpush.msra.mxu0 %v1970
        %v1972 = vand.u32 %v1611, 4294901760
        %v1973 = vsub.f32 %v1611, %v1972
        %v1974 = vand.u32 %v1973, 4294901760
        %1975 = vmatpush.msra.mxu0 %v1974
        %v1976 = vand.u32 %v1660, 4294901760
        %1977 = vmatmul.f32.gmra.mxu0 %v1976
        %v1978 = vpop.f32.mrf.mxu0
        %v1979 = vadd.f32 %v1910, %v1978
        %1980 = vdwg.mxu0
        %v1981 = vand.u32 %v1656, 4294901760
        %1982 = vmatpush.msra.mxu0 %v1981
        %v1983 = vand.u32 %v1653, 4294901760
        %1984 = vmatpush.msra.mxu0 %v1983
        %v1985 = vand.u32 %v1650, 4294901760
        %1986 = vmatpush.msra.mxu0 %v1985
        %v1987 = vand.u32 %v1647, 4294901760
        %1988 = vmatpush.msra.mxu0 %v1987
        %v1989 = vand.u32 %v1644, 4294901760
        %1990 = vmatpush.msra.mxu0 %v1989
        %v1991 = vand.u32 %v1641, 4294901760
        %1992 = vmatpush.msra.mxu0 %v1991
        %v1993 = vand.u32 %v1638, 4294901760
        %1994 = vmatpush.msra.mxu0 %v1993
        %v1995 = vand.u32 %v1635, 4294901760
        %1996 = vmatpush.msra.mxu0 %v1995
        %v1997 = vand.u32 %v1632, 4294901760
        %1998 = vmatpush.msra.mxu0 %v1997
        %v1999 = vand.u32 %v1629, 4294901760
        %2000 = vmatpush.msra.mxu0 %v1999
        %v2001 = vand.u32 %v1626, 4294901760
        %2002 = vmatpush.msra.mxu0 %v2001
        %v2003 = vand.u32 %v1623, 4294901760
        %2004 = vmatpush.msra.mxu0 %v2003
        %v2005 = vand.u32 %v1620, 4294901760
        %2006 = vmatpush.msra.mxu0 %v2005
        %v2007 = vand.u32 %v1617, 4294901760
        %2008 = vmatpush.msra.mxu0 %v2007
        %v2009 = vand.u32 %v1614, 4294901760
        %2010 = vmatpush.msra.mxu0 %v2009
        %v2011 = vand.u32 %v1611, 4294901760
        %2012 = vmatpush.msra.mxu0 %v2011
        %v2013 = vand.u32 %v1660, 4294901760
        %2014 = vmatmul.f32.gmra.mxu0 %v2013
        %v2015 = vpop.f32.mrf.mxu0
        %v2016 = vadd.f32 %v1979, %v2015
        %2017 = vdwg.mxu0
        %v2018 = vand.u32 %v1657, 4294901760
        %2019 = vmatpush.msra.mxu0 %v2018
        %v2020 = vand.u32 %v1654, 4294901760
        %2021 = vmatpush.msra.mxu0 %v2020
        %v2022 = vand.u32 %v1651, 4294901760
        %2023 = vmatpush.msra.mxu0 %v2022
        %v2024 = vand.u32 %v1648, 4294901760
        %2025 = vmatpush.msra.mxu0 %v2024
        %v2026 = vand.u32 %v1645, 4294901760
        %2027 = vmatpush.msra.mxu0 %v2026
        %v2028 = vand.u32 %v1642, 4294901760
        %2029 = vmatpush.msra.mxu0 %v2028
        %v2030 = vand.u32 %v1639, 4294901760
        %2031 = vmatpush.msra.mxu0 %v2030
        %v2032 = vand.u32 %v1636, 4294901760
        %2033 = vmatpush.msra.mxu0 %v2032
        %v2034 = vand.u32 %v1633, 4294901760
        %2035 = vmatpush.msra.mxu0 %v2034
        %v2036 = vand.u32 %v1630, 4294901760
        %2037 = vmatpush.msra.mxu0 %v2036
        %v2038 = vand.u32 %v1627, 4294901760
        %2039 = vmatpush.msra.mxu0 %v2038
        %v2040 = vand.u32 %v1624, 4294901760
        %2041 = vmatpush.msra.mxu0 %v2040
        %v2042 = vand.u32 %v1621, 4294901760
        %2043 = vmatpush.msra.mxu0 %v2042
        %v2044 = vand.u32 %v1618, 4294901760
        %2045 = vmatpush.msra.mxu0 %v2044
        %v2046 = vand.u32 %v1615, 4294901760
        %2047 = vmatpush.msra.mxu0 %v2046
        %v2048 = vand.u32 %v1612, 4294901760
        %2049 = vmatpush.msra.mxu0 %v2048
        %v2050 = vand.u32 %v1660, 4294901760
        %v2051 = vsub.f32 %v1660, %v2050
        %v2052 = vand.u32 %v2051, 4294901760
        %v2053 = vsub.f32 %v2051, %v2052
        %v2054 = vand.u32 %v2053, 4294901760
        %2055 = vmatmul.f32.gmra.mxu0 %v2054
        %v2056 = vpop.f32.mrf.mxu0
        %v2057 = vadd.f32 %v1672, %v2056
        %2058 = vdwg.mxu0
        %v2059 = vand.u32 %v1657, 4294901760
        %v2060 = vsub.f32 %v1657, %v2059
        %v2061 = vand.u32 %v2060, 4294901760
        %v2062 = vsub.f32 %v2060, %v2061
        %v2063 = vand.u32 %v2062, 4294901760
        %2064 = vmatpush.msra.mxu0 %v2063
        %v2065 = vand.u32 %v1654, 4294901760
        %v2066 = vsub.f32 %v1654, %v2065
        %v2067 = vand.u32 %v2066, 4294901760
        %v2068 = vsub.f32 %v2066, %v2067
        %v2069 = vand.u32 %v2068, 4294901760
        %2070 = vmatpush.msra.mxu0 %v2069
        %v2071 = vand.u32 %v1651, 4294901760
        %v2072 = vsub.f32 %v1651, %v2071
        %v2073 = vand.u32 %v2072, 4294901760
        %v2074 = vsub.f32 %v2072, %v2073
        %v2075 = vand.u32 %v2074, 4294901760
        %2076 = vmatpush.msra.mxu0 %v2075
        %v2077 = vand.u32 %v1648, 4294901760
        %v2078 = vsub.f32 %v1648, %v2077
        %v2079 = vand.u32 %v2078, 4294901760
        %v2080 = vsub.f32 %v2078, %v2079
        %v2081 = vand.u32 %v2080, 4294901760
        %2082 = vmatpush.msra.mxu0 %v2081
        %v2083 = vand.u32 %v1645, 4294901760
        %v2084 = vsub.f32 %v1645, %v2083
        %v2085 = vand.u32 %v2084, 4294901760
        %v2086 = vsub.f32 %v2084, %v2085
        %v2087 = vand.u32 %v2086, 4294901760
        %2088 = vmatpush.msra.mxu0 %v2087
        %v2089 = vand.u32 %v1642, 4294901760
        %v2090 = vsub.f32 %v1642, %v2089
        %v2091 = vand.u32 %v2090, 4294901760
        %v2092 = vsub.f32 %v2090, %v2091
        %v2093 = vand.u32 %v2092, 4294901760
        %2094 = vmatpush.msra.mxu0 %v2093
        %v2095 = vand.u32 %v1639, 4294901760
        %v2096 = vsub.f32 %v1639, %v2095
        %v2097 = vand.u32 %v2096, 4294901760
        %v2098 = vsub.f32 %v2096, %v2097
        %v2099 = vand.u32 %v2098, 4294901760
        %2100 = vmatpush.msra.mxu0 %v2099
        %v2101 = vand.u32 %v1636, 4294901760
        %v2102 = vsub.f32 %v1636, %v2101
        %v2103 = vand.u32 %v2102, 4294901760
        %v2104 = vsub.f32 %v2102, %v2103
        %v2105 = vand.u32 %v2104, 4294901760
        %2106 = vmatpush.msra.mxu0 %v2105
        %v2107 = vand.u32 %v1633, 4294901760
        %v2108 = vsub.f32 %v1633, %v2107
        %v2109 = vand.u32 %v2108, 4294901760
        %v2110 = vsub.f32 %v2108, %v2109
        %v2111 = vand.u32 %v2110, 4294901760
        %2112 = vmatpush.msra.mxu0 %v2111
        %v2113 = vand.u32 %v1630, 4294901760
        %v2114 = vsub.f32 %v1630, %v2113
        %v2115 = vand.u32 %v2114, 4294901760
        %v2116 = vsub.f32 %v2114, %v2115
        %v2117 = vand.u32 %v2116, 4294901760
        %2118 = vmatpush.msra.mxu0 %v2117
        %v2119 = vand.u32 %v1627, 4294901760
        %v2120 = vsub.f32 %v1627, %v2119
        %v2121 = vand.u32 %v2120, 4294901760
        %v2122 = vsub.f32 %v2120, %v2121
        %v2123 = vand.u32 %v2122, 4294901760
        %2124 = vmatpush.msra.mxu0 %v2123
        %v2125 = vand.u32 %v1624, 4294901760
        %v2126 = vsub.f32 %v1624, %v2125
        %v2127 = vand.u32 %v2126, 4294901760
        %v2128 = vsub.f32 %v2126, %v2127
        %v2129 = vand.u32 %v2128, 4294901760
        %2130 = vmatpush.msra.mxu0 %v2129
        %v2131 = vand.u32 %v1621, 4294901760
        %v2132 = vsub.f32 %v1621, %v2131
        %v2133 = vand.u32 %v2132, 4294901760
        %v2134 = vsub.f32 %v2132, %v2133
        %v2135 = vand.u32 %v2134, 4294901760
        %2136 = vmatpush.msra.mxu0 %v2135
        %v2137 = vand.u32 %v1618, 4294901760
        %v2138 = vsub.f32 %v1618, %v2137
        %v2139 = vand.u32 %v2138, 4294901760
        %v2140 = vsub.f32 %v2138, %v2139
        %v2141 = vand.u32 %v2140, 4294901760
        %2142 = vmatpush.msra.mxu0 %v2141
        %v2143 = vand.u32 %v1615, 4294901760
        %v2144 = vsub.f32 %v1615, %v2143
        %v2145 = vand.u32 %v2144, 4294901760
        %v2146 = vsub.f32 %v2144, %v2145
        %v2147 = vand.u32 %v2146, 4294901760
        %2148 = vmatpush.msra.mxu0 %v2147
        %v2149 = vand.u32 %v1612, 4294901760
        %v2150 = vsub.f32 %v1612, %v2149
        %v2151 = vand.u32 %v2150, 4294901760
        %v2152 = vsub.f32 %v2150, %v2151
        %v2153 = vand.u32 %v2152, 4294901760
        %2154 = vmatpush.msra.mxu0 %v2153
        %v2155 = vand.u32 %v1660, 4294901760
        %2156 = vmatmul.f32.gmra.mxu0 %v2155
        %v2157 = vpop.f32.mrf.mxu0
        %v2158 = vadd.f32 %v2057, %v2157
        %2159 = vdwg.mxu0
        %v2160 = vand.u32 %v1657, 4294901760
        %v2161 = vsub.f32 %v1657, %v2160
        %2162 = vmatpush.msra.mxu0 %v2161
        %v2163 = vand.u32 %v1654, 4294901760
        %v2164 = vsub.f32 %v1654, %v2163
        %2165 = vmatpush.msra.mxu0 %v2164
        %v2166 = vand.u32 %v1651, 4294901760
        %v2167 = vsub.f32 %v1651, %v2166
        %2168 = vmatpush.msra.mxu0 %v2167
        %v2169 = vand.u32 %v1648, 4294901760
        %v2170 = vsub.f32 %v1648, %v2169
        %2171 = vmatpush.msra.mxu0 %v2170
        %v2172 = vand.u32 %v1645, 4294901760
        %v2173 = vsub.f32 %v1645, %v2172
        %2174 = vmatpush.msra.mxu0 %v2173
        %v2175 = vand.u32 %v1642, 4294901760
        %v2176 = vsub.f32 %v1642, %v2175
        %2177 = vmatpush.msra.mxu0 %v2176
        %v2178 = vand.u32 %v1639, 4294901760
        %v2179 = vsub.f32 %v1639, %v2178
        %2180 = vmatpush.msra.mxu0 %v2179
        %v2181 = vand.u32 %v1636, 4294901760
        %v2182 = vsub.f32 %v1636, %v2181
        %2183 = vmatpush.msra.mxu0 %v2182
        %v2184 = vand.u32 %v1633, 4294901760
        %v2185 = vsub.f32 %v1633, %v2184
        %2186 = vmatpush.msra.mxu0 %v2185
        %v2187 = vand.u32 %v1630, 4294901760
        %v2188 = vsub.f32 %v1630, %v2187
        %2189 = vmatpush.msra.mxu0 %v2188
        %v2190 = vand.u32 %v1627, 4294901760
        %v2191 = vsub.f32 %v1627, %v2190
        %2192 = vmatpush.msra.mxu0 %v2191
        %v2193 = vand.u32 %v1624, 4294901760
        %v2194 = vsub.f32 %v1624, %v2193
        %2195 = vmatpush.msra.mxu0 %v2194
        %v2196 = vand.u32 %v1621, 4294901760
        %v2197 = vsub.f32 %v1621, %v2196
        %2198 = vmatpush.msra.mxu0 %v2197
        %v2199 = vand.u32 %v1618, 4294901760
        %v2200 = vsub.f32 %v1618, %v2199
        %2201 = vmatpush.msra.mxu0 %v2200
        %v2202 = vand.u32 %v1615, 4294901760
        %v2203 = vsub.f32 %v1615, %v2202
        %2204 = vmatpush.msra.mxu0 %v2203
        %v2205 = vand.u32 %v1612, 4294901760
        %v2206 = vsub.f32 %v1612, %v2205
        %2207 = vmatpush.msra.mxu0 %v2206
        %v2208 = vand.u32 %v1660, 4294901760
        %v2209 = vsub.f32 %v1660, %v2208
        %2210 = vmatmul.f32.gmra.mxu0 %v2209
        %v2211 = vpop.f32.mrf.mxu0
        %v2212 = vadd.f32 %v2158, %v2211
        %2213 = vdwg.mxu0
        %v2214 = vand.u32 %v1657, 4294901760
        %2215 = vmatpush.msra.mxu0 %v2214
        %v2216 = vand.u32 %v1654, 4294901760
        %2217 = vmatpush.msra.mxu0 %v2216
        %v2218 = vand.u32 %v1651, 4294901760
        %2219 = vmatpush.msra.mxu0 %v2218
        %v2220 = vand.u32 %v1648, 4294901760
        %2221 = vmatpush.msra.mxu0 %v2220
        %v2222 = vand.u32 %v1645, 4294901760
        %2223 = vmatpush.msra.mxu0 %v2222
        %v2224 = vand.u32 %v1642, 4294901760
        %2225 = vmatpush.msra.mxu0 %v2224
        %v2226 = vand.u32 %v1639, 4294901760
        %2227 = vmatpush.msra.mxu0 %v2226
        %v2228 = vand.u32 %v1636, 4294901760
        %2229 = vmatpush.msra.mxu0 %v2228
        %v2230 = vand.u32 %v1633, 4294901760
        %2231 = vmatpush.msra.mxu0 %v2230
        %v2232 = vand.u32 %v1630, 4294901760
        %2233 = vmatpush.msra.mxu0 %v2232
        %v2234 = vand.u32 %v1627, 4294901760
        %2235 = vmatpush.msra.mxu0 %v2234
        %v2236 = vand.u32 %v1624, 4294901760
        %2237 = vmatpush.msra.mxu0 %v2236
        %v2238 = vand.u32 %v1621, 4294901760
        %2239 = vmatpush.msra.mxu0 %v2238
        %v2240 = vand.u32 %v1618, 4294901760
        %2241 = vmatpush.msra.mxu0 %v2240
        %v2242 = vand.u32 %v1615, 4294901760
        %2243 = vmatpush.msra.mxu0 %v2242
        %v2244 = vand.u32 %v1612, 4294901760
        %2245 = vmatpush.msra.mxu0 %v2244
        %v2246 = vand.u32 %v1660, 4294901760
        %v2247 = vsub.f32 %v1660, %v2246
        %v2248 = vand.u32 %v2247, 4294901760
        %2249 = vmatmul.f32.gmra.mxu0 %v2248
        %v2250 = vpop.f32.mrf.mxu0
        %v2251 = vadd.f32 %v2212, %v2250
        %2252 = vdwg.mxu0
        %v2253 = vand.u32 %v1657, 4294901760
        %v2254 = vsub.f32 %v1657, %v2253
        %v2255 = vand.u32 %v2254, 4294901760
        %2256 = vmatpush.msra.mxu0 %v2255
        %v2257 = vand.u32 %v1654, 4294901760
        %v2258 = vsub.f32 %v1654, %v2257
        %v2259 = vand.u32 %v2258, 4294901760
        %2260 = vmatpush.msra.mxu0 %v2259
        %v2261 = vand.u32 %v1651, 4294901760
        %v2262 = vsub.f32 %v1651, %v2261
        %v2263 = vand.u32 %v2262, 4294901760
        %2264 = vmatpush.msra.mxu0 %v2263
        %v2265 = vand.u32 %v1648, 4294901760
        %v2266 = vsub.f32 %v1648, %v2265
        %v2267 = vand.u32 %v2266, 4294901760
        %2268 = vmatpush.msra.mxu0 %v2267
        %v2269 = vand.u32 %v1645, 4294901760
        %v2270 = vsub.f32 %v1645, %v2269
        %v2271 = vand.u32 %v2270, 4294901760
        %2272 = vmatpush.msra.mxu0 %v2271
        %v2273 = vand.u32 %v1642, 4294901760
        %v2274 = vsub.f32 %v1642, %v2273
        %v2275 = vand.u32 %v2274, 4294901760
        %2276 = vmatpush.msra.mxu0 %v2275
        %v2277 = vand.u32 %v1639, 4294901760
        %v2278 = vsub.f32 %v1639, %v2277
        %v2279 = vand.u32 %v2278, 4294901760
        %2280 = vmatpush.msra.mxu0 %v2279
        %v2281 = vand.u32 %v1636, 4294901760
        %v2282 = vsub.f32 %v1636, %v2281
        %v2283 = vand.u32 %v2282, 4294901760
        %2284 = vmatpush.msra.mxu0 %v2283
        %v2285 = vand.u32 %v1633, 4294901760
        %v2286 = vsub.f32 %v1633, %v2285
        %v2287 = vand.u32 %v2286, 4294901760
        %2288 = vmatpush.msra.mxu0 %v2287
        %v2289 = vand.u32 %v1630, 4294901760
        %v2290 = vsub.f32 %v1630, %v2289
        %v2291 = vand.u32 %v2290, 4294901760
        %2292 = vmatpush.msra.mxu0 %v2291
        %v2293 = vand.u32 %v1627, 4294901760
        %v2294 = vsub.f32 %v1627, %v2293
        %v2295 = vand.u32 %v2294, 4294901760
        %2296 = vmatpush.msra.mxu0 %v2295
        %v2297 = vand.u32 %v1624, 4294901760
        %v2298 = vsub.f32 %v1624, %v2297
        %v2299 = vand.u32 %v2298, 4294901760
        %2300 = vmatpush.msra.mxu0 %v2299
        %v2301 = vand.u32 %v1621, 4294901760
        %v2302 = vsub.f32 %v1621, %v2301
        %v2303 = vand.u32 %v2302, 4294901760
        %2304 = vmatpush.msra.mxu0 %v2303
        %v2305 = vand.u32 %v1618, 4294901760
        %v2306 = vsub.f32 %v1618, %v2305
        %v2307 = vand.u32 %v2306, 4294901760
        %2308 = vmatpush.msra.mxu0 %v2307
        %v2309 = vand.u32 %v1615, 4294901760
        %v2310 = vsub.f32 %v1615, %v2309
        %v2311 = vand.u32 %v2310, 4294901760
        %2312 = vmatpush.msra.mxu0 %v2311
        %v2313 = vand.u32 %v1612, 4294901760
        %v2314 = vsub.f32 %v1612, %v2313
        %v2315 = vand.u32 %v2314, 4294901760
        %2316 = vmatpush.msra.mxu0 %v2315
        %v2317 = vand.u32 %v1660, 4294901760
        %2318 = vmatmul.f32.gmra.mxu0 %v2317
        %v2319 = vpop.f32.mrf.mxu0
        %v2320 = vadd.f32 %v2251, %v2319
        %2321 = vdwg.mxu0
        %v2322 = vand.u32 %v1657, 4294901760
        %2323 = vmatpush.msra.mxu0 %v2322
        %v2324 = vand.u32 %v1654, 4294901760
        %2325 = vmatpush.msra.mxu0 %v2324
        %v2326 = vand.u32 %v1651, 4294901760
        %2327 = vmatpush.msra.mxu0 %v2326
        %v2328 = vand.u32 %v1648, 4294901760
        %2329 = vmatpush.msra.mxu0 %v2328
        %v2330 = vand.u32 %v1645, 4294901760
        %2331 = vmatpush.msra.mxu0 %v2330
        %v2332 = vand.u32 %v1642, 4294901760
        %2333 = vmatpush.msra.mxu0 %v2332
        %v2334 = vand.u32 %v1639, 4294901760
        %2335 = vmatpush.msra.mxu0 %v2334
        %v2336 = vand.u32 %v1636, 4294901760
        %2337 = vmatpush.msra.mxu0 %v2336
        %v2338 = vand.u32 %v1633, 4294901760
        %2339 = vmatpush.msra.mxu0 %v2338
        %v2340 = vand.u32 %v1630, 4294901760
        %2341 = vmatpush.msra.mxu0 %v2340
        %v2342 = vand.u32 %v1627, 4294901760
        %2343 = vmatpush.msra.mxu0 %v2342
        %v2344 = vand.u32 %v1624, 4294901760
        %2345 = vmatpush.msra.mxu0 %v2344
        %v2346 = vand.u32 %v1621, 4294901760
        %2347 = vmatpush.msra.mxu0 %v2346
        %v2348 = vand.u32 %v1618, 4294901760
        %2349 = vmatpush.msra.mxu0 %v2348
        %v2350 = vand.u32 %v1615, 4294901760
        %2351 = vmatpush.msra.mxu0 %v2350
        %v2352 = vand.u32 %v1612, 4294901760
        %2353 = vmatpush.msra.mxu0 %v2352
        %v2354 = vand.u32 %v1660, 4294901760
        %2355 = vmatmul.f32.gmra.mxu0 %v2354
        %v2356 = vpop.f32.mrf.mxu0
        %v2357 = vadd.f32 %v2320, %v2356
        %2358 = vdwg.mxu0
        %v2359 = vand.u32 %v1658, 4294901760
        %2360 = vmatpush.msra.mxu0 %v2359
        %v2361 = vand.u32 %v1655, 4294901760
        %2362 = vmatpush.msra.mxu0 %v2361
        %v2363 = vand.u32 %v1652, 4294901760
        %2364 = vmatpush.msra.mxu0 %v2363
        %v2365 = vand.u32 %v1649, 4294901760
        %2366 = vmatpush.msra.mxu0 %v2365
        %v2367 = vand.u32 %v1646, 4294901760
        %2368 = vmatpush.msra.mxu0 %v2367
        %v2369 = vand.u32 %v1643, 4294901760
        %2370 = vmatpush.msra.mxu0 %v2369
        %v2371 = vand.u32 %v1640, 4294901760
        %2372 = vmatpush.msra.mxu0 %v2371
        %v2373 = vand.u32 %v1637, 4294901760
        %2374 = vmatpush.msra.mxu0 %v2373
        %v2375 = vand.u32 %v1634, 4294901760
        %2376 = vmatpush.msra.mxu0 %v2375
        %v2377 = vand.u32 %v1631, 4294901760
        %2378 = vmatpush.msra.mxu0 %v2377
        %v2379 = vand.u32 %v1628, 4294901760
        %2380 = vmatpush.msra.mxu0 %v2379
        %v2381 = vand.u32 %v1625, 4294901760
        %2382 = vmatpush.msra.mxu0 %v2381
        %v2383 = vand.u32 %v1622, 4294901760
        %2384 = vmatpush.msra.mxu0 %v2383
        %v2385 = vand.u32 %v1619, 4294901760
        %2386 = vmatpush.msra.mxu0 %v2385
        %v2387 = vand.u32 %v1616, 4294901760
        %2388 = vmatpush.msra.mxu0 %v2387
        %v2389 = vand.u32 %v1613, 4294901760
        %2390 = vmatpush.msra.mxu0 %v2389
        %v2391 = vand.u32 %v1660, 4294901760
        %v2392 = vsub.f32 %v1660, %v2391
        %v2393 = vand.u32 %v2392, 4294901760
        %v2394 = vsub.f32 %v2392, %v2393
        %v2395 = vand.u32 %v2394, 4294901760
        %2396 = vmatmul.f32.gmra.mxu0 %v2395
        %v2397 = vpop.f32.mrf.mxu0
        %v2398 = vadd.f32 %v1673, %v2397
        %2399 = vdwg.mxu0
        %v2400 = vand.u32 %v1658, 4294901760
        %v2401 = vsub.f32 %v1658, %v2400
        %v2402 = vand.u32 %v2401, 4294901760
        %v2403 = vsub.f32 %v2401, %v2402
        %v2404 = vand.u32 %v2403, 4294901760
        %2405 = vmatpush.msra.mxu0 %v2404
        %v2406 = vand.u32 %v1655, 4294901760
        %v2407 = vsub.f32 %v1655, %v2406
        %v2408 = vand.u32 %v2407, 4294901760
        %v2409 = vsub.f32 %v2407, %v2408
        %v2410 = vand.u32 %v2409, 4294901760
        %2411 = vmatpush.msra.mxu0 %v2410
        %v2412 = vand.u32 %v1652, 4294901760
        %v2413 = vsub.f32 %v1652, %v2412
        %v2414 = vand.u32 %v2413, 4294901760
        %v2415 = vsub.f32 %v2413, %v2414
        %v2416 = vand.u32 %v2415, 4294901760
        %2417 = vmatpush.msra.mxu0 %v2416
        %v2418 = vand.u32 %v1649, 4294901760
        %v2419 = vsub.f32 %v1649, %v2418
        %v2420 = vand.u32 %v2419, 4294901760
        %v2421 = vsub.f32 %v2419, %v2420
        %v2422 = vand.u32 %v2421, 4294901760
        %2423 = vmatpush.msra.mxu0 %v2422
        %v2424 = vand.u32 %v1646, 4294901760
        %v2425 = vsub.f32 %v1646, %v2424
        %v2426 = vand.u32 %v2425, 4294901760
        %v2427 = vsub.f32 %v2425, %v2426
        %v2428 = vand.u32 %v2427, 4294901760
        %2429 = vmatpush.msra.mxu0 %v2428
        %v2430 = vand.u32 %v1643, 4294901760
        %v2431 = vsub.f32 %v1643, %v2430
        %v2432 = vand.u32 %v2431, 4294901760
        %v2433 = vsub.f32 %v2431, %v2432
        %v2434 = vand.u32 %v2433, 4294901760
        %2435 = vmatpush.msra.mxu0 %v2434
        %v2436 = vand.u32 %v1640, 4294901760
        %v2437 = vsub.f32 %v1640, %v2436
        %v2438 = vand.u32 %v2437, 4294901760
        %v2439 = vsub.f32 %v2437, %v2438
        %v2440 = vand.u32 %v2439, 4294901760
        %2441 = vmatpush.msra.mxu0 %v2440
        %v2442 = vand.u32 %v1637, 4294901760
        %v2443 = vsub.f32 %v1637, %v2442
        %v2444 = vand.u32 %v2443, 4294901760
        %v2445 = vsub.f32 %v2443, %v2444
        %v2446 = vand.u32 %v2445, 4294901760
        %2447 = vmatpush.msra.mxu0 %v2446
        %v2448 = vand.u32 %v1634, 4294901760
        %v2449 = vsub.f32 %v1634, %v2448
        %v2450 = vand.u32 %v2449, 4294901760
        %v2451 = vsub.f32 %v2449, %v2450
        %v2452 = vand.u32 %v2451, 4294901760
        %2453 = vmatpush.msra.mxu0 %v2452
        %v2454 = vand.u32 %v1631, 4294901760
        %v2455 = vsub.f32 %v1631, %v2454
        %v2456 = vand.u32 %v2455, 4294901760
        %v2457 = vsub.f32 %v2455, %v2456
        %v2458 = vand.u32 %v2457, 4294901760
        %2459 = vmatpush.msra.mxu0 %v2458
        %v2460 = vand.u32 %v1628, 4294901760
        %v2461 = vsub.f32 %v1628, %v2460
        %v2462 = vand.u32 %v2461, 4294901760
        %v2463 = vsub.f32 %v2461, %v2462
        %v2464 = vand.u32 %v2463, 4294901760
        %2465 = vmatpush.msra.mxu0 %v2464
        %v2466 = vand.u32 %v1625, 4294901760
        %v2467 = vsub.f32 %v1625, %v2466
        %v2468 = vand.u32 %v2467, 4294901760
        %v2469 = vsub.f32 %v2467, %v2468
        %v2470 = vand.u32 %v2469, 4294901760
        %2471 = vmatpush.msra.mxu0 %v2470
        %v2472 = vand.u32 %v1622, 4294901760
        %v2473 = vsub.f32 %v1622, %v2472
        %v2474 = vand.u32 %v2473, 4294901760
        %v2475 = vsub.f32 %v2473, %v2474
        %v2476 = vand.u32 %v2475, 4294901760
        %2477 = vmatpush.msra.mxu0 %v2476
        %v2478 = vand.u32 %v1619, 4294901760
        %v2479 = vsub.f32 %v1619, %v2478
        %v2480 = vand.u32 %v2479, 4294901760
        %v2481 = vsub.f32 %v2479, %v2480
        %v2482 = vand.u32 %v2481, 4294901760
        %2483 = vmatpush.msra.mxu0 %v2482
        %v2484 = vand.u32 %v1616, 4294901760
        %v2485 = vsub.f32 %v1616, %v2484
        %v2486 = vand.u32 %v2485, 4294901760
        %v2487 = vsub.f32 %v2485, %v2486
        %v2488 = vand.u32 %v2487, 4294901760
        %2489 = vmatpush.msra.mxu0 %v2488
        %v2490 = vand.u32 %v1613, 4294901760
        %v2491 = vsub.f32 %v1613, %v2490
        %v2492 = vand.u32 %v2491, 4294901760
        %v2493 = vsub.f32 %v2491, %v2492
        %v2494 = vand.u32 %v2493, 4294901760
        %2495 = vmatpush.msra.mxu0 %v2494
        %v2496 = vand.u32 %v1660, 4294901760
        %2497 = vmatmul.f32.gmra.mxu0 %v2496
        %v2498 = vpop.f32.mrf.mxu0
        %v2499 = vadd.f32 %v2398, %v2498
        %2500 = vdwg.mxu0
        %v2501 = vand.u32 %v1658, 4294901760
        %v2502 = vsub.f32 %v1658, %v2501
        %2503 = vmatpush.msra.mxu0 %v2502
        %v2504 = vand.u32 %v1655, 4294901760
        %v2505 = vsub.f32 %v1655, %v2504
        %2506 = vmatpush.msra.mxu0 %v2505
        %v2507 = vand.u32 %v1652, 4294901760
        %v2508 = vsub.f32 %v1652, %v2507
        %2509 = vmatpush.msra.mxu0 %v2508
        %v2510 = vand.u32 %v1649, 4294901760
        %v2511 = vsub.f32 %v1649, %v2510
        %2512 = vmatpush.msra.mxu0 %v2511
        %v2513 = vand.u32 %v1646, 4294901760
        %v2514 = vsub.f32 %v1646, %v2513
        %2515 = vmatpush.msra.mxu0 %v2514
        %v2516 = vand.u32 %v1643, 4294901760
        %v2517 = vsub.f32 %v1643, %v2516
        %2518 = vmatpush.msra.mxu0 %v2517
        %v2519 = vand.u32 %v1640, 4294901760
        %v2520 = vsub.f32 %v1640, %v2519
        %2521 = vmatpush.msra.mxu0 %v2520
        %v2522 = vand.u32 %v1637, 4294901760
        %v2523 = vsub.f32 %v1637, %v2522
        %2524 = vmatpush.msra.mxu0 %v2523
        %v2525 = vand.u32 %v1634, 4294901760
        %v2526 = vsub.f32 %v1634, %v2525
        %2527 = vmatpush.msra.mxu0 %v2526
        %v2528 = vand.u32 %v1631, 4294901760
        %v2529 = vsub.f32 %v1631, %v2528
        %2530 = vmatpush.msra.mxu0 %v2529
        %v2531 = vand.u32 %v1628, 4294901760
        %v2532 = vsub.f32 %v1628, %v2531
        %2533 = vmatpush.msra.mxu0 %v2532
        %v2534 = vand.u32 %v1625, 4294901760
        %v2535 = vsub.f32 %v1625, %v2534
        %2536 = vmatpush.msra.mxu0 %v2535
        %v2537 = vand.u32 %v1622, 4294901760
        %v2538 = vsub.f32 %v1622, %v2537
        %2539 = vmatpush.msra.mxu0 %v2538
        %v2540 = vand.u32 %v1619, 4294901760
        %v2541 = vsub.f32 %v1619, %v2540
        %2542 = vmatpush.msra.mxu0 %v2541
        %v2543 = vand.u32 %v1616, 4294901760
        %v2544 = vsub.f32 %v1616, %v2543
        %2545 = vmatpush.msra.mxu0 %v2544
        %v2546 = vand.u32 %v1613, 4294901760
        %v2547 = vsub.f32 %v1613, %v2546
        %2548 = vmatpush.msra.mxu0 %v2547
        %v2549 = vand.u32 %v1660, 4294901760
        %v2550 = vsub.f32 %v1660, %v2549
        %2551 = vmatmul.f32.gmra.mxu0 %v2550
        %v2552 = vpop.f32.mrf.mxu0
        %v2553 = vadd.f32 %v2499, %v2552
        %2554 = vdwg.mxu0
        %v2555 = vand.u32 %v1658, 4294901760
        %2556 = vmatpush.msra.mxu0 %v2555
        %v2557 = vand.u32 %v1655, 4294901760
        %2558 = vmatpush.msra.mxu0 %v2557
        %v2559 = vand.u32 %v1652, 4294901760
        %2560 = vmatpush.msra.mxu0 %v2559
        %v2561 = vand.u32 %v1649, 4294901760
        %2562 = vmatpush.msra.mxu0 %v2561
        %v2563 = vand.u32 %v1646, 4294901760
        %2564 = vmatpush.msra.mxu0 %v2563
        %v2565 = vand.u32 %v1643, 4294901760
        %2566 = vmatpush.msra.mxu0 %v2565
        %v2567 = vand.u32 %v1640, 4294901760
        %2568 = vmatpush.msra.mxu0 %v2567
        %v2569 = vand.u32 %v1637, 4294901760
        %2570 = vmatpush.msra.mxu0 %v2569
        %v2571 = vand.u32 %v1634, 4294901760
        %2572 = vmatpush.msra.mxu0 %v2571
        %v2573 = vand.u32 %v1631, 4294901760
        %2574 = vmatpush.msra.mxu0 %v2573
        %v2575 = vand.u32 %v1628, 4294901760
        %2576 = vmatpush.msra.mxu0 %v2575
        %v2577 = vand.u32 %v1625, 4294901760
        %2578 = vmatpush.msra.mxu0 %v2577
        %v2579 = vand.u32 %v1622, 4294901760
        %2580 = vmatpush.msra.mxu0 %v2579
        %v2581 = vand.u32 %v1619, 4294901760
        %2582 = vmatpush.msra.mxu0 %v2581
        %v2583 = vand.u32 %v1616, 4294901760
        %2584 = vmatpush.msra.mxu0 %v2583
        %v2585 = vand.u32 %v1613, 4294901760
        %2586 = vmatpush.msra.mxu0 %v2585
        %v2587 = vand.u32 %v1660, 4294901760
        %v2588 = vsub.f32 %v1660, %v2587
        %v2589 = vand.u32 %v2588, 4294901760
        %2590 = vmatmul.f32.gmra.mxu0 %v2589
        %v2591 = vpop.f32.mrf.mxu0
        %v2592 = vadd.f32 %v2553, %v2591
        %2593 = vdwg.mxu0
        %v2594 = vand.u32 %v1658, 4294901760
        %v2595 = vsub.f32 %v1658, %v2594
        %v2596 = vand.u32 %v2595, 4294901760
        %2597 = vmatpush.msra.mxu0 %v2596
        %v2598 = vand.u32 %v1655, 4294901760
        %v2599 = vsub.f32 %v1655, %v2598
        %v2600 = vand.u32 %v2599, 4294901760
        %2601 = vmatpush.msra.mxu0 %v2600
        %v2602 = vand.u32 %v1652, 4294901760
        %v2603 = vsub.f32 %v1652, %v2602
        %v2604 = vand.u32 %v2603, 4294901760
        %2605 = vmatpush.msra.mxu0 %v2604
        %v2606 = vand.u32 %v1649, 4294901760
        %v2607 = vsub.f32 %v1649, %v2606
        %v2608 = vand.u32 %v2607, 4294901760
        %2609 = vmatpush.msra.mxu0 %v2608
        %v2610 = vand.u32 %v1646, 4294901760
        %v2611 = vsub.f32 %v1646, %v2610
        %v2612 = vand.u32 %v2611, 4294901760
        %2613 = vmatpush.msra.mxu0 %v2612
        %v2614 = vand.u32 %v1643, 4294901760
        %v2615 = vsub.f32 %v1643, %v2614
        %v2616 = vand.u32 %v2615, 4294901760
        %2617 = vmatpush.msra.mxu0 %v2616
        %v2618 = vand.u32 %v1640, 4294901760
        %v2619 = vsub.f32 %v1640, %v2618
        %v2620 = vand.u32 %v2619, 4294901760
        %2621 = vmatpush.msra.mxu0 %v2620
        %v2622 = vand.u32 %v1637, 4294901760
        %v2623 = vsub.f32 %v1637, %v2622
        %v2624 = vand.u32 %v2623, 4294901760
        %2625 = vmatpush.msra.mxu0 %v2624
        %v2626 = vand.u32 %v1634, 4294901760
        %v2627 = vsub.f32 %v1634, %v2626
        %v2628 = vand.u32 %v2627, 4294901760
        %2629 = vmatpush.msra.mxu0 %v2628
        %v2630 = vand.u32 %v1631, 4294901760
        %v2631 = vsub.f32 %v1631, %v2630
        %v2632 = vand.u32 %v2631, 4294901760
        %2633 = vmatpush.msra.mxu0 %v2632
        %v2634 = vand.u32 %v1628, 4294901760
        %v2635 = vsub.f32 %v1628, %v2634
        %v2636 = vand.u32 %v2635, 4294901760
        %2637 = vmatpush.msra.mxu0 %v2636
        %v2638 = vand.u32 %v1625, 4294901760
        %v2639 = vsub.f32 %v1625, %v2638
        %v2640 = vand.u32 %v2639, 4294901760
        %2641 = vmatpush.msra.mxu0 %v2640
        %v2642 = vand.u32 %v1622, 4294901760
        %v2643 = vsub.f32 %v1622, %v2642
        %v2644 = vand.u32 %v2643, 4294901760
        %2645 = vmatpush.msra.mxu0 %v2644
        %v2646 = vand.u32 %v1619, 4294901760
        %v2647 = vsub.f32 %v1619, %v2646
        %v2648 = vand.u32 %v2647, 4294901760
        %2649 = vmatpush.msra.mxu0 %v2648
        %v2650 = vand.u32 %v1616, 4294901760
        %v2651 = vsub.f32 %v1616, %v2650
        %v2652 = vand.u32 %v2651, 4294901760
        %2653 = vmatpush.msra.mxu0 %v2652
        %v2654 = vand.u32 %v1613, 4294901760
        %v2655 = vsub.f32 %v1613, %v2654
        %v2656 = vand.u32 %v2655, 4294901760
        %2657 = vmatpush.msra.mxu0 %v2656
        %v2658 = vand.u32 %v1660, 4294901760
        %2659 = vmatmul.f32.gmra.mxu0 %v2658
        %v2660 = vpop.f32.mrf.mxu0
        %v2661 = vadd.f32 %v2592, %v2660
        %2662 = vdwg.mxu0
        %v2663 = vand.u32 %v1658, 4294901760
        %2664 = vmatpush.msra.mxu0 %v2663
        %v2665 = vand.u32 %v1655, 4294901760
        %2666 = vmatpush.msra.mxu0 %v2665
        %v2667 = vand.u32 %v1652, 4294901760
        %2668 = vmatpush.msra.mxu0 %v2667
        %v2669 = vand.u32 %v1649, 4294901760
        %2670 = vmatpush.msra.mxu0 %v2669
        %v2671 = vand.u32 %v1646, 4294901760
        %2672 = vmatpush.msra.mxu0 %v2671
        %v2673 = vand.u32 %v1643, 4294901760
        %2674 = vmatpush.msra.mxu0 %v2673
        %v2675 = vand.u32 %v1640, 4294901760
        %2676 = vmatpush.msra.mxu0 %v2675
        %v2677 = vand.u32 %v1637, 4294901760
        %2678 = vmatpush.msra.mxu0 %v2677
        %v2679 = vand.u32 %v1634, 4294901760
        %2680 = vmatpush.msra.mxu0 %v2679
        %v2681 = vand.u32 %v1631, 4294901760
        %2682 = vmatpush.msra.mxu0 %v2681
        %v2683 = vand.u32 %v1628, 4294901760
        %2684 = vmatpush.msra.mxu0 %v2683
        %v2685 = vand.u32 %v1625, 4294901760
        %2686 = vmatpush.msra.mxu0 %v2685
        %v2687 = vand.u32 %v1622, 4294901760
        %2688 = vmatpush.msra.mxu0 %v2687
        %v2689 = vand.u32 %v1619, 4294901760
        %2690 = vmatpush.msra.mxu0 %v2689
        %v2691 = vand.u32 %v1616, 4294901760
        %2692 = vmatpush.msra.mxu0 %v2691
        %v2693 = vand.u32 %v1613, 4294901760
        %2694 = vmatpush.msra.mxu0 %v2693
        %v2695 = vand.u32 %v1660, 4294901760
        %2696 = vmatmul.f32.gmra.mxu0 %v2695
        %v2697 = vpop.f32.mrf.mxu0
        %v2698 = vadd.f32 %v2661, %v2697
        %2699 = vdwg.mxu0
        %v2700 = vadd.f32 %v1667, %v2016
        %v2701 = vxor.u32 %v2700, 2147483648
        %v2702 = vmul.f32 %v2701, 1.442695
        %v2703 = vpow.pop %v2702
        %v2704 = vadd.f32 %v2703, 1.0
        %v2705 = vrcp.pop %v2704
        %v2706 = vmul.f32 %v2704, %v2705
        %v2707 = vsub.f32 1.0, %v2706
        %v2708 = vmul.f32 %v2705, %v2707
        %v2709 = vadd.f32 %v2705, %v2708
        %vm2710 = vweird.f32 %v2704
        %vm2711 = vweird.f32 %v2705
        %vm2712 = vmor %vm2710, %vm2711
        %v2713 = vsel %vm2712, %v2705, %v2709
        %v2714 = vand.u32 2147483647, %v2704
        %vm2715 = vcmp.eq.f32.partialorder %v2714, 8.507059e+37
        %v2716 = vand.u32 %v2704, 2147483648
        %v2717 = vor.u32 1.1754944e-38, %v2716
        %v2718 = vsel %vm2715, %v2717, %v2713
        %v2719 = vmul.f32 1.0, %v2718
        %v2720 = vadd.f32 %v1668, %v2357
        %v2721 = vxor.u32 %v2720, 2147483648
        %v2722 = vmul.f32 %v2721, 1.442695
        %v2723 = vpow.pop %v2722
        %v2724 = vadd.f32 %v2723, 1.0
        %v2725 = vrcp.pop %v2724
        %v2726 = vmul.f32 %v2724, %v2725
        %v2727 = vsub.f32 1.0, %v2726
        %v2728 = vmul.f32 %v2725, %v2727
        %v2729 = vadd.f32 %v2725, %v2728
        %vm2730 = vweird.f32 %v2724
        %vm2731 = vweird.f32 %v2725
        %vm2732 = vmor %vm2730, %vm2731
        %v2733 = vsel %vm2732, %v2725, %v2729
        %v2734 = vand.u32 2147483647, %v2724
        %vm2735 = vcmp.eq.f32.partialorder %v2734, 8.507059e+37
        %v2736 = vand.u32 %v2724, 2147483648
        %v2737 = vor.u32 1.1754944e-38, %v2736
        %v2738 = vsel %vm2735, %v2737, %v2733
        %v2739 = vmul.f32 1.0, %v2738
        %v2740 = vmul.f32 %v2719, %v2698
        %v2741 = vadd.f32 %v1669, %v2740
        %v2742 = vtanh.pop %v2741
        %v2743 = vsub.f32 1.0, %v2739
        %v2744 = vmul.f32 %v2743, %v2742
        %v2745 = vmul.f32 %v2739, %v1660
        %v2746 = vadd.f32 %v2744, %v2745
        %s2747 = scalar_lea.vmem %s424, %s1661 [#allocation9]
        %2748 = vst [vmem:[%s2747] sm:$0xff] %v2746
        %s2749 = sadd.s32 %s31, 1
        %s2750 = smul.u32 %s2749, 8
        %s2751 = sshra.s32 %s2750, 3
        %s2752 = sand.u32 %s2750, 7
        %s2753 = smul.u32 %s2751, 3
        %s2754 = smul.addr %s2753, 8
        %s2755 = scalar_lea.vmem [#allocation2], %s2754
        %v2756 = vld [vmem:[%s2755] sm:$0xff]
        %v2757 = vld [vmem:[%s2755 + $0x8] sm:$0xff]
        %v2758 = vld [vmem:[%s2755 + $0x10] sm:$0xff]
        %v2759 = vand.u32 %v1656, 4294901760
        %2760 = vmatpush.msra.mxu0 %v2759
        %v2761 = vand.u32 %v1653, 4294901760
        %2762 = vmatpush.msra.mxu0 %v2761
        %v2763 = vand.u32 %v1650, 4294901760
        %2764 = vmatpush.msra.mxu0 %v2763
        %v2765 = vand.u32 %v1647, 4294901760
        %2766 = vmatpush.msra.mxu0 %v2765
        %v2767 = vand.u32 %v1644, 4294901760
        %2768 = vmatpush.msra.mxu0 %v2767
        %v2769 = vand.u32 %v1641, 4294901760
        %2770 = vmatpush.msra.mxu0 %v2769
        %v2771 = vand.u32 %v1638, 4294901760
        %2772 = vmatpush.msra.mxu0 %v2771
        %v2773 = vand.u32 %v1635, 4294901760
        %2774 = vmatpush.msra.mxu0 %v2773
        %v2775 = vand.u32 %v1632, 4294901760
        %2776 = vmatpush.msra.mxu0 %v2775
        %v2777 = vand.u32 %v1629, 4294901760
        %2778 = vmatpush.msra.mxu0 %v2777
        %v2779 = vand.u32 %v1626, 4294901760
        %2780 = vmatpush.msra.mxu0 %v2779
        %v2781 = vand.u32 %v1623, 4294901760
        %2782 = vmatpush.msra.mxu0 %v2781
        %v2783 = vand.u32 %v1620, 4294901760
        %2784 = vmatpush.msra.mxu0 %v2783
        %v2785 = vand.u32 %v1617, 4294901760
        %2786 = vmatpush.msra.mxu0 %v2785
        %v2787 = vand.u32 %v1614, 4294901760
        %2788 = vmatpush.msra.mxu0 %v2787
        %v2789 = vand.u32 %v1611, 4294901760
        %2790 = vmatpush.msra.mxu0 %v2789
        %v2791 = vand.u32 %v2746, 4294901760
        %v2792 = vsub.f32 %v2746, %v2791
        %v2793 = vand.u32 %v2792, 4294901760
        %v2794 = vsub.f32 %v2792, %v2793
        %v2795 = vand.u32 %v2794, 4294901760
        %2796 = vmatmul.f32.gmra.mxu0 %v2795
        %v2797 = vpop.f32.mrf.mxu0
        %v2798 = vadd.f32 %v1671, %v2797
        %2799 = vdwg.mxu0
        %v2800 = vand.u32 %v1656, 4294901760
        %v2801 = vsub.f32 %v1656, %v2800
        %v2802 = vand.u32 %v2801, 4294901760
        %v2803 = vsub.f32 %v2801, %v2802
        %v2804 = vand.u32 %v2803, 4294901760
        %2805 = vmatpush.msra.mxu0 %v2804
        %v2806 = vand.u32 %v1653, 4294901760
        %v2807 = vsub.f32 %v1653, %v2806
        %v2808 = vand.u32 %v2807, 4294901760
        %v2809 = vsub.f32 %v2807, %v2808
        %v2810 = vand.u32 %v2809, 4294901760
        %2811 = vmatpush.msra.mxu0 %v2810
        %v2812 = vand.u32 %v1650, 4294901760
        %v2813 = vsub.f32 %v1650, %v2812
        %v2814 = vand.u32 %v2813, 4294901760
        %v2815 = vsub.f32 %v2813, %v2814
        %v2816 = vand.u32 %v2815, 4294901760
        %2817 = vmatpush.msra.mxu0 %v2816
        %v2818 = vand.u32 %v1647, 4294901760
        %v2819 = vsub.f32 %v1647, %v2818
        %v2820 = vand.u32 %v2819, 4294901760
        %v2821 = vsub.f32 %v2819, %v2820
        %v2822 = vand.u32 %v2821, 4294901760
        %2823 = vmatpush.msra.mxu0 %v2822
        %v2824 = vand.u32 %v1644, 4294901760
        %v2825 = vsub.f32 %v1644, %v2824
        %v2826 = vand.u32 %v2825, 4294901760
        %v2827 = vsub.f32 %v2825, %v2826
        %v2828 = vand.u32 %v2827, 4294901760
        %2829 = vmatpush.msra.mxu0 %v2828
        %v2830 = vand.u32 %v1641, 4294901760
        %v2831 = vsub.f32 %v1641, %v2830
        %v2832 = vand.u32 %v2831, 4294901760
        %v2833 = vsub.f32 %v2831, %v2832
        %v2834 = vand.u32 %v2833, 4294901760
        %2835 = vmatpush.msra.mxu0 %v2834
        %v2836 = vand.u32 %v1638, 4294901760
        %v2837 = vsub.f32 %v1638, %v2836
        %v2838 = vand.u32 %v2837, 4294901760
        %v2839 = vsub.f32 %v2837, %v2838
        %v2840 = vand.u32 %v2839, 4294901760
        %2841 = vmatpush.msra.mxu0 %v2840
        %v2842 = vand.u32 %v1635, 4294901760
        %v2843 = vsub.f32 %v1635, %v2842
        %v2844 = vand.u32 %v2843, 4294901760
        %v2845 = vsub.f32 %v2843, %v2844
        %v2846 = vand.u32 %v2845, 4294901760
        %2847 = vmatpush.msra.mxu0 %v2846
        %v2848 = vand.u32 %v1632, 4294901760
        %v2849 = vsub.f32 %v1632, %v2848
        %v2850 = vand.u32 %v2849, 4294901760
        %v2851 = vsub.f32 %v2849, %v2850
        %v2852 = vand.u32 %v2851, 4294901760
        %2853 = vmatpush.msra.mxu0 %v2852
        %v2854 = vand.u32 %v1629, 4294901760
        %v2855 = vsub.f32 %v1629, %v2854
        %v2856 = vand.u32 %v2855, 4294901760
        %v2857 = vsub.f32 %v2855, %v2856
        %v2858 = vand.u32 %v2857, 4294901760
        %2859 = vmatpush.msra.mxu0 %v2858
        %v2860 = vand.u32 %v1626, 4294901760
        %v2861 = vsub.f32 %v1626, %v2860
        %v2862 = vand.u32 %v2861, 4294901760
        %v2863 = vsub.f32 %v2861, %v2862
        %v2864 = vand.u32 %v2863, 4294901760
        %2865 = vmatpush.msra.mxu0 %v2864
        %v2866 = vand.u32 %v1623, 4294901760
        %v2867 = vsub.f32 %v1623, %v2866
        %v2868 = vand.u32 %v2867, 4294901760
        %v2869 = vsub.f32 %v2867, %v2868
        %v2870 = vand.u32 %v2869, 4294901760
        %2871 = vmatpush.msra.mxu0 %v2870
        %v2872 = vand.u32 %v1620, 4294901760
        %v2873 = vsub.f32 %v1620, %v2872
        %v2874 = vand.u32 %v2873, 4294901760
        %v2875 = vsub.f32 %v2873, %v2874
        %v2876 = vand.u32 %v2875, 4294901760
        %2877 = vmatpush.msra.mxu0 %v2876
        %v2878 = vand.u32 %v1617, 4294901760
        %v2879 = vsub.f32 %v1617, %v2878
        %v2880 = vand.u32 %v2879, 4294901760
        %v2881 = vsub.f32 %v2879, %v2880
        %v2882 = vand.u32 %v2881, 4294901760
        %2883 = vmatpush.msra.mxu0 %v2882
        %v2884 = vand.u32 %v1614, 4294901760
        %v2885 = vsub.f32 %v1614, %v2884
        %v2886 = vand.u32 %v2885, 4294901760
        %v2887 = vsub.f32 %v2885, %v2886
        %v2888 = vand.u32 %v2887, 4294901760
        %2889 = vmatpush.msra.mxu0 %v2888
        %v2890 = vand.u32 %v1611, 4294901760
        %v2891 = vsub.f32 %v1611, %v2890
        %v2892 = vand.u32 %v2891, 4294901760
        %v2893 = vsub.f32 %v2891, %v2892
        %v2894 = vand.u32 %v2893, 4294901760
        %2895 = vmatpush.msra.mxu0 %v2894
        %v2896 = vand.u32 %v2746, 4294901760
        %2897 = vmatmul.f32.gmra.mxu0 %v2896
        %v2898 = vpop.f32.mrf.mxu0
        %v2899 = vadd.f32 %v2798, %v2898
        %2900 = vdwg.mxu0
        %v2901 = vand.u32 %v1656, 4294901760
        %v2902 = vsub.f32 %v1656, %v2901
        %2903 = vmatpush.msra.mxu0 %v2902
        %v2904 = vand.u32 %v1653, 4294901760
        %v2905 = vsub.f32 %v1653, %v2904
        %2906 = vmatpush.msra.mxu0 %v2905
        %v2907 = vand.u32 %v1650, 4294901760
        %v2908 = vsub.f32 %v1650, %v2907
        %2909 = vmatpush.msra.mxu0 %v2908
        %v2910 = vand.u32 %v1647, 4294901760
        %v2911 = vsub.f32 %v1647, %v2910
        %2912 = vmatpush.msra.mxu0 %v2911
        %v2913 = vand.u32 %v1644, 4294901760
        %v2914 = vsub.f32 %v1644, %v2913
        %2915 = vmatpush.msra.mxu0 %v2914
        %v2916 = vand.u32 %v1641, 4294901760
        %v2917 = vsub.f32 %v1641, %v2916
        %2918 = vmatpush.msra.mxu0 %v2917
        %v2919 = vand.u32 %v1638, 4294901760
        %v2920 = vsub.f32 %v1638, %v2919
        %2921 = vmatpush.msra.mxu0 %v2920
        %v2922 = vand.u32 %v1635, 4294901760
        %v2923 = vsub.f32 %v1635, %v2922
        %2924 = vmatpush.msra.mxu0 %v2923
        %v2925 = vand.u32 %v1632, 4294901760
        %v2926 = vsub.f32 %v1632, %v2925
        %2927 = vmatpush.msra.mxu0 %v2926
        %v2928 = vand.u32 %v1629, 4294901760
        %v2929 = vsub.f32 %v1629, %v2928
        %2930 = vmatpush.msra.mxu0 %v2929
        %v2931 = vand.u32 %v1626, 4294901760
        %v2932 = vsub.f32 %v1626, %v2931
        %2933 = vmatpush.msra.mxu0 %v2932
        %v2934 = vand.u32 %v1623, 4294901760
        %v2935 = vsub.f32 %v1623, %v2934
        %2936 = vmatpush.msra.mxu0 %v2935
        %v2937 = vand.u32 %v1620, 4294901760
        %v2938 = vsub.f32 %v1620, %v2937
        %2939 = vmatpush.msra.mxu0 %v2938
        %v2940 = vand.u32 %v1617, 4294901760
        %v2941 = vsub.f32 %v1617, %v2940
        %2942 = vmatpush.msra.mxu0 %v2941
        %v2943 = vand.u32 %v1614, 4294901760
        %v2944 = vsub.f32 %v1614, %v2943
        %2945 = vmatpush.msra.mxu0 %v2944
        %v2946 = vand.u32 %v1611, 4294901760
        %v2947 = vsub.f32 %v1611, %v2946
        %2948 = vmatpush.msra.mxu0 %v2947
        %v2949 = vand.u32 %v2746, 4294901760
        %v2950 = vsub.f32 %v2746, %v2949
        %2951 = vmatmul.f32.gmra.mxu0 %v2950
        %v2952 = vpop.f32.mrf.mxu0
        %v2953 = vadd.f32 %v2899, %v2952
        %2954 = vdwg.mxu0
        %v2955 = vand.u32 %v1656, 4294901760
        %2956 = vmatpush.msra.mxu0 %v2955
        %v2957 = vand.u32 %v1653, 4294901760
        %2958 = vmatpush.msra.mxu0 %v2957
        %v2959 = vand.u32 %v1650, 4294901760
        %2960 = vmatpush.msra.mxu0 %v2959
        %v2961 = vand.u32 %v1647, 4294901760
        %2962 = vmatpush.msra.mxu0 %v2961
        %v2963 = vand.u32 %v1644, 4294901760
        %2964 = vmatpush.msra.mxu0 %v2963
        %v2965 = vand.u32 %v1641, 4294901760
        %2966 = vmatpush.msra.mxu0 %v2965
        %v2967 = vand.u32 %v1638, 4294901760
        %2968 = vmatpush.msra.mxu0 %v2967
        %v2969 = vand.u32 %v1635, 4294901760
        %2970 = vmatpush.msra.mxu0 %v2969
        %v2971 = vand.u32 %v1632, 4294901760
        %2972 = vmatpush.msra.mxu0 %v2971
        %v2973 = vand.u32 %v1629, 4294901760
        %2974 = vmatpush.msra.mxu0 %v2973
        %v2975 = vand.u32 %v1626, 4294901760
        %2976 = vmatpush.msra.mxu0 %v2975
        %v2977 = vand.u32 %v1623, 4294901760
        %2978 = vmatpush.msra.mxu0 %v2977
        %v2979 = vand.u32 %v1620, 4294901760
        %2980 = vmatpush.msra.mxu0 %v2979
        %v2981 = vand.u32 %v1617, 4294901760
        %2982 = vmatpush.msra.mxu0 %v2981
        %v2983 = vand.u32 %v1614, 4294901760
        %2984 = vmatpush.msra.mxu0 %v2983
        %v2985 = vand.u32 %v1611, 4294901760
        %2986 = vmatpush.msra.mxu0 %v2985
        %v2987 = vand.u32 %v2746, 4294901760
        %v2988 = vsub.f32 %v2746, %v2987
        %v2989 = vand.u32 %v2988, 4294901760
        %2990 = vmatmul.f32.gmra.mxu0 %v2989
        %v2991 = vpop.f32.mrf.mxu0
        %v2992 = vadd.f32 %v2953, %v2991
        %2993 = vdwg.mxu0
        %v2994 = vand.u32 %v1656, 4294901760
        %v2995 = vsub.f32 %v1656, %v2994
        %v2996 = vand.u32 %v2995, 4294901760
        %2997 = vmatpush.msra.mxu0 %v2996
        %v2998 = vand.u32 %v1653, 4294901760
        %v2999 = vsub.f32 %v1653, %v2998
        %v3000 = vand.u32 %v2999, 4294901760
        %3001 = vmatpush.msra.mxu0 %v3000
        %v3002 = vand.u32 %v1650, 4294901760
        %v3003 = vsub.f32 %v1650, %v3002
        %v3004 = vand.u32 %v3003, 4294901760
        %3005 = vmatpush.msra.mxu0 %v3004
        %v3006 = vand.u32 %v1647, 4294901760
        %v3007 = vsub.f32 %v1647, %v3006
        %v3008 = vand.u32 %v3007, 4294901760
        %3009 = vmatpush.msra.mxu0 %v3008
        %v3010 = vand.u32 %v1644, 4294901760
        %v3011 = vsub.f32 %v1644, %v3010
        %v3012 = vand.u32 %v3011, 4294901760
        %3013 = vmatpush.msra.mxu0 %v3012
        %v3014 = vand.u32 %v1641, 4294901760
        %v3015 = vsub.f32 %v1641, %v3014
        %v3016 = vand.u32 %v3015, 4294901760
        %3017 = vmatpush.msra.mxu0 %v3016
        %v3018 = vand.u32 %v1638, 4294901760
        %v3019 = vsub.f32 %v1638, %v3018
        %v3020 = vand.u32 %v3019, 4294901760
        %3021 = vmatpush.msra.mxu0 %v3020
        %v3022 = vand.u32 %v1635, 4294901760
        %v3023 = vsub.f32 %v1635, %v3022
        %v3024 = vand.u32 %v3023, 4294901760
        %3025 = vmatpush.msra.mxu0 %v3024
        %v3026 = vand.u32 %v1632, 4294901760
        %v3027 = vsub.f32 %v1632, %v3026
        %v3028 = vand.u32 %v3027, 4294901760
        %3029 = vmatpush.msra.mxu0 %v3028
        %v3030 = vand.u32 %v1629, 4294901760
        %v3031 = vsub.f32 %v1629, %v3030
        %v3032 = vand.u32 %v3031, 4294901760
        %3033 = vmatpush.msra.mxu0 %v3032
        %v3034 = vand.u32 %v1626, 4294901760
        %v3035 = vsub.f32 %v1626, %v3034
        %v3036 = vand.u32 %v3035, 4294901760
        %3037 = vmatpush.msra.mxu0 %v3036
        %v3038 = vand.u32 %v1623, 4294901760
        %v3039 = vsub.f32 %v1623, %v3038
        %v3040 = vand.u32 %v3039, 4294901760
        %3041 = vmatpush.msra.mxu0 %v3040
        %v3042 = vand.u32 %v1620, 4294901760
        %v3043 = vsub.f32 %v1620, %v3042
        %v3044 = vand.u32 %v3043, 4294901760
        %3045 = vmatpush.msra.mxu0 %v3044
        %v3046 = vand.u32 %v1617, 4294901760
        %v3047 = vsub.f32 %v1617, %v3046
        %v3048 = vand.u32 %v3047, 4294901760
        %3049 = vmatpush.msra.mxu0 %v3048
        %v3050 = vand.u32 %v1614, 4294901760
        %v3051 = vsub.f32 %v1614, %v3050
        %v3052 = vand.u32 %v3051, 4294901760
        %3053 = vmatpush.msra.mxu0 %v3052
        %v3054 = vand.u32 %v1611, 4294901760
        %v3055 = vsub.f32 %v1611, %v3054
        %v3056 = vand.u32 %v3055, 4294901760
        %3057 = vmatpush.msra.mxu0 %v3056
        %v3058 = vand.u32 %v2746, 4294901760
        %3059 = vmatmul.f32.gmra.mxu0 %v3058
        %v3060 = vpop.f32.mrf.mxu0
        %v3061 = vadd.f32 %v2992, %v3060
        %3062 = vdwg.mxu0
        %v3063 = vand.u32 %v1656, 4294901760
        %3064 = vmatpush.msra.mxu0 %v3063
        %v3065 = vand.u32 %v1653, 4294901760
        %3066 = vmatpush.msra.mxu0 %v3065
        %v3067 = vand.u32 %v1650, 4294901760
        %3068 = vmatpush.msra.mxu0 %v3067
        %v3069 = vand.u32 %v1647, 4294901760
        %3070 = vmatpush.msra.mxu0 %v3069
        %v3071 = vand.u32 %v1644, 4294901760
        %3072 = vmatpush.msra.mxu0 %v3071
        %v3073 = vand.u32 %v1641, 4294901760
        %3074 = vmatpush.msra.mxu0 %v3073
        %v3075 = vand.u32 %v1638, 4294901760
        %3076 = vmatpush.msra.mxu0 %v3075
        %v3077 = vand.u32 %v1635, 4294901760
        %3078 = vmatpush.msra.mxu0 %v3077
        %v3079 = vand.u32 %v1632, 4294901760
        %3080 = vmatpush.msra.mxu0 %v3079
        %v3081 = vand.u32 %v1629, 4294901760
        %3082 = vmatpush.msra.mxu0 %v3081
        %v3083 = vand.u32 %v1626, 4294901760
        %3084 = vmatpush.msra.mxu0 %v3083
        %v3085 = vand.u32 %v1623, 4294901760
        %3086 = vmatpush.msra.mxu0 %v3085
        %v3087 = vand.u32 %v1620, 4294901760
        %3088 = vmatpush.msra.mxu0 %v3087
        %v3089 = vand.u32 %v1617, 4294901760
        %3090 = vmatpush.msra.mxu0 %v3089
        %v3091 = vand.u32 %v1614, 4294901760
        %3092 = vmatpush.msra.mxu0 %v3091
        %v3093 = vand.u32 %v1611, 4294901760
        %3094 = vmatpush.msra.mxu0 %v3093
        %v3095 = vand.u32 %v2746, 4294901760
        %3096 = vmatmul.f32.gmra.mxu0 %v3095
        %v3097 = vpop.f32.mrf.mxu0
        %v3098 = vadd.f32 %v3061, %v3097
        %3099 = vdwg.mxu0
        %v3100 = vand.u32 %v1657, 4294901760
        %3101 = vmatpush.msra.mxu0 %v3100
        %v3102 = vand.u32 %v1654, 4294901760
        %3103 = vmatpush.msra.mxu0 %v3102
        %v3104 = vand.u32 %v1651, 4294901760
        %3105 = vmatpush.msra.mxu0 %v3104
        %v3106 = vand.u32 %v1648, 4294901760
        %3107 = vmatpush.msra.mxu0 %v3106
        %v3108 = vand.u32 %v1645, 4294901760
        %3109 = vmatpush.msra.mxu0 %v3108
        %v3110 = vand.u32 %v1642, 4294901760
        %3111 = vmatpush.msra.mxu0 %v3110
        %v3112 = vand.u32 %v1639, 4294901760
        %3113 = vmatpush.msra.mxu0 %v3112
        %v3114 = vand.u32 %v1636, 4294901760
        %3115 = vmatpush.msra.mxu0 %v3114
        %v3116 = vand.u32 %v1633, 4294901760
        %3117 = vmatpush.msra.mxu0 %v3116
        %v3118 = vand.u32 %v1630, 4294901760
        %3119 = vmatpush.msra.mxu0 %v3118
        %v3120 = vand.u32 %v1627, 4294901760
        %3121 = vmatpush.msra.mxu0 %v3120
        %v3122 = vand.u32 %v1624, 4294901760
        %3123 = vmatpush.msra.mxu0 %v3122
        %v3124 = vand.u32 %v1621, 4294901760
        %3125 = vmatpush.msra.mxu0 %v3124
        %v3126 = vand.u32 %v1618, 4294901760
        %3127 = vmatpush.msra.mxu0 %v3126
        %v3128 = vand.u32 %v1615, 4294901760
        %3129 = vmatpush.msra.mxu0 %v3128
        %v3130 = vand.u32 %v1612, 4294901760
        %3131 = vmatpush.msra.mxu0 %v3130
        %v3132 = vand.u32 %v2746, 4294901760
        %v3133 = vsub.f32 %v2746, %v3132
        %v3134 = vand.u32 %v3133, 4294901760
        %v3135 = vsub.f32 %v3133, %v3134
        %v3136 = vand.u32 %v3135, 4294901760
        %3137 = vmatmul.f32.gmra.mxu0 %v3136
        %v3138 = vpop.f32.mrf.mxu0
        %v3139 = vadd.f32 %v1672, %v3138
        %3140 = vdwg.mxu0
        %v3141 = vand.u32 %v1657, 4294901760
        %v3142 = vsub.f32 %v1657, %v3141
        %v3143 = vand.u32 %v3142, 4294901760
        %v3144 = vsub.f32 %v3142, %v3143
        %v3145 = vand.u32 %v3144, 4294901760
        %3146 = vmatpush.msra.mxu0 %v3145
        %v3147 = vand.u32 %v1654, 4294901760
        %v3148 = vsub.f32 %v1654, %v3147
        %v3149 = vand.u32 %v3148, 4294901760
        %v3150 = vsub.f32 %v3148, %v3149
        %v3151 = vand.u32 %v3150, 4294901760
        %3152 = vmatpush.msra.mxu0 %v3151
        %v3153 = vand.u32 %v1651, 4294901760
        %v3154 = vsub.f32 %v1651, %v3153
        %v3155 = vand.u32 %v3154, 4294901760
        %v3156 = vsub.f32 %v3154, %v3155
        %v3157 = vand.u32 %v3156, 4294901760
        %3158 = vmatpush.msra.mxu0 %v3157
        %v3159 = vand.u32 %v1648, 4294901760
        %v3160 = vsub.f32 %v1648, %v3159
        %v3161 = vand.u32 %v3160, 4294901760
        %v3162 = vsub.f32 %v3160, %v3161
        %v3163 = vand.u32 %v3162, 4294901760
        %3164 = vmatpush.msra.mxu0 %v3163
        %v3165 = vand.u32 %v1645, 4294901760
        %v3166 = vsub.f32 %v1645, %v3165
        %v3167 = vand.u32 %v3166, 4294901760
        %v3168 = vsub.f32 %v3166, %v3167
        %v3169 = vand.u32 %v3168, 4294901760
        %3170 = vmatpush.msra.mxu0 %v3169
        %v3171 = vand.u32 %v1642, 4294901760
        %v3172 = vsub.f32 %v1642, %v3171
        %v3173 = vand.u32 %v3172, 4294901760
        %v3174 = vsub.f32 %v3172, %v3173
        %v3175 = vand.u32 %v3174, 4294901760
        %3176 = vmatpush.msra.mxu0 %v3175
        %v3177 = vand.u32 %v1639, 4294901760
        %v3178 = vsub.f32 %v1639, %v3177
        %v3179 = vand.u32 %v3178, 4294901760
        %v3180 = vsub.f32 %v3178, %v3179
        %v3181 = vand.u32 %v3180, 4294901760
        %3182 = vmatpush.msra.mxu0 %v3181
        %v3183 = vand.u32 %v1636, 4294901760
        %v3184 = vsub.f32 %v1636, %v3183
        %v3185 = vand.u32 %v3184, 4294901760
        %v3186 = vsub.f32 %v3184, %v3185
        %v3187 = vand.u32 %v3186, 4294901760
        %3188 = vmatpush.msra.mxu0 %v3187
        %v3189 = vand.u32 %v1633, 4294901760
        %v3190 = vsub.f32 %v1633, %v3189
        %v3191 = vand.u32 %v3190, 4294901760
        %v3192 = vsub.f32 %v3190, %v3191
        %v3193 = vand.u32 %v3192, 4294901760
        %3194 = vmatpush.msra.mxu0 %v3193
        %v3195 = vand.u32 %v1630, 4294901760
        %v3196 = vsub.f32 %v1630, %v3195
        %v3197 = vand.u32 %v3196, 4294901760
        %v3198 = vsub.f32 %v3196, %v3197
        %v3199 = vand.u32 %v3198, 4294901760
        %3200 = vmatpush.msra.mxu0 %v3199
        %v3201 = vand.u32 %v1627, 4294901760
        %v3202 = vsub.f32 %v1627, %v3201
        %v3203 = vand.u32 %v3202, 4294901760
        %v3204 = vsub.f32 %v3202, %v3203
        %v3205 = vand.u32 %v3204, 4294901760
        %3206 = vmatpush.msra.mxu0 %v3205
        %v3207 = vand.u32 %v1624, 4294901760
        %v3208 = vsub.f32 %v1624, %v3207
        %v3209 = vand.u32 %v3208, 4294901760
        %v3210 = vsub.f32 %v3208, %v3209
        %v3211 = vand.u32 %v3210, 4294901760
        %3212 = vmatpush.msra.mxu0 %v3211
        %v3213 = vand.u32 %v1621, 4294901760
        %v3214 = vsub.f32 %v1621, %v3213
        %v3215 = vand.u32 %v3214, 4294901760
        %v3216 = vsub.f32 %v3214, %v3215
        %v3217 = vand.u32 %v3216, 4294901760
        %3218 = vmatpush.msra.mxu0 %v3217
        %v3219 = vand.u32 %v1618, 4294901760
        %v3220 = vsub.f32 %v1618, %v3219
        %v3221 = vand.u32 %v3220, 4294901760
        %v3222 = vsub.f32 %v3220, %v3221
        %v3223 = vand.u32 %v3222, 4294901760
        %3224 = vmatpush.msra.mxu0 %v3223
        %v3225 = vand.u32 %v1615, 4294901760
        %v3226 = vsub.f32 %v1615, %v3225
        %v3227 = vand.u32 %v3226, 4294901760
        %v3228 = vsub.f32 %v3226, %v3227
        %v3229 = vand.u32 %v3228, 4294901760
        %3230 = vmatpush.msra.mxu0 %v3229
        %v3231 = vand.u32 %v1612, 4294901760
        %v3232 = vsub.f32 %v1612, %v3231
        %v3233 = vand.u32 %v3232, 4294901760
        %v3234 = vsub.f32 %v3232, %v3233
        %v3235 = vand.u32 %v3234, 4294901760
        %3236 = vmatpush.msra.mxu0 %v3235
        %v3237 = vand.u32 %v2746, 4294901760
        %3238 = vmatmul.f32.gmra.mxu0 %v3237
        %v3239 = vpop.f32.mrf.mxu0
        %v3240 = vadd.f32 %v3139, %v3239
        %3241 = vdwg.mxu0
        %v3242 = vand.u32 %v1657, 4294901760
        %v3243 = vsub.f32 %v1657, %v3242
        %3244 = vmatpush.msra.mxu0 %v3243
        %v3245 = vand.u32 %v1654, 4294901760
        %v3246 = vsub.f32 %v1654, %v3245
        %3247 = vmatpush.msra.mxu0 %v3246
        %v3248 = vand.u32 %v1651, 4294901760
        %v3249 = vsub.f32 %v1651, %v3248
        %3250 = vmatpush.msra.mxu0 %v3249
        %v3251 = vand.u32 %v1648, 4294901760
        %v3252 = vsub.f32 %v1648, %v3251
        %3253 = vmatpush.msra.mxu0 %v3252
        %v3254 = vand.u32 %v1645, 4294901760
        %v3255 = vsub.f32 %v1645, %v3254
        %3256 = vmatpush.msra.mxu0 %v3255
        %v3257 = vand.u32 %v1642, 4294901760
        %v3258 = vsub.f32 %v1642, %v3257
        %3259 = vmatpush.msra.mxu0 %v3258
        %v3260 = vand.u32 %v1639, 4294901760
        %v3261 = vsub.f32 %v1639, %v3260
        %3262 = vmatpush.msra.mxu0 %v3261
        %v3263 = vand.u32 %v1636, 4294901760
        %v3264 = vsub.f32 %v1636, %v3263
        %3265 = vmatpush.msra.mxu0 %v3264
        %v3266 = vand.u32 %v1633, 4294901760
        %v3267 = vsub.f32 %v1633, %v3266
        %3268 = vmatpush.msra.mxu0 %v3267
        %v3269 = vand.u32 %v1630, 4294901760
        %v3270 = vsub.f32 %v1630, %v3269
        %3271 = vmatpush.msra.mxu0 %v3270
        %v3272 = vand.u32 %v1627, 4294901760
        %v3273 = vsub.f32 %v1627, %v3272
        %3274 = vmatpush.msra.mxu0 %v3273
        %v3275 = vand.u32 %v1624, 4294901760
        %v3276 = vsub.f32 %v1624, %v3275
        %3277 = vmatpush.msra.mxu0 %v3276
        %v3278 = vand.u32 %v1621, 4294901760
        %v3279 = vsub.f32 %v1621, %v3278
        %3280 = vmatpush.msra.mxu0 %v3279
        %v3281 = vand.u32 %v1618, 4294901760
        %v3282 = vsub.f32 %v1618, %v3281
        %3283 = vmatpush.msra.mxu0 %v3282
        %v3284 = vand.u32 %v1615, 4294901760
        %v3285 = vsub.f32 %v1615, %v3284
        %3286 = vmatpush.msra.mxu0 %v3285
        %v3287 = vand.u32 %v1612, 4294901760
        %v3288 = vsub.f32 %v1612, %v3287
        %3289 = vmatpush.msra.mxu0 %v3288
        %v3290 = vand.u32 %v2746, 4294901760
        %v3291 = vsub.f32 %v2746, %v3290
        %3292 = vmatmul.f32.gmra.mxu0 %v3291
        %v3293 = vpop.f32.mrf.mxu0
        %v3294 = vadd.f32 %v3240, %v3293
        %3295 = vdwg.mxu0
        %v3296 = vand.u32 %v1657, 4294901760
        %3297 = vmatpush.msra.mxu0 %v3296
        %v3298 = vand.u32 %v1654, 4294901760
        %3299 = vmatpush.msra.mxu0 %v3298
        %v3300 = vand.u32 %v1651, 4294901760
        %3301 = vmatpush.msra.mxu0 %v3300
        %v3302 = vand.u32 %v1648, 4294901760
        %3303 = vmatpush.msra.mxu0 %v3302
        %v3304 = vand.u32 %v1645, 4294901760
        %3305 = vmatpush.msra.mxu0 %v3304
        %v3306 = vand.u32 %v1642, 4294901760
        %3307 = vmatpush.msra.mxu0 %v3306
        %v3308 = vand.u32 %v1639, 4294901760
        %3309 = vmatpush.msra.mxu0 %v3308
        %v3310 = vand.u32 %v1636, 4294901760
        %3311 = vmatpush.msra.mxu0 %v3310
        %v3312 = vand.u32 %v1633, 4294901760
        %3313 = vmatpush.msra.mxu0 %v3312
        %v3314 = vand.u32 %v1630, 4294901760
        %3315 = vmatpush.msra.mxu0 %v3314
        %v3316 = vand.u32 %v1627, 4294901760
        %3317 = vmatpush.msra.mxu0 %v3316
        %v3318 = vand.u32 %v1624, 4294901760
        %3319 = vmatpush.msra.mxu0 %v3318
        %v3320 = vand.u32 %v1621, 4294901760
        %3321 = vmatpush.msra.mxu0 %v3320
        %v3322 = vand.u32 %v1618, 4294901760
        %3323 = vmatpush.msra.mxu0 %v3322
        %v3324 = vand.u32 %v1615, 4294901760
        %3325 = vmatpush.msra.mxu0 %v3324
        %v3326 = vand.u32 %v1612, 4294901760
        %3327 = vmatpush.msra.mxu0 %v3326
        %v3328 = vand.u32 %v2746, 4294901760
        %v3329 = vsub.f32 %v2746, %v3328
        %v3330 = vand.u32 %v3329, 4294901760
        %3331 = vmatmul.f32.gmra.mxu0 %v3330
        %v3332 = vpop.f32.mrf.mxu0
        %v3333 = vadd.f32 %v3294, %v3332
        %3334 = vdwg.mxu0
        %v3335 = vand.u32 %v1657, 4294901760
        %v3336 = vsub.f32 %v1657, %v3335
        %v3337 = vand.u32 %v3336, 4294901760
        %3338 = vmatpush.msra.mxu0 %v3337
        %v3339 = vand.u32 %v1654, 4294901760
        %v3340 = vsub.f32 %v1654, %v3339
        %v3341 = vand.u32 %v3340, 4294901760
        %3342 = vmatpush.msra.mxu0 %v3341
        %v3343 = vand.u32 %v1651, 4294901760
        %v3344 = vsub.f32 %v1651, %v3343
        %v3345 = vand.u32 %v3344, 4294901760
        %3346 = vmatpush.msra.mxu0 %v3345
        %v3347 = vand.u32 %v1648, 4294901760
        %v3348 = vsub.f32 %v1648, %v3347
        %v3349 = vand.u32 %v3348, 4294901760
        %3350 = vmatpush.msra.mxu0 %v3349
        %v3351 = vand.u32 %v1645, 4294901760
        %v3352 = vsub.f32 %v1645, %v3351
        %v3353 = vand.u32 %v3352, 4294901760
        %3354 = vmatpush.msra.mxu0 %v3353
        %v3355 = vand.u32 %v1642, 4294901760
        %v3356 = vsub.f32 %v1642, %v3355
        %v3357 = vand.u32 %v3356, 4294901760
        %3358 = vmatpush.msra.mxu0 %v3357
        %v3359 = vand.u32 %v1639, 4294901760
        %v3360 = vsub.f32 %v1639, %v3359
        %v3361 = vand.u32 %v3360, 4294901760
        %3362 = vmatpush.msra.mxu0 %v3361
        %v3363 = vand.u32 %v1636, 4294901760
        %v3364 = vsub.f32 %v1636, %v3363
        %v3365 = vand.u32 %v3364, 4294901760
        %3366 = vmatpush.msra.mxu0 %v3365
        %v3367 = vand.u32 %v1633, 4294901760
        %v3368 = vsub.f32 %v1633, %v3367
        %v3369 = vand.u32 %v3368, 4294901760
        %3370 = vmatpush.msra.mxu0 %v3369
        %v3371 = vand.u32 %v1630, 4294901760
        %v3372 = vsub.f32 %v1630, %v3371
        %v3373 = vand.u32 %v3372, 4294901760
        %3374 = vmatpush.msra.mxu0 %v3373
        %v3375 = vand.u32 %v1627, 4294901760
        %v3376 = vsub.f32 %v1627, %v3375
        %v3377 = vand.u32 %v3376, 4294901760
        %3378 = vmatpush.msra.mxu0 %v3377
        %v3379 = vand.u32 %v1624, 4294901760
        %v3380 = vsub.f32 %v1624, %v3379
        %v3381 = vand.u32 %v3380, 4294901760
        %3382 = vmatpush.msra.mxu0 %v3381
        %v3383 = vand.u32 %v1621, 4294901760
        %v3384 = vsub.f32 %v1621, %v3383
        %v3385 = vand.u32 %v3384, 4294901760
        %3386 = vmatpush.msra.mxu0 %v3385
        %v3387 = vand.u32 %v1618, 4294901760
        %v3388 = vsub.f32 %v1618, %v3387
        %v3389 = vand.u32 %v3388, 4294901760
        %3390 = vmatpush.msra.mxu0 %v3389
        %v3391 = vand.u32 %v1615, 4294901760
        %v3392 = vsub.f32 %v1615, %v3391
        %v3393 = vand.u32 %v3392, 4294901760
        %3394 = vmatpush.msra.mxu0 %v3393
        %v3395 = vand.u32 %v1612, 4294901760
        %v3396 = vsub.f32 %v1612, %v3395
        %v3397 = vand.u32 %v3396, 4294901760
        %3398 = vmatpush.msra.mxu0 %v3397
        %v3399 = vand.u32 %v2746, 4294901760
        %3400 = vmatmul.f32.gmra.mxu0 %v3399
        %v3401 = vpop.f32.mrf.mxu0
        %v3402 = vadd.f32 %v3333, %v3401
        %3403 = vdwg.mxu0
        %v3404 = vand.u32 %v1657, 4294901760
        %3405 = vmatpush.msra.mxu0 %v3404
        %v3406 = vand.u32 %v1654, 4294901760
        %3407 = vmatpush.msra.mxu0 %v3406
        %v3408 = vand.u32 %v1651, 4294901760
        %3409 = vmatpush.msra.mxu0 %v3408
        %v3410 = vand.u32 %v1648, 4294901760
        %3411 = vmatpush.msra.mxu0 %v3410
        %v3412 = vand.u32 %v1645, 4294901760
        %3413 = vmatpush.msra.mxu0 %v3412
        %v3414 = vand.u32 %v1642, 4294901760
        %3415 = vmatpush.msra.mxu0 %v3414
        %v3416 = vand.u32 %v1639, 4294901760
        %3417 = vmatpush.msra.mxu0 %v3416
        %v3418 = vand.u32 %v1636, 4294901760
        %3419 = vmatpush.msra.mxu0 %v3418
        %v3420 = vand.u32 %v1633, 4294901760
        %3421 = vmatpush.msra.mxu0 %v3420
        %v3422 = vand.u32 %v1630, 4294901760
        %3423 = vmatpush.msra.mxu0 %v3422
        %v3424 = vand.u32 %v1627, 4294901760
        %3425 = vmatpush.msra.mxu0 %v3424
        %v3426 = vand.u32 %v1624, 4294901760
        %3427 = vmatpush.msra.mxu0 %v3426
        %v3428 = vand.u32 %v1621, 4294901760
        %3429 = vmatpush.msra.mxu0 %v3428
        %v3430 = vand.u32 %v1618, 4294901760
        %3431 = vmatpush.msra.mxu0 %v3430
        %v3432 = vand.u32 %v1615, 4294901760
        %3433 = vmatpush.msra.mxu0 %v3432
        %v3434 = vand.u32 %v1612, 4294901760
        %3435 = vmatpush.msra.mxu0 %v3434
        %v3436 = vand.u32 %v2746, 4294901760
        %3437 = vmatmul.f32.gmra.mxu0 %v3436
        %v3438 = vpop.f32.mrf.mxu0
        %v3439 = vadd.f32 %v3402, %v3438
        %3440 = vdwg.mxu0
        %v3441 = vand.u32 %v1658, 4294901760
        %3442 = vmatpush.msra.mxu0 %v3441
        %v3443 = vand.u32 %v1655, 4294901760
        %3444 = vmatpush.msra.mxu0 %v3443
        %v3445 = vand.u32 %v1652, 4294901760
        %3446 = vmatpush.msra.mxu0 %v3445
        %v3447 = vand.u32 %v1649, 4294901760
        %3448 = vmatpush.msra.mxu0 %v3447
        %v3449 = vand.u32 %v1646, 4294901760
        %3450 = vmatpush.msra.mxu0 %v3449
        %v3451 = vand.u32 %v1643, 4294901760
        %3452 = vmatpush.msra.mxu0 %v3451
        %v3453 = vand.u32 %v1640, 4294901760
        %3454 = vmatpush.msra.mxu0 %v3453
        %v3455 = vand.u32 %v1637, 4294901760
        %3456 = vmatpush.msra.mxu0 %v3455
        %v3457 = vand.u32 %v1634, 4294901760
        %3458 = vmatpush.msra.mxu0 %v3457
        %v3459 = vand.u32 %v1631, 4294901760
        %3460 = vmatpush.msra.mxu0 %v3459
        %v3461 = vand.u32 %v1628, 4294901760
        %3462 = vmatpush.msra.mxu0 %v3461
        %v3463 = vand.u32 %v1625, 4294901760
        %3464 = vmatpush.msra.mxu0 %v3463
        %v3465 = vand.u32 %v1622, 4294901760
        %3466 = vmatpush.msra.mxu0 %v3465
        %v3467 = vand.u32 %v1619, 4294901760
        %3468 = vmatpush.msra.mxu0 %v3467
        %v3469 = vand.u32 %v1616, 4294901760
        %3470 = vmatpush.msra.mxu0 %v3469
        %v3471 = vand.u32 %v1613, 4294901760
        %3472 = vmatpush.msra.mxu0 %v3471
        %v3473 = vand.u32 %v2746, 4294901760
        %v3474 = vsub.f32 %v2746, %v3473
        %v3475 = vand.u32 %v3474, 4294901760
        %v3476 = vsub.f32 %v3474, %v3475
        %v3477 = vand.u32 %v3476, 4294901760
        %3478 = vmatmul.f32.gmra.mxu0 %v3477
        %v3479 = vpop.f32.mrf.mxu0
        %v3480 = vadd.f32 %v1673, %v3479
        %3481 = vdwg.mxu0
        %v3482 = vand.u32 %v1658, 4294901760
        %v3483 = vsub.f32 %v1658, %v3482
        %v3484 = vand.u32 %v3483, 4294901760
        %v3485 = vsub.f32 %v3483, %v3484
        %v3486 = vand.u32 %v3485, 4294901760
        %3487 = vmatpush.msra.mxu0 %v3486
        %v3488 = vand.u32 %v1655, 4294901760
        %v3489 = vsub.f32 %v1655, %v3488
        %v3490 = vand.u32 %v3489, 4294901760
        %v3491 = vsub.f32 %v3489, %v3490
        %v3492 = vand.u32 %v3491, 4294901760
        %3493 = vmatpush.msra.mxu0 %v3492
        %v3494 = vand.u32 %v1652, 4294901760
        %v3495 = vsub.f32 %v1652, %v3494
        %v3496 = vand.u32 %v3495, 4294901760
        %v3497 = vsub.f32 %v3495, %v3496
        %v3498 = vand.u32 %v3497, 4294901760
        %3499 = vmatpush.msra.mxu0 %v3498
        %v3500 = vand.u32 %v1649, 4294901760
        %v3501 = vsub.f32 %v1649, %v3500
        %v3502 = vand.u32 %v3501, 4294901760
        %v3503 = vsub.f32 %v3501, %v3502
        %v3504 = vand.u32 %v3503, 4294901760
        %3505 = vmatpush.msra.mxu0 %v3504
        %v3506 = vand.u32 %v1646, 4294901760
        %v3507 = vsub.f32 %v1646, %v3506
        %v3508 = vand.u32 %v3507, 4294901760
        %v3509 = vsub.f32 %v3507, %v3508
        %v3510 = vand.u32 %v3509, 4294901760
        %3511 = vmatpush.msra.mxu0 %v3510
        %v3512 = vand.u32 %v1643, 4294901760
        %v3513 = vsub.f32 %v1643, %v3512
        %v3514 = vand.u32 %v3513, 4294901760
        %v3515 = vsub.f32 %v3513, %v3514
        %v3516 = vand.u32 %v3515, 4294901760
        %3517 = vmatpush.msra.mxu0 %v3516
        %v3518 = vand.u32 %v1640, 4294901760
        %v3519 = vsub.f32 %v1640, %v3518
        %v3520 = vand.u32 %v3519, 4294901760
        %v3521 = vsub.f32 %v3519, %v3520
        %v3522 = vand.u32 %v3521, 4294901760
        %3523 = vmatpush.msra.mxu0 %v3522
        %v3524 = vand.u32 %v1637, 4294901760
        %v3525 = vsub.f32 %v1637, %v3524
        %v3526 = vand.u32 %v3525, 4294901760
        %v3527 = vsub.f32 %v3525, %v3526
        %v3528 = vand.u32 %v3527, 4294901760
        %3529 = vmatpush.msra.mxu0 %v3528
        %v3530 = vand.u32 %v1634, 4294901760
        %v3531 = vsub.f32 %v1634, %v3530
        %v3532 = vand.u32 %v3531, 4294901760
        %v3533 = vsub.f32 %v3531, %v3532
        %v3534 = vand.u32 %v3533, 4294901760
        %3535 = vmatpush.msra.mxu0 %v3534
        %v3536 = vand.u32 %v1631, 4294901760
        %v3537 = vsub.f32 %v1631, %v3536
        %v3538 = vand.u32 %v3537, 4294901760
        %v3539 = vsub.f32 %v3537, %v3538
        %v3540 = vand.u32 %v3539, 4294901760
        %3541 = vmatpush.msra.mxu0 %v3540
        %v3542 = vand.u32 %v1628, 4294901760
        %v3543 = vsub.f32 %v1628, %v3542
        %v3544 = vand.u32 %v3543, 4294901760
        %v3545 = vsub.f32 %v3543, %v3544
        %v3546 = vand.u32 %v3545, 4294901760
        %3547 = vmatpush.msra.mxu0 %v3546
        %v3548 = vand.u32 %v1625, 4294901760
        %v3549 = vsub.f32 %v1625, %v3548
        %v3550 = vand.u32 %v3549, 4294901760
        %v3551 = vsub.f32 %v3549, %v3550
        %v3552 = vand.u32 %v3551, 4294901760
        %3553 = vmatpush.msra.mxu0 %v3552
        %v3554 = vand.u32 %v1622, 4294901760
        %v3555 = vsub.f32 %v1622, %v3554
        %v3556 = vand.u32 %v3555, 4294901760
        %v3557 = vsub.f32 %v3555, %v3556
        %v3558 = vand.u32 %v3557, 4294901760
        %3559 = vmatpush.msra.mxu0 %v3558
        %v3560 = vand.u32 %v1619, 4294901760
        %v3561 = vsub.f32 %v1619, %v3560
        %v3562 = vand.u32 %v3561, 4294901760
        %v3563 = vsub.f32 %v3561, %v3562
        %v3564 = vand.u32 %v3563, 4294901760
        %3565 = vmatpush.msra.mxu0 %v3564
        %v3566 = vand.u32 %v1616, 4294901760
        %v3567 = vsub.f32 %v1616, %v3566
        %v3568 = vand.u32 %v3567, 4294901760
        %v3569 = vsub.f32 %v3567, %v3568
        %v3570 = vand.u32 %v3569, 4294901760
        %3571 = vmatpush.msra.mxu0 %v3570
        %v3572 = vand.u32 %v1613, 4294901760
        %v3573 = vsub.f32 %v1613, %v3572
        %v3574 = vand.u32 %v3573, 4294901760
        %v3575 = vsub.f32 %v3573, %v3574
        %v3576 = vand.u32 %v3575, 4294901760
        %3577 = vmatpush.msra.mxu0 %v3576
        %v3578 = vand.u32 %v2746, 4294901760
        %3579 = vmatmul.f32.gmra.mxu0 %v3578
        %v3580 = vpop.f32.mrf.mxu0
        %v3581 = vadd.f32 %v3480, %v3580
        %3582 = vdwg.mxu0
        %v3583 = vand.u32 %v1658, 4294901760
        %v3584 = vsub.f32 %v1658, %v3583
        %3585 = vmatpush.msra.mxu0 %v3584
        %v3586 = vand.u32 %v1655, 4294901760
        %v3587 = vsub.f32 %v1655, %v3586
        %3588 = vmatpush.msra.mxu0 %v3587
        %v3589 = vand.u32 %v1652, 4294901760
        %v3590 = vsub.f32 %v1652, %v3589
        %3591 = vmatpush.msra.mxu0 %v3590
        %v3592 = vand.u32 %v1649, 4294901760
        %v3593 = vsub.f32 %v1649, %v3592
        %3594 = vmatpush.msra.mxu0 %v3593
        %v3595 = vand.u32 %v1646, 4294901760
        %v3596 = vsub.f32 %v1646, %v3595
        %3597 = vmatpush.msra.mxu0 %v3596
        %v3598 = vand.u32 %v1643, 4294901760
        %v3599 = vsub.f32 %v1643, %v3598
        %3600 = vmatpush.msra.mxu0 %v3599
        %v3601 = vand.u32 %v1640, 4294901760
        %v3602 = vsub.f32 %v1640, %v3601
        %3603 = vmatpush.msra.mxu0 %v3602
        %v3604 = vand.u32 %v1637, 4294901760
        %v3605 = vsub.f32 %v1637, %v3604
        %3606 = vmatpush.msra.mxu0 %v3605
        %v3607 = vand.u32 %v1634, 4294901760
        %v3608 = vsub.f32 %v1634, %v3607
        %3609 = vmatpush.msra.mxu0 %v3608
        %v3610 = vand.u32 %v1631, 4294901760
        %v3611 = vsub.f32 %v1631, %v3610
        %3612 = vmatpush.msra.mxu0 %v3611
        %v3613 = vand.u32 %v1628, 4294901760
        %v3614 = vsub.f32 %v1628, %v3613
        %3615 = vmatpush.msra.mxu0 %v3614
        %v3616 = vand.u32 %v1625, 4294901760
        %v3617 = vsub.f32 %v1625, %v3616
        %3618 = vmatpush.msra.mxu0 %v3617
        %v3619 = vand.u32 %v1622, 4294901760
        %v3620 = vsub.f32 %v1622, %v3619
        %3621 = vmatpush.msra.mxu0 %v3620
        %v3622 = vand.u32 %v1619, 4294901760
        %v3623 = vsub.f32 %v1619, %v3622
        %3624 = vmatpush.msra.mxu0 %v3623
        %v3625 = vand.u32 %v1616, 4294901760
        %v3626 = vsub.f32 %v1616, %v3625
        %3627 = vmatpush.msra.mxu0 %v3626
        %v3628 = vand.u32 %v1613, 4294901760
        %v3629 = vsub.f32 %v1613, %v3628
        %3630 = vmatpush.msra.mxu0 %v3629
        %v3631 = vand.u32 %v2746, 4294901760
        %v3632 = vsub.f32 %v2746, %v3631
        %3633 = vmatmul.f32.gmra.mxu0 %v3632
        %v3634 = vpop.f32.mrf.mxu0
        %v3635 = vadd.f32 %v3581, %v3634
        %3636 = vdwg.mxu0
        %v3637 = vand.u32 %v1658, 4294901760
        %3638 = vmatpush.msra.mxu0 %v3637
        %v3639 = vand.u32 %v1655, 4294901760
        %3640 = vmatpush.msra.mxu0 %v3639
        %v3641 = vand.u32 %v1652, 4294901760
        %3642 = vmatpush.msra.mxu0 %v3641
        %v3643 = vand.u32 %v1649, 4294901760
        %3644 = vmatpush.msra.mxu0 %v3643
        %v3645 = vand.u32 %v1646, 4294901760
        %3646 = vmatpush.msra.mxu0 %v3645
        %v3647 = vand.u32 %v1643, 4294901760
        %3648 = vmatpush.msra.mxu0 %v3647
        %v3649 = vand.u32 %v1640, 4294901760
        %3650 = vmatpush.msra.mxu0 %v3649
        %v3651 = vand.u32 %v1637, 4294901760
        %3652 = vmatpush.msra.mxu0 %v3651
        %v3653 = vand.u32 %v1634, 4294901760
        %3654 = vmatpush.msra.mxu0 %v3653
        %v3655 = vand.u32 %v1631, 4294901760
        %3656 = vmatpush.msra.mxu0 %v3655
        %v3657 = vand.u32 %v1628, 4294901760
        %3658 = vmatpush.msra.mxu0 %v3657
        %v3659 = vand.u32 %v1625, 4294901760
        %3660 = vmatpush.msra.mxu0 %v3659
        %v3661 = vand.u32 %v1622, 4294901760
        %3662 = vmatpush.msra.mxu0 %v3661
        %v3663 = vand.u32 %v1619, 4294901760
        %3664 = vmatpush.msra.mxu0 %v3663
        %v3665 = vand.u32 %v1616, 4294901760
        %3666 = vmatpush.msra.mxu0 %v3665
        %v3667 = vand.u32 %v1613, 4294901760
        %3668 = vmatpush.msra.mxu0 %v3667
        %v3669 = vand.u32 %v2746, 4294901760
        %v3670 = vsub.f32 %v2746, %v3669
        %v3671 = vand.u32 %v3670, 4294901760
        %3672 = vmatmul.f32.gmra.mxu0 %v3671
        %v3673 = vpop.f32.mrf.mxu0
        %v3674 = vadd.f32 %v3635, %v3673
        %3675 = vdwg.mxu0
        %v3676 = vand.u32 %v1658, 4294901760
        %v3677 = vsub.f32 %v1658, %v3676
        %v3678 = vand.u32 %v3677, 4294901760
        %3679 = vmatpush.msra.mxu0 %v3678
        %v3680 = vand.u32 %v1655, 4294901760
        %v3681 = vsub.f32 %v1655, %v3680
        %v3682 = vand.u32 %v3681, 4294901760
        %3683 = vmatpush.msra.mxu0 %v3682
        %v3684 = vand.u32 %v1652, 4294901760
        %v3685 = vsub.f32 %v1652, %v3684
        %v3686 = vand.u32 %v3685, 4294901760
        %3687 = vmatpush.msra.mxu0 %v3686
        %v3688 = vand.u32 %v1649, 4294901760
        %v3689 = vsub.f32 %v1649, %v3688
        %v3690 = vand.u32 %v3689, 4294901760
        %3691 = vmatpush.msra.mxu0 %v3690
        %v3692 = vand.u32 %v1646, 4294901760
        %v3693 = vsub.f32 %v1646, %v3692
        %v3694 = vand.u32 %v3693, 4294901760
        %3695 = vmatpush.msra.mxu0 %v3694
        %v3696 = vand.u32 %v1643, 4294901760
        %v3697 = vsub.f32 %v1643, %v3696
        %v3698 = vand.u32 %v3697, 4294901760
        %3699 = vmatpush.msra.mxu0 %v3698
        %v3700 = vand.u32 %v1640, 4294901760
        %v3701 = vsub.f32 %v1640, %v3700
        %v3702 = vand.u32 %v3701, 4294901760
        %3703 = vmatpush.msra.mxu0 %v3702
        %v3704 = vand.u32 %v1637, 4294901760
        %v3705 = vsub.f32 %v1637, %v3704
        %v3706 = vand.u32 %v3705, 4294901760
        %3707 = vmatpush.msra.mxu0 %v3706
        %v3708 = vand.u32 %v1634, 4294901760
        %v3709 = vsub.f32 %v1634, %v3708
        %v3710 = vand.u32 %v3709, 4294901760
        %3711 = vmatpush.msra.mxu0 %v3710
        %v3712 = vand.u32 %v1631, 4294901760
        %v3713 = vsub.f32 %v1631, %v3712
        %v3714 = vand.u32 %v3713, 4294901760
        %3715 = vmatpush.msra.mxu0 %v3714
        %v3716 = vand.u32 %v1628, 4294901760
        %v3717 = vsub.f32 %v1628, %v3716
        %v3718 = vand.u32 %v3717, 4294901760
        %3719 = vmatpush.msra.mxu0 %v3718
        %v3720 = vand.u32 %v1625, 4294901760
        %v3721 = vsub.f32 %v1625, %v3720
        %v3722 = vand.u32 %v3721, 4294901760
        %3723 = vmatpush.msra.mxu0 %v3722
        %v3724 = vand.u32 %v1622, 4294901760
        %v3725 = vsub.f32 %v1622, %v3724
        %v3726 = vand.u32 %v3725, 4294901760
        %3727 = vmatpush.msra.mxu0 %v3726
        %v3728 = vand.u32 %v1619, 4294901760
        %v3729 = vsub.f32 %v1619, %v3728
        %v3730 = vand.u32 %v3729, 4294901760
        %3731 = vmatpush.msra.mxu0 %v3730
        %v3732 = vand.u32 %v1616, 4294901760
        %v3733 = vsub.f32 %v1616, %v3732
        %v3734 = vand.u32 %v3733, 4294901760
        %3735 = vmatpush.msra.mxu0 %v3734
        %v3736 = vand.u32 %v1613, 4294901760
        %v3737 = vsub.f32 %v1613, %v3736
        %v3738 = vand.u32 %v3737, 4294901760
        %3739 = vmatpush.msra.mxu0 %v3738
        %v3740 = vand.u32 %v2746, 4294901760
        %3741 = vmatmul.f32.gmra.mxu0 %v3740
        %v3742 = vpop.f32.mrf.mxu0
        %v3743 = vadd.f32 %v3674, %v3742
        %3744 = vdwg.mxu0
        %v3745 = vand.u32 %v1658, 4294901760
        %3746 = vmatpush.msra.mxu0 %v3745
        %v3747 = vand.u32 %v1655, 4294901760
        %3748 = vmatpush.msra.mxu0 %v3747
        %v3749 = vand.u32 %v1652, 4294901760
        %3750 = vmatpush.msra.mxu0 %v3749
        %v3751 = vand.u32 %v1649, 4294901760
        %3752 = vmatpush.msra.mxu0 %v3751
        %v3753 = vand.u32 %v1646, 4294901760
        %3754 = vmatpush.msra.mxu0 %v3753
        %v3755 = vand.u32 %v1643, 4294901760
        %3756 = vmatpush.msra.mxu0 %v3755
        %v3757 = vand.u32 %v1640, 4294901760
        %3758 = vmatpush.msra.mxu0 %v3757
        %v3759 = vand.u32 %v1637, 4294901760
        %3760 = vmatpush.msra.mxu0 %v3759
        %v3761 = vand.u32 %v1634, 4294901760
        %3762 = vmatpush.msra.mxu0 %v3761
        %v3763 = vand.u32 %v1631, 4294901760
        %3764 = vmatpush.msra.mxu0 %v3763
        %v3765 = vand.u32 %v1628, 4294901760
        %3766 = vmatpush.msra.mxu0 %v3765
        %v3767 = vand.u32 %v1625, 4294901760
        %3768 = vmatpush.msra.mxu0 %v3767
        %v3769 = vand.u32 %v1622, 4294901760
        %3770 = vmatpush.msra.mxu0 %v3769
        %v3771 = vand.u32 %v1619, 4294901760
        %3772 = vmatpush.msra.mxu0 %v3771
        %v3773 = vand.u32 %v1616, 4294901760
        %3774 = vmatpush.msra.mxu0 %v3773
        %v3775 = vand.u32 %v1613, 4294901760
        %3776 = vmatpush.msra.mxu0 %v3775
        %v3777 = vand.u32 %v2746, 4294901760
        %3778 = vmatmul.f32.gmra.mxu0 %v3777
        %v3779 = vpop.f32.mrf.mxu0
        %v3780 = vadd.f32 %v3743, %v3779
        %3781 = vdwg.mxu0
        %v3782 = vadd.f32 %v2756, %v3098
        %v3783 = vxor.u32 %v3782, 2147483648
        %v3784 = vmul.f32 %v3783, 1.442695
        %v3785 = vpow.pop %v3784
        %v3786 = vadd.f32 %v3785, 1.0
        %v3787 = vrcp.pop %v3786
        %v3788 = vmul.f32 %v3786, %v3787
        %v3789 = vsub.f32 1.0, %v3788
        %v3790 = vmul.f32 %v3787, %v3789
        %v3791 = vadd.f32 %v3787, %v3790
        %vm3792 = vweird.f32 %v3786
        %vm3793 = vweird.f32 %v3787
        %vm3794 = vmor %vm3792, %vm3793
        %v3795 = vsel %vm3794, %v3787, %v3791
        %v3796 = vand.u32 2147483647, %v3786
        %vm3797 = vcmp.eq.f32.partialorder %v3796, 8.507059e+37
        %v3798 = vand.u32 %v3786, 2147483648
        %v3799 = vor.u32 1.1754944e-38, %v3798
        %v3800 = vsel %vm3797, %v3799, %v3795
        %v3801 = vmul.f32 1.0, %v3800
        %v3802 = vadd.f32 %v2757, %v3439
        %v3803 = vxor.u32 %v3802, 2147483648
        %v3804 = vmul.f32 %v3803, 1.442695
        %v3805 = vpow.pop %v3804
        %v3806 = vadd.f32 %v3805, 1.0
        %v3807 = vrcp.pop %v3806
        %v3808 = vmul.f32 %v3806, %v3807
        %v3809 = vsub.f32 1.0, %v3808
        %v3810 = vmul.f32 %v3807, %v3809
        %v3811 = vadd.f32 %v3807, %v3810
        %vm3812 = vweird.f32 %v3806
        %vm3813 = vweird.f32 %v3807
        %vm3814 = vmor %vm3812, %vm3813
        %v3815 = vsel %vm3814, %v3807, %v3811
        %v3816 = vand.u32 2147483647, %v3806
        %vm3817 = vcmp.eq.f32.partialorder %v3816, 8.507059e+37
        %v3818 = vand.u32 %v3806, 2147483648
        %v3819 = vor.u32 1.1754944e-38, %v3818
        %v3820 = vsel %vm3817, %v3819, %v3815
        %v3821 = vmul.f32 1.0, %v3820
        %v3822 = vmul.f32 %v3801, %v3780
        %v3823 = vadd.f32 %v2758, %v3822
        %v3824 = vtanh.pop %v3823
        %v3825 = vsub.f32 1.0, %v3821
        %v3826 = vmul.f32 %v3825, %v3824
        %v3827 = vmul.f32 %v3821, %v2746
        %v3828 = vadd.f32 %v3826, %v3827
        %s3829 = scalar_lea.vmem %s424, %s2750 [#allocation9]
        %3830 = vst [vmem:[%s3829] sm:$0xff] %v3828
        %s3831 = ssub.s32 2, %s31
        %s3832 = smul.u32 %s3831, 8
        %s3833 = sshra.s32 %s3832, 3
        %s3834 = sand.u32 %s3832, 7
        %s3835 = smul.u32 %s3833, 3
        %s3836 = smul.addr %s3835, 8
        %s3837 = scalar_lea.vmem [#allocation2], %s3836
        %v3838 = vld [vmem:[%s3837] sm:$0xff]
        %v3839 = vld [vmem:[%s3837 + $0x8] sm:$0xff]
        %v3840 = vld [vmem:[%s3837 + $0x10] sm:$0xff]
        %v3841 = vand.u32 %v1656, 4294901760
        %3842 = vmatpush.msra.mxu0 %v3841
        %v3843 = vand.u32 %v1653, 4294901760
        %3844 = vmatpush.msra.mxu0 %v3843
        %v3845 = vand.u32 %v1650, 4294901760
        %3846 = vmatpush.msra.mxu0 %v3845
        %v3847 = vand.u32 %v1647, 4294901760
        %3848 = vmatpush.msra.mxu0 %v3847
        %v3849 = vand.u32 %v1644, 4294901760
        %3850 = vmatpush.msra.mxu0 %v3849
        %v3851 = vand.u32 %v1641, 4294901760
        %3852 = vmatpush.msra.mxu0 %v3851
        %v3853 = vand.u32 %v1638, 4294901760
        %3854 = vmatpush.msra.mxu0 %v3853
        %v3855 = vand.u32 %v1635, 4294901760
        %3856 = vmatpush.msra.mxu0 %v3855
        %v3857 = vand.u32 %v1632, 4294901760
        %3858 = vmatpush.msra.mxu0 %v3857
        %v3859 = vand.u32 %v1629, 4294901760
        %3860 = vmatpush.msra.mxu0 %v3859
        %v3861 = vand.u32 %v1626, 4294901760
        %3862 = vmatpush.msra.mxu0 %v3861
        %v3863 = vand.u32 %v1623, 4294901760
        %3864 = vmatpush.msra.mxu0 %v3863
        %v3865 = vand.u32 %v1620, 4294901760
        %3866 = vmatpush.msra.mxu0 %v3865
        %v3867 = vand.u32 %v1617, 4294901760
        %3868 = vmatpush.msra.mxu0 %v3867
        %v3869 = vand.u32 %v1614, 4294901760
        %3870 = vmatpush.msra.mxu0 %v3869
        %v3871 = vand.u32 %v1611, 4294901760
        %3872 = vmatpush.msra.mxu0 %v3871
        %v3873 = vand.u32 %v3828, 4294901760
        %v3874 = vsub.f32 %v3828, %v3873
        %v3875 = vand.u32 %v3874, 4294901760
        %v3876 = vsub.f32 %v3874, %v3875
        %v3877 = vand.u32 %v3876, 4294901760
        %3878 = vmatmul.f32.gmra.mxu0 %v3877
        %v3879 = vpop.f32.mrf.mxu0
        %v3880 = vadd.f32 %v1671, %v3879
        %3881 = vdwg.mxu0
        %v3882 = vand.u32 %v1656, 4294901760
        %v3883 = vsub.f32 %v1656, %v3882
        %v3884 = vand.u32 %v3883, 4294901760
        %v3885 = vsub.f32 %v3883, %v3884
        %v3886 = vand.u32 %v3885, 4294901760
        %3887 = vmatpush.msra.mxu0 %v3886
        %v3888 = vand.u32 %v1653, 4294901760
        %v3889 = vsub.f32 %v1653, %v3888
        %v3890 = vand.u32 %v3889, 4294901760
        %v3891 = vsub.f32 %v3889, %v3890
        %v3892 = vand.u32 %v3891, 4294901760
        %3893 = vmatpush.msra.mxu0 %v3892
        %v3894 = vand.u32 %v1650, 4294901760
        %v3895 = vsub.f32 %v1650, %v3894
        %v3896 = vand.u32 %v3895, 4294901760
        %v3897 = vsub.f32 %v3895, %v3896
        %v3898 = vand.u32 %v3897, 4294901760
        %3899 = vmatpush.msra.mxu0 %v3898
        %v3900 = vand.u32 %v1647, 4294901760
        %v3901 = vsub.f32 %v1647, %v3900
        %v3902 = vand.u32 %v3901, 4294901760
        %v3903 = vsub.f32 %v3901, %v3902
        %v3904 = vand.u32 %v3903, 4294901760
        %3905 = vmatpush.msra.mxu0 %v3904
        %v3906 = vand.u32 %v1644, 4294901760
        %v3907 = vsub.f32 %v1644, %v3906
        %v3908 = vand.u32 %v3907, 4294901760
        %v3909 = vsub.f32 %v3907, %v3908
        %v3910 = vand.u32 %v3909, 4294901760
        %3911 = vmatpush.msra.mxu0 %v3910
        %v3912 = vand.u32 %v1641, 4294901760
        %v3913 = vsub.f32 %v1641, %v3912
        %v3914 = vand.u32 %v3913, 4294901760
        %v3915 = vsub.f32 %v3913, %v3914
        %v3916 = vand.u32 %v3915, 4294901760
        %3917 = vmatpush.msra.mxu0 %v3916
        %v3918 = vand.u32 %v1638, 4294901760
        %v3919 = vsub.f32 %v1638, %v3918
        %v3920 = vand.u32 %v3919, 4294901760
        %v3921 = vsub.f32 %v3919, %v3920
        %v3922 = vand.u32 %v3921, 4294901760
        %3923 = vmatpush.msra.mxu0 %v3922
        %v3924 = vand.u32 %v1635, 4294901760
        %v3925 = vsub.f32 %v1635, %v3924
        %v3926 = vand.u32 %v3925, 4294901760
        %v3927 = vsub.f32 %v3925, %v3926
        %v3928 = vand.u32 %v3927, 4294901760
        %3929 = vmatpush.msra.mxu0 %v3928
        %v3930 = vand.u32 %v1632, 4294901760
        %v3931 = vsub.f32 %v1632, %v3930
        %v3932 = vand.u32 %v3931, 4294901760
        %v3933 = vsub.f32 %v3931, %v3932
        %v3934 = vand.u32 %v3933, 4294901760
        %3935 = vmatpush.msra.mxu0 %v3934
        %v3936 = vand.u32 %v1629, 4294901760
        %v3937 = vsub.f32 %v1629, %v3936
        %v3938 = vand.u32 %v3937, 4294901760
        %v3939 = vsub.f32 %v3937, %v3938
        %v3940 = vand.u32 %v3939, 4294901760
        %3941 = vmatpush.msra.mxu0 %v3940
        %v3942 = vand.u32 %v1626, 4294901760
        %v3943 = vsub.f32 %v1626, %v3942
        %v3944 = vand.u32 %v3943, 4294901760
        %v3945 = vsub.f32 %v3943, %v3944
        %v3946 = vand.u32 %v3945, 4294901760
        %3947 = vmatpush.msra.mxu0 %v3946
        %v3948 = vand.u32 %v1623, 4294901760
        %v3949 = vsub.f32 %v1623, %v3948
        %v3950 = vand.u32 %v3949, 4294901760
        %v3951 = vsub.f32 %v3949, %v3950
        %v3952 = vand.u32 %v3951, 4294901760
        %3953 = vmatpush.msra.mxu0 %v3952
        %v3954 = vand.u32 %v1620, 4294901760
        %v3955 = vsub.f32 %v1620, %v3954
        %v3956 = vand.u32 %v3955, 4294901760
        %v3957 = vsub.f32 %v3955, %v3956
        %v3958 = vand.u32 %v3957, 4294901760
        %3959 = vmatpush.msra.mxu0 %v3958
        %v3960 = vand.u32 %v1617, 4294901760
        %v3961 = vsub.f32 %v1617, %v3960
        %v3962 = vand.u32 %v3961, 4294901760
        %v3963 = vsub.f32 %v3961, %v3962
        %v3964 = vand.u32 %v3963, 4294901760
        %3965 = vmatpush.msra.mxu0 %v3964
        %v3966 = vand.u32 %v1614, 4294901760
        %v3967 = vsub.f32 %v1614, %v3966
        %v3968 = vand.u32 %v3967, 4294901760
        %v3969 = vsub.f32 %v3967, %v3968
        %v3970 = vand.u32 %v3969, 4294901760
        %3971 = vmatpush.msra.mxu0 %v3970
        %v3972 = vand.u32 %v1611, 4294901760
        %v3973 = vsub.f32 %v1611, %v3972
        %v3974 = vand.u32 %v3973, 4294901760
        %v3975 = vsub.f32 %v3973, %v3974
        %v3976 = vand.u32 %v3975, 4294901760
        %3977 = vmatpush.msra.mxu0 %v3976
        %v3978 = vand.u32 %v3828, 4294901760
        %3979 = vmatmul.f32.gmra.mxu0 %v3978
        %v3980 = vpop.f32.mrf.mxu0
        %v3981 = vadd.f32 %v3880, %v3980
        %3982 = vdwg.mxu0
        %v3983 = vand.u32 %v1656, 4294901760
        %v3984 = vsub.f32 %v1656, %v3983
        %3985 = vmatpush.msra.mxu0 %v3984
        %v3986 = vand.u32 %v1653, 4294901760
        %v3987 = vsub.f32 %v1653, %v3986
        %3988 = vmatpush.msra.mxu0 %v3987
        %v3989 = vand.u32 %v1650, 4294901760
        %v3990 = vsub.f32 %v1650, %v3989
        %3991 = vmatpush.msra.mxu0 %v3990
        %v3992 = vand.u32 %v1647, 4294901760
        %v3993 = vsub.f32 %v1647, %v3992
        %3994 = vmatpush.msra.mxu0 %v3993
        %v3995 = vand.u32 %v1644, 4294901760
        %v3996 = vsub.f32 %v1644, %v3995
        %3997 = vmatpush.msra.mxu0 %v3996
        %v3998 = vand.u32 %v1641, 4294901760
        %v3999 = vsub.f32 %v1641, %v3998
        %4000 = vmatpush.msra.mxu0 %v3999
        %v4001 = vand.u32 %v1638, 4294901760
        %v4002 = vsub.f32 %v1638, %v4001
        %4003 = vmatpush.msra.mxu0 %v4002
        %v4004 = vand.u32 %v1635, 4294901760
        %v4005 = vsub.f32 %v1635, %v4004
        %4006 = vmatpush.msra.mxu0 %v4005
        %v4007 = vand.u32 %v1632, 4294901760
        %v4008 = vsub.f32 %v1632, %v4007
        %4009 = vmatpush.msra.mxu0 %v4008
        %v4010 = vand.u32 %v1629, 4294901760
        %v4011 = vsub.f32 %v1629, %v4010
        %4012 = vmatpush.msra.mxu0 %v4011
        %v4013 = vand.u32 %v1626, 4294901760
        %v4014 = vsub.f32 %v1626, %v4013
        %4015 = vmatpush.msra.mxu0 %v4014
        %v4016 = vand.u32 %v1623, 4294901760
        %v4017 = vsub.f32 %v1623, %v4016
        %4018 = vmatpush.msra.mxu0 %v4017
        %v4019 = vand.u32 %v1620, 4294901760
        %v4020 = vsub.f32 %v1620, %v4019
        %4021 = vmatpush.msra.mxu0 %v4020
        %v4022 = vand.u32 %v1617, 4294901760
        %v4023 = vsub.f32 %v1617, %v4022
        %4024 = vmatpush.msra.mxu0 %v4023
        %v4025 = vand.u32 %v1614, 4294901760
        %v4026 = vsub.f32 %v1614, %v4025
        %4027 = vmatpush.msra.mxu0 %v4026
        %v4028 = vand.u32 %v1611, 4294901760
        %v4029 = vsub.f32 %v1611, %v4028
        %4030 = vmatpush.msra.mxu0 %v4029
        %v4031 = vand.u32 %v3828, 4294901760
        %v4032 = vsub.f32 %v3828, %v4031
        %4033 = vmatmul.f32.gmra.mxu0 %v4032
        %v4034 = vpop.f32.mrf.mxu0
        %v4035 = vadd.f32 %v3981, %v4034
        %4036 = vdwg.mxu0
        %v4037 = vand.u32 %v1656, 4294901760
        %4038 = vmatpush.msra.mxu0 %v4037
        %v4039 = vand.u32 %v1653, 4294901760
        %4040 = vmatpush.msra.mxu0 %v4039
        %v4041 = vand.u32 %v1650, 4294901760
        %4042 = vmatpush.msra.mxu0 %v4041
        %v4043 = vand.u32 %v1647, 4294901760
        %4044 = vmatpush.msra.mxu0 %v4043
        %v4045 = vand.u32 %v1644, 4294901760
        %4046 = vmatpush.msra.mxu0 %v4045
        %v4047 = vand.u32 %v1641, 4294901760
        %4048 = vmatpush.msra.mxu0 %v4047
        %v4049 = vand.u32 %v1638, 4294901760
        %4050 = vmatpush.msra.mxu0 %v4049
        %v4051 = vand.u32 %v1635, 4294901760
        %4052 = vmatpush.msra.mxu0 %v4051
        %v4053 = vand.u32 %v1632, 4294901760
        %4054 = vmatpush.msra.mxu0 %v4053
        %v4055 = vand.u32 %v1629, 4294901760
        %4056 = vmatpush.msra.mxu0 %v4055
        %v4057 = vand.u32 %v1626, 4294901760
        %4058 = vmatpush.msra.mxu0 %v4057
        %v4059 = vand.u32 %v1623, 4294901760
        %4060 = vmatpush.msra.mxu0 %v4059
        %v4061 = vand.u32 %v1620, 4294901760
        %4062 = vmatpush.msra.mxu0 %v4061
        %v4063 = vand.u32 %v1617, 4294901760
        %4064 = vmatpush.msra.mxu0 %v4063
        %v4065 = vand.u32 %v1614, 4294901760
        %4066 = vmatpush.msra.mxu0 %v4065
        %v4067 = vand.u32 %v1611, 4294901760
        %4068 = vmatpush.msra.mxu0 %v4067
        %v4069 = vand.u32 %v3828, 4294901760
        %v4070 = vsub.f32 %v3828, %v4069
        %v4071 = vand.u32 %v4070, 4294901760
        %4072 = vmatmul.f32.gmra.mxu0 %v4071
        %v4073 = vpop.f32.mrf.mxu0
        %v4074 = vadd.f32 %v4035, %v4073
        %4075 = vdwg.mxu0
        %v4076 = vand.u32 %v1656, 4294901760
        %v4077 = vsub.f32 %v1656, %v4076
        %v4078 = vand.u32 %v4077, 4294901760
        %4079 = vmatpush.msra.mxu0 %v4078
        %v4080 = vand.u32 %v1653, 4294901760
        %v4081 = vsub.f32 %v1653, %v4080
        %v4082 = vand.u32 %v4081, 4294901760
        %4083 = vmatpush.msra.mxu0 %v4082
        %v4084 = vand.u32 %v1650, 4294901760
        %v4085 = vsub.f32 %v1650, %v4084
        %v4086 = vand.u32 %v4085, 4294901760
        %4087 = vmatpush.msra.mxu0 %v4086
        %v4088 = vand.u32 %v1647, 4294901760
        %v4089 = vsub.f32 %v1647, %v4088
        %v4090 = vand.u32 %v4089, 4294901760
        %4091 = vmatpush.msra.mxu0 %v4090
        %v4092 = vand.u32 %v1644, 4294901760
        %v4093 = vsub.f32 %v1644, %v4092
        %v4094 = vand.u32 %v4093, 4294901760
        %4095 = vmatpush.msra.mxu0 %v4094
        %v4096 = vand.u32 %v1641, 4294901760
        %v4097 = vsub.f32 %v1641, %v4096
        %v4098 = vand.u32 %v4097, 4294901760
        %4099 = vmatpush.msra.mxu0 %v4098
        %v4100 = vand.u32 %v1638, 4294901760
        %v4101 = vsub.f32 %v1638, %v4100
        %v4102 = vand.u32 %v4101, 4294901760
        %4103 = vmatpush.msra.mxu0 %v4102
        %v4104 = vand.u32 %v1635, 4294901760
        %v4105 = vsub.f32 %v1635, %v4104
        %v4106 = vand.u32 %v4105, 4294901760
        %4107 = vmatpush.msra.mxu0 %v4106
        %v4108 = vand.u32 %v1632, 4294901760
        %v4109 = vsub.f32 %v1632, %v4108
        %v4110 = vand.u32 %v4109, 4294901760
        %4111 = vmatpush.msra.mxu0 %v4110
        %v4112 = vand.u32 %v1629, 4294901760
        %v4113 = vsub.f32 %v1629, %v4112
        %v4114 = vand.u32 %v4113, 4294901760
        %4115 = vmatpush.msra.mxu0 %v4114
        %v4116 = vand.u32 %v1626, 4294901760
        %v4117 = vsub.f32 %v1626, %v4116
        %v4118 = vand.u32 %v4117, 4294901760
        %4119 = vmatpush.msra.mxu0 %v4118
        %v4120 = vand.u32 %v1623, 4294901760
        %v4121 = vsub.f32 %v1623, %v4120
        %v4122 = vand.u32 %v4121, 4294901760
        %4123 = vmatpush.msra.mxu0 %v4122
        %v4124 = vand.u32 %v1620, 4294901760
        %v4125 = vsub.f32 %v1620, %v4124
        %v4126 = vand.u32 %v4125, 4294901760
        %4127 = vmatpush.msra.mxu0 %v4126
        %v4128 = vand.u32 %v1617, 4294901760
        %v4129 = vsub.f32 %v1617, %v4128
        %v4130 = vand.u32 %v4129, 4294901760
        %4131 = vmatpush.msra.mxu0 %v4130
        %v4132 = vand.u32 %v1614, 4294901760
        %v4133 = vsub.f32 %v1614, %v4132
        %v4134 = vand.u32 %v4133, 4294901760
        %4135 = vmatpush.msra.mxu0 %v4134
        %v4136 = vand.u32 %v1611, 4294901760
        %v4137 = vsub.f32 %v1611, %v4136
        %v4138 = vand.u32 %v4137, 4294901760
        %4139 = vmatpush.msra.mxu0 %v4138
        %v4140 = vand.u32 %v3828, 4294901760
        %4141 = vmatmul.f32.gmra.mxu0 %v4140
        %v4142 = vpop.f32.mrf.mxu0
        %v4143 = vadd.f32 %v4074, %v4142
        %4144 = vdwg.mxu0
        %v4145 = vand.u32 %v1656, 4294901760
        %4146 = vmatpush.msra.mxu0 %v4145
        %v4147 = vand.u32 %v1653, 4294901760
        %4148 = vmatpush.msra.mxu0 %v4147
        %v4149 = vand.u32 %v1650, 4294901760
        %4150 = vmatpush.msra.mxu0 %v4149
        %v4151 = vand.u32 %v1647, 4294901760
        %4152 = vmatpush.msra.mxu0 %v4151
        %v4153 = vand.u32 %v1644, 4294901760
        %4154 = vmatpush.msra.mxu0 %v4153
        %v4155 = vand.u32 %v1641, 4294901760
        %4156 = vmatpush.msra.mxu0 %v4155
        %v4157 = vand.u32 %v1638, 4294901760
        %4158 = vmatpush.msra.mxu0 %v4157
        %v4159 = vand.u32 %v1635, 4294901760
        %4160 = vmatpush.msra.mxu0 %v4159
        %v4161 = vand.u32 %v1632, 4294901760
        %4162 = vmatpush.msra.mxu0 %v4161
        %v4163 = vand.u32 %v1629, 4294901760
        %4164 = vmatpush.msra.mxu0 %v4163
        %v4165 = vand.u32 %v1626, 4294901760
        %4166 = vmatpush.msra.mxu0 %v4165
        %v4167 = vand.u32 %v1623, 4294901760
        %4168 = vmatpush.msra.mxu0 %v4167
        %v4169 = vand.u32 %v1620, 4294901760
        %4170 = vmatpush.msra.mxu0 %v4169
        %v4171 = vand.u32 %v1617, 4294901760
        %4172 = vmatpush.msra.mxu0 %v4171
        %v4173 = vand.u32 %v1614, 4294901760
        %4174 = vmatpush.msra.mxu0 %v4173
        %v4175 = vand.u32 %v1611, 4294901760
        %4176 = vmatpush.msra.mxu0 %v4175
        %v4177 = vand.u32 %v3828, 4294901760
        %4178 = vmatmul.f32.gmra.mxu0 %v4177
        %v4179 = vpop.f32.mrf.mxu0
        %v4180 = vadd.f32 %v4143, %v4179
        %4181 = vdwg.mxu0
        %v4182 = vand.u32 %v1657, 4294901760
        %4183 = vmatpush.msra.mxu0 %v4182
        %v4184 = vand.u32 %v1654, 4294901760
        %4185 = vmatpush.msra.mxu0 %v4184
        %v4186 = vand.u32 %v1651, 4294901760
        %4187 = vmatpush.msra.mxu0 %v4186
        %v4188 = vand.u32 %v1648, 4294901760
        %4189 = vmatpush.msra.mxu0 %v4188
        %v4190 = vand.u32 %v1645, 4294901760
        %4191 = vmatpush.msra.mxu0 %v4190
        %v4192 = vand.u32 %v1642, 4294901760
        %4193 = vmatpush.msra.mxu0 %v4192
        %v4194 = vand.u32 %v1639, 4294901760
        %4195 = vmatpush.msra.mxu0 %v4194
        %v4196 = vand.u32 %v1636, 4294901760
        %4197 = vmatpush.msra.mxu0 %v4196
        %v4198 = vand.u32 %v1633, 4294901760
        %4199 = vmatpush.msra.mxu0 %v4198
        %v4200 = vand.u32 %v1630, 4294901760
        %4201 = vmatpush.msra.mxu0 %v4200
        %v4202 = vand.u32 %v1627, 4294901760
        %4203 = vmatpush.msra.mxu0 %v4202
        %v4204 = vand.u32 %v1624, 4294901760
        %4205 = vmatpush.msra.mxu0 %v4204
        %v4206 = vand.u32 %v1621, 4294901760
        %4207 = vmatpush.msra.mxu0 %v4206
        %v4208 = vand.u32 %v1618, 4294901760
        %4209 = vmatpush.msra.mxu0 %v4208
        %v4210 = vand.u32 %v1615, 4294901760
        %4211 = vmatpush.msra.mxu0 %v4210
        %v4212 = vand.u32 %v1612, 4294901760
        %4213 = vmatpush.msra.mxu0 %v4212
        %v4214 = vand.u32 %v3828, 4294901760
        %v4215 = vsub.f32 %v3828, %v4214
        %v4216 = vand.u32 %v4215, 4294901760
        %v4217 = vsub.f32 %v4215, %v4216
        %v4218 = vand.u32 %v4217, 4294901760
        %4219 = vmatmul.f32.gmra.mxu0 %v4218
        %v4220 = vpop.f32.mrf.mxu0
        %v4221 = vadd.f32 %v1672, %v4220
        %4222 = vdwg.mxu0
        %v4223 = vand.u32 %v1657, 4294901760
        %v4224 = vsub.f32 %v1657, %v4223
        %v4225 = vand.u32 %v4224, 4294901760
        %v4226 = vsub.f32 %v4224, %v4225
        %v4227 = vand.u32 %v4226, 4294901760
        %4228 = vmatpush.msra.mxu0 %v4227
        %v4229 = vand.u32 %v1654, 4294901760
        %v4230 = vsub.f32 %v1654, %v4229
        %v4231 = vand.u32 %v4230, 4294901760
        %v4232 = vsub.f32 %v4230, %v4231
        %v4233 = vand.u32 %v4232, 4294901760
        %4234 = vmatpush.msra.mxu0 %v4233
        %v4235 = vand.u32 %v1651, 4294901760
        %v4236 = vsub.f32 %v1651, %v4235
        %v4237 = vand.u32 %v4236, 4294901760
        %v4238 = vsub.f32 %v4236, %v4237
        %v4239 = vand.u32 %v4238, 4294901760
        %4240 = vmatpush.msra.mxu0 %v4239
        %v4241 = vand.u32 %v1648, 4294901760
        %v4242 = vsub.f32 %v1648, %v4241
        %v4243 = vand.u32 %v4242, 4294901760
        %v4244 = vsub.f32 %v4242, %v4243
        %v4245 = vand.u32 %v4244, 4294901760
        %4246 = vmatpush.msra.mxu0 %v4245
        %v4247 = vand.u32 %v1645, 4294901760
        %v4248 = vsub.f32 %v1645, %v4247
        %v4249 = vand.u32 %v4248, 4294901760
        %v4250 = vsub.f32 %v4248, %v4249
        %v4251 = vand.u32 %v4250, 4294901760
        %4252 = vmatpush.msra.mxu0 %v4251
        %v4253 = vand.u32 %v1642, 4294901760
        %v4254 = vsub.f32 %v1642, %v4253
        %v4255 = vand.u32 %v4254, 4294901760
        %v4256 = vsub.f32 %v4254, %v4255
        %v4257 = vand.u32 %v4256, 4294901760
        %4258 = vmatpush.msra.mxu0 %v4257
        %v4259 = vand.u32 %v1639, 4294901760
        %v4260 = vsub.f32 %v1639, %v4259
        %v4261 = vand.u32 %v4260, 4294901760
        %v4262 = vsub.f32 %v4260, %v4261
        %v4263 = vand.u32 %v4262, 4294901760
        %4264 = vmatpush.msra.mxu0 %v4263
        %v4265 = vand.u32 %v1636, 4294901760
        %v4266 = vsub.f32 %v1636, %v4265
        %v4267 = vand.u32 %v4266, 4294901760
        %v4268 = vsub.f32 %v4266, %v4267
        %v4269 = vand.u32 %v4268, 4294901760
        %4270 = vmatpush.msra.mxu0 %v4269
        %v4271 = vand.u32 %v1633, 4294901760
        %v4272 = vsub.f32 %v1633, %v4271
        %v4273 = vand.u32 %v4272, 4294901760
        %v4274 = vsub.f32 %v4272, %v4273
        %v4275 = vand.u32 %v4274, 4294901760
        %4276 = vmatpush.msra.mxu0 %v4275
        %v4277 = vand.u32 %v1630, 4294901760
        %v4278 = vsub.f32 %v1630, %v4277
        %v4279 = vand.u32 %v4278, 4294901760
        %v4280 = vsub.f32 %v4278, %v4279
        %v4281 = vand.u32 %v4280, 4294901760
        %4282 = vmatpush.msra.mxu0 %v4281
        %v4283 = vand.u32 %v1627, 4294901760
        %v4284 = vsub.f32 %v1627, %v4283
        %v4285 = vand.u32 %v4284, 4294901760
        %v4286 = vsub.f32 %v4284, %v4285
        %v4287 = vand.u32 %v4286, 4294901760
        %4288 = vmatpush.msra.mxu0 %v4287
        %v4289 = vand.u32 %v1624, 4294901760
        %v4290 = vsub.f32 %v1624, %v4289
        %v4291 = vand.u32 %v4290, 4294901760
        %v4292 = vsub.f32 %v4290, %v4291
        %v4293 = vand.u32 %v4292, 4294901760
        %4294 = vmatpush.msra.mxu0 %v4293
        %v4295 = vand.u32 %v1621, 4294901760
        %v4296 = vsub.f32 %v1621, %v4295
        %v4297 = vand.u32 %v4296, 4294901760
        %v4298 = vsub.f32 %v4296, %v4297
        %v4299 = vand.u32 %v4298, 4294901760
        %4300 = vmatpush.msra.mxu0 %v4299
        %v4301 = vand.u32 %v1618, 4294901760
        %v4302 = vsub.f32 %v1618, %v4301
        %v4303 = vand.u32 %v4302, 4294901760
        %v4304 = vsub.f32 %v4302, %v4303
        %v4305 = vand.u32 %v4304, 4294901760
        %4306 = vmatpush.msra.mxu0 %v4305
        %v4307 = vand.u32 %v1615, 4294901760
        %v4308 = vsub.f32 %v1615, %v4307
        %v4309 = vand.u32 %v4308, 4294901760
        %v4310 = vsub.f32 %v4308, %v4309
        %v4311 = vand.u32 %v4310, 4294901760
        %4312 = vmatpush.msra.mxu0 %v4311
        %v4313 = vand.u32 %v1612, 4294901760
        %v4314 = vsub.f32 %v1612, %v4313
        %v4315 = vand.u32 %v4314, 4294901760
        %v4316 = vsub.f32 %v4314, %v4315
        %v4317 = vand.u32 %v4316, 4294901760
        %4318 = vmatpush.msra.mxu0 %v4317
        %v4319 = vand.u32 %v3828, 4294901760
        %4320 = vmatmul.f32.gmra.mxu0 %v4319
        %v4321 = vpop.f32.mrf.mxu0
        %v4322 = vadd.f32 %v4221, %v4321
        %4323 = vdwg.mxu0
        %v4324 = vand.u32 %v1657, 4294901760
        %v4325 = vsub.f32 %v1657, %v4324
        %4326 = vmatpush.msra.mxu0 %v4325
        %v4327 = vand.u32 %v1654, 4294901760
        %v4328 = vsub.f32 %v1654, %v4327
        %4329 = vmatpush.msra.mxu0 %v4328
        %v4330 = vand.u32 %v1651, 4294901760
        %v4331 = vsub.f32 %v1651, %v4330
        %4332 = vmatpush.msra.mxu0 %v4331
        %v4333 = vand.u32 %v1648, 4294901760
        %v4334 = vsub.f32 %v1648, %v4333
        %4335 = vmatpush.msra.mxu0 %v4334
        %v4336 = vand.u32 %v1645, 4294901760
        %v4337 = vsub.f32 %v1645, %v4336
        %4338 = vmatpush.msra.mxu0 %v4337
        %v4339 = vand.u32 %v1642, 4294901760
        %v4340 = vsub.f32 %v1642, %v4339
        %4341 = vmatpush.msra.mxu0 %v4340
        %v4342 = vand.u32 %v1639, 4294901760
        %v4343 = vsub.f32 %v1639, %v4342
        %4344 = vmatpush.msra.mxu0 %v4343
        %v4345 = vand.u32 %v1636, 4294901760
        %v4346 = vsub.f32 %v1636, %v4345
        %4347 = vmatpush.msra.mxu0 %v4346
        %v4348 = vand.u32 %v1633, 4294901760
        %v4349 = vsub.f32 %v1633, %v4348
        %4350 = vmatpush.msra.mxu0 %v4349
        %v4351 = vand.u32 %v1630, 4294901760
        %v4352 = vsub.f32 %v1630, %v4351
        %4353 = vmatpush.msra.mxu0 %v4352
        %v4354 = vand.u32 %v1627, 4294901760
        %v4355 = vsub.f32 %v1627, %v4354
        %4356 = vmatpush.msra.mxu0 %v4355
        %v4357 = vand.u32 %v1624, 4294901760
        %v4358 = vsub.f32 %v1624, %v4357
        %4359 = vmatpush.msra.mxu0 %v4358
        %v4360 = vand.u32 %v1621, 4294901760
        %v4361 = vsub.f32 %v1621, %v4360
        %4362 = vmatpush.msra.mxu0 %v4361
        %v4363 = vand.u32 %v1618, 4294901760
        %v4364 = vsub.f32 %v1618, %v4363
        %4365 = vmatpush.msra.mxu0 %v4364
        %v4366 = vand.u32 %v1615, 4294901760
        %v4367 = vsub.f32 %v1615, %v4366
        %4368 = vmatpush.msra.mxu0 %v4367
        %v4369 = vand.u32 %v1612, 4294901760
        %v4370 = vsub.f32 %v1612, %v4369
        %4371 = vmatpush.msra.mxu0 %v4370
        %v4372 = vand.u32 %v3828, 4294901760
        %v4373 = vsub.f32 %v3828, %v4372
        %4374 = vmatmul.f32.gmra.mxu0 %v4373
        %v4375 = vpop.f32.mrf.mxu0
        %v4376 = vadd.f32 %v4322, %v4375
        %4377 = vdwg.mxu0
        %v4378 = vand.u32 %v1657, 4294901760
        %4379 = vmatpush.msra.mxu0 %v4378
        %v4380 = vand.u32 %v1654, 4294901760
        %4381 = vmatpush.msra.mxu0 %v4380
        %v4382 = vand.u32 %v1651, 4294901760
        %4383 = vmatpush.msra.mxu0 %v4382
        %v4384 = vand.u32 %v1648, 4294901760
        %4385 = vmatpush.msra.mxu0 %v4384
        %v4386 = vand.u32 %v1645, 4294901760
        %4387 = vmatpush.msra.mxu0 %v4386
        %v4388 = vand.u32 %v1642, 4294901760
        %4389 = vmatpush.msra.mxu0 %v4388
        %v4390 = vand.u32 %v1639, 4294901760
        %4391 = vmatpush.msra.mxu0 %v4390
        %v4392 = vand.u32 %v1636, 4294901760
        %4393 = vmatpush.msra.mxu0 %v4392
        %v4394 = vand.u32 %v1633, 4294901760
        %4395 = vmatpush.msra.mxu0 %v4394
        %v4396 = vand.u32 %v1630, 4294901760
        %4397 = vmatpush.msra.mxu0 %v4396
        %v4398 = vand.u32 %v1627, 4294901760
        %4399 = vmatpush.msra.mxu0 %v4398
        %v4400 = vand.u32 %v1624, 4294901760
        %4401 = vmatpush.msra.mxu0 %v4400
        %v4402 = vand.u32 %v1621, 4294901760
        %4403 = vmatpush.msra.mxu0 %v4402
        %v4404 = vand.u32 %v1618, 4294901760
        %4405 = vmatpush.msra.mxu0 %v4404
        %v4406 = vand.u32 %v1615, 4294901760
        %4407 = vmatpush.msra.mxu0 %v4406
        %v4408 = vand.u32 %v1612, 4294901760
        %4409 = vmatpush.msra.mxu0 %v4408
        %v4410 = vand.u32 %v3828, 4294901760
        %v4411 = vsub.f32 %v3828, %v4410
        %v4412 = vand.u32 %v4411, 4294901760
        %4413 = vmatmul.f32.gmra.mxu0 %v4412
        %v4414 = vpop.f32.mrf.mxu0
        %v4415 = vadd.f32 %v4376, %v4414
        %4416 = vdwg.mxu0
        %v4417 = vand.u32 %v1657, 4294901760
        %v4418 = vsub.f32 %v1657, %v4417
        %v4419 = vand.u32 %v4418, 4294901760
        %4420 = vmatpush.msra.mxu0 %v4419
        %v4421 = vand.u32 %v1654, 4294901760
        %v4422 = vsub.f32 %v1654, %v4421
        %v4423 = vand.u32 %v4422, 4294901760
        %4424 = vmatpush.msra.mxu0 %v4423
        %v4425 = vand.u32 %v1651, 4294901760
        %v4426 = vsub.f32 %v1651, %v4425
        %v4427 = vand.u32 %v4426, 4294901760
        %4428 = vmatpush.msra.mxu0 %v4427
        %v4429 = vand.u32 %v1648, 4294901760
        %v4430 = vsub.f32 %v1648, %v4429
        %v4431 = vand.u32 %v4430, 4294901760
        %4432 = vmatpush.msra.mxu0 %v4431
        %v4433 = vand.u32 %v1645, 4294901760
        %v4434 = vsub.f32 %v1645, %v4433
        %v4435 = vand.u32 %v4434, 4294901760
        %4436 = vmatpush.msra.mxu0 %v4435
        %v4437 = vand.u32 %v1642, 4294901760
        %v4438 = vsub.f32 %v1642, %v4437
        %v4439 = vand.u32 %v4438, 4294901760
        %4440 = vmatpush.msra.mxu0 %v4439
        %v4441 = vand.u32 %v1639, 4294901760
        %v4442 = vsub.f32 %v1639, %v4441
        %v4443 = vand.u32 %v4442, 4294901760
        %4444 = vmatpush.msra.mxu0 %v4443
        %v4445 = vand.u32 %v1636, 4294901760
        %v4446 = vsub.f32 %v1636, %v4445
        %v4447 = vand.u32 %v4446, 4294901760
        %4448 = vmatpush.msra.mxu0 %v4447
        %v4449 = vand.u32 %v1633, 4294901760
        %v4450 = vsub.f32 %v1633, %v4449
        %v4451 = vand.u32 %v4450, 4294901760
        %4452 = vmatpush.msra.mxu0 %v4451
        %v4453 = vand.u32 %v1630, 4294901760
        %v4454 = vsub.f32 %v1630, %v4453
        %v4455 = vand.u32 %v4454, 4294901760
        %4456 = vmatpush.msra.mxu0 %v4455
        %v4457 = vand.u32 %v1627, 4294901760
        %v4458 = vsub.f32 %v1627, %v4457
        %v4459 = vand.u32 %v4458, 4294901760
        %4460 = vmatpush.msra.mxu0 %v4459
        %v4461 = vand.u32 %v1624, 4294901760
        %v4462 = vsub.f32 %v1624, %v4461
        %v4463 = vand.u32 %v4462, 4294901760
        %4464 = vmatpush.msra.mxu0 %v4463
        %v4465 = vand.u32 %v1621, 4294901760
        %v4466 = vsub.f32 %v1621, %v4465
        %v4467 = vand.u32 %v4466, 4294901760
        %4468 = vmatpush.msra.mxu0 %v4467
        %v4469 = vand.u32 %v1618, 4294901760
        %v4470 = vsub.f32 %v1618, %v4469
        %v4471 = vand.u32 %v4470, 4294901760
        %4472 = vmatpush.msra.mxu0 %v4471
        %v4473 = vand.u32 %v1615, 4294901760
        %v4474 = vsub.f32 %v1615, %v4473
        %v4475 = vand.u32 %v4474, 4294901760
        %4476 = vmatpush.msra.mxu0 %v4475
        %v4477 = vand.u32 %v1612, 4294901760
        %v4478 = vsub.f32 %v1612, %v4477
        %v4479 = vand.u32 %v4478, 4294901760
        %4480 = vmatpush.msra.mxu0 %v4479
        %v4481 = vand.u32 %v3828, 4294901760
        %4482 = vmatmul.f32.gmra.mxu0 %v4481
        %v4483 = vpop.f32.mrf.mxu0
        %v4484 = vadd.f32 %v4415, %v4483
        %4485 = vdwg.mxu0
        %v4486 = vand.u32 %v1657, 4294901760
        %4487 = vmatpush.msra.mxu0 %v4486
        %v4488 = vand.u32 %v1654, 4294901760
        %4489 = vmatpush.msra.mxu0 %v4488
        %v4490 = vand.u32 %v1651, 4294901760
        %4491 = vmatpush.msra.mxu0 %v4490
        %v4492 = vand.u32 %v1648, 4294901760
        %4493 = vmatpush.msra.mxu0 %v4492
        %v4494 = vand.u32 %v1645, 4294901760
        %4495 = vmatpush.msra.mxu0 %v4494
        %v4496 = vand.u32 %v1642, 4294901760
        %4497 = vmatpush.msra.mxu0 %v4496
        %v4498 = vand.u32 %v1639, 4294901760
        %4499 = vmatpush.msra.mxu0 %v4498
        %v4500 = vand.u32 %v1636, 4294901760
        %4501 = vmatpush.msra.mxu0 %v4500
        %v4502 = vand.u32 %v1633, 4294901760
        %4503 = vmatpush.msra.mxu0 %v4502
        %v4504 = vand.u32 %v1630, 4294901760
        %4505 = vmatpush.msra.mxu0 %v4504
        %v4506 = vand.u32 %v1627, 4294901760
        %4507 = vmatpush.msra.mxu0 %v4506
        %v4508 = vand.u32 %v1624, 4294901760
        %4509 = vmatpush.msra.mxu0 %v4508
        %v4510 = vand.u32 %v1621, 4294901760
        %4511 = vmatpush.msra.mxu0 %v4510
        %v4512 = vand.u32 %v1618, 4294901760
        %4513 = vmatpush.msra.mxu0 %v4512
        %v4514 = vand.u32 %v1615, 4294901760
        %4515 = vmatpush.msra.mxu0 %v4514
        %v4516 = vand.u32 %v1612, 4294901760
        %4517 = vmatpush.msra.mxu0 %v4516
        %v4518 = vand.u32 %v3828, 4294901760
        %4519 = vmatmul.f32.gmra.mxu0 %v4518
        %v4520 = vpop.f32.mrf.mxu0
        %v4521 = vadd.f32 %v4484, %v4520
        %4522 = vdwg.mxu0
        %v4523 = vand.u32 %v1658, 4294901760
        %4524 = vmatpush.msra.mxu0 %v4523
        %v4525 = vand.u32 %v1655, 4294901760
        %4526 = vmatpush.msra.mxu0 %v4525
        %v4527 = vand.u32 %v1652, 4294901760
        %4528 = vmatpush.msra.mxu0 %v4527
        %v4529 = vand.u32 %v1649, 4294901760
        %4530 = vmatpush.msra.mxu0 %v4529
        %v4531 = vand.u32 %v1646, 4294901760
        %4532 = vmatpush.msra.mxu0 %v4531
        %v4533 = vand.u32 %v1643, 4294901760
        %4534 = vmatpush.msra.mxu0 %v4533
        %v4535 = vand.u32 %v1640, 4294901760
        %4536 = vmatpush.msra.mxu0 %v4535
        %v4537 = vand.u32 %v1637, 4294901760
        %4538 = vmatpush.msra.mxu0 %v4537
        %v4539 = vand.u32 %v1634, 4294901760
        %4540 = vmatpush.msra.mxu0 %v4539
        %v4541 = vand.u32 %v1631, 4294901760
        %4542 = vmatpush.msra.mxu0 %v4541
        %v4543 = vand.u32 %v1628, 4294901760
        %4544 = vmatpush.msra.mxu0 %v4543
        %v4545 = vand.u32 %v1625, 4294901760
        %4546 = vmatpush.msra.mxu0 %v4545
        %v4547 = vand.u32 %v1622, 4294901760
        %4548 = vmatpush.msra.mxu0 %v4547
        %v4549 = vand.u32 %v1619, 4294901760
        %4550 = vmatpush.msra.mxu0 %v4549
        %v4551 = vand.u32 %v1616, 4294901760
        %4552 = vmatpush.msra.mxu0 %v4551
        %v4553 = vand.u32 %v1613, 4294901760
        %4554 = vmatpush.msra.mxu0 %v4553
        %v4555 = vand.u32 %v3828, 4294901760
        %v4556 = vsub.f32 %v3828, %v4555
        %v4557 = vand.u32 %v4556, 4294901760
        %v4558 = vsub.f32 %v4556, %v4557
        %v4559 = vand.u32 %v4558, 4294901760
        %4560 = vmatmul.f32.gmra.mxu0 %v4559
        %v4561 = vpop.f32.mrf.mxu0
        %v4562 = vadd.f32 %v1673, %v4561
        %4563 = vdwg.mxu0
        %v4564 = vand.u32 %v1658, 4294901760
        %v4565 = vsub.f32 %v1658, %v4564
        %v4566 = vand.u32 %v4565, 4294901760
        %v4567 = vsub.f32 %v4565, %v4566
        %v4568 = vand.u32 %v4567, 4294901760
        %4569 = vmatpush.msra.mxu0 %v4568
        %v4570 = vand.u32 %v1655, 4294901760
        %v4571 = vsub.f32 %v1655, %v4570
        %v4572 = vand.u32 %v4571, 4294901760
        %v4573 = vsub.f32 %v4571, %v4572
        %v4574 = vand.u32 %v4573, 4294901760
        %4575 = vmatpush.msra.mxu0 %v4574
        %v4576 = vand.u32 %v1652, 4294901760
        %v4577 = vsub.f32 %v1652, %v4576
        %v4578 = vand.u32 %v4577, 4294901760
        %v4579 = vsub.f32 %v4577, %v4578
        %v4580 = vand.u32 %v4579, 4294901760
        %4581 = vmatpush.msra.mxu0 %v4580
        %v4582 = vand.u32 %v1649, 4294901760
        %v4583 = vsub.f32 %v1649, %v4582
        %v4584 = vand.u32 %v4583, 4294901760
        %v4585 = vsub.f32 %v4583, %v4584
        %v4586 = vand.u32 %v4585, 4294901760
        %4587 = vmatpush.msra.mxu0 %v4586
        %v4588 = vand.u32 %v1646, 4294901760
        %v4589 = vsub.f32 %v1646, %v4588
        %v4590 = vand.u32 %v4589, 4294901760
        %v4591 = vsub.f32 %v4589, %v4590
        %v4592 = vand.u32 %v4591, 4294901760
        %4593 = vmatpush.msra.mxu0 %v4592
        %v4594 = vand.u32 %v1643, 4294901760
        %v4595 = vsub.f32 %v1643, %v4594
        %v4596 = vand.u32 %v4595, 4294901760
        %v4597 = vsub.f32 %v4595, %v4596
        %v4598 = vand.u32 %v4597, 4294901760
        %4599 = vmatpush.msra.mxu0 %v4598
        %v4600 = vand.u32 %v1640, 4294901760
        %v4601 = vsub.f32 %v1640, %v4600
        %v4602 = vand.u32 %v4601, 4294901760
        %v4603 = vsub.f32 %v4601, %v4602
        %v4604 = vand.u32 %v4603, 4294901760
        %4605 = vmatpush.msra.mxu0 %v4604
        %v4606 = vand.u32 %v1637, 4294901760
        %v4607 = vsub.f32 %v1637, %v4606
        %v4608 = vand.u32 %v4607, 4294901760
        %v4609 = vsub.f32 %v4607, %v4608
        %v4610 = vand.u32 %v4609, 4294901760
        %4611 = vmatpush.msra.mxu0 %v4610
        %v4612 = vand.u32 %v1634, 4294901760
        %v4613 = vsub.f32 %v1634, %v4612
        %v4614 = vand.u32 %v4613, 4294901760
        %v4615 = vsub.f32 %v4613, %v4614
        %v4616 = vand.u32 %v4615, 4294901760
        %4617 = vmatpush.msra.mxu0 %v4616
        %v4618 = vand.u32 %v1631, 4294901760
        %v4619 = vsub.f32 %v1631, %v4618
        %v4620 = vand.u32 %v4619, 4294901760
        %v4621 = vsub.f32 %v4619, %v4620
        %v4622 = vand.u32 %v4621, 4294901760
        %4623 = vmatpush.msra.mxu0 %v4622
        %v4624 = vand.u32 %v1628, 4294901760
        %v4625 = vsub.f32 %v1628, %v4624
        %v4626 = vand.u32 %v4625, 4294901760
        %v4627 = vsub.f32 %v4625, %v4626
        %v4628 = vand.u32 %v4627, 4294901760
        %4629 = vmatpush.msra.mxu0 %v4628
        %v4630 = vand.u32 %v1625, 4294901760
        %v4631 = vsub.f32 %v1625, %v4630
        %v4632 = vand.u32 %v4631, 4294901760
        %v4633 = vsub.f32 %v4631, %v4632
        %v4634 = vand.u32 %v4633, 4294901760
        %4635 = vmatpush.msra.mxu0 %v4634
        %v4636 = vand.u32 %v1622, 4294901760
        %v4637 = vsub.f32 %v1622, %v4636
        %v4638 = vand.u32 %v4637, 4294901760
        %v4639 = vsub.f32 %v4637, %v4638
        %v4640 = vand.u32 %v4639, 4294901760
        %4641 = vmatpush.msra.mxu0 %v4640
        %v4642 = vand.u32 %v1619, 4294901760
        %v4643 = vsub.f32 %v1619, %v4642
        %v4644 = vand.u32 %v4643, 4294901760
        %v4645 = vsub.f32 %v4643, %v4644
        %v4646 = vand.u32 %v4645, 4294901760
        %4647 = vmatpush.msra.mxu0 %v4646
        %v4648 = vand.u32 %v1616, 4294901760
        %v4649 = vsub.f32 %v1616, %v4648
        %v4650 = vand.u32 %v4649, 4294901760
        %v4651 = vsub.f32 %v4649, %v4650
        %v4652 = vand.u32 %v4651, 4294901760
        %4653 = vmatpush.msra.mxu0 %v4652
        %v4654 = vand.u32 %v1613, 4294901760
        %v4655 = vsub.f32 %v1613, %v4654
        %v4656 = vand.u32 %v4655, 4294901760
        %v4657 = vsub.f32 %v4655, %v4656
        %v4658 = vand.u32 %v4657, 4294901760
        %4659 = vmatpush.msra.mxu0 %v4658
        %v4660 = vand.u32 %v3828, 4294901760
        %4661 = vmatmul.f32.gmra.mxu0 %v4660
        %v4662 = vpop.f32.mrf.mxu0
        %v4663 = vadd.f32 %v4562, %v4662
        %4664 = vdwg.mxu0
        %v4665 = vand.u32 %v1658, 4294901760
        %v4666 = vsub.f32 %v1658, %v4665
        %4667 = vmatpush.msra.mxu0 %v4666
        %v4668 = vand.u32 %v1655, 4294901760
        %v4669 = vsub.f32 %v1655, %v4668
        %4670 = vmatpush.msra.mxu0 %v4669
        %v4671 = vand.u32 %v1652, 4294901760
        %v4672 = vsub.f32 %v1652, %v4671
        %4673 = vmatpush.msra.mxu0 %v4672
        %v4674 = vand.u32 %v1649, 4294901760
        %v4675 = vsub.f32 %v1649, %v4674
        %4676 = vmatpush.msra.mxu0 %v4675
        %v4677 = vand.u32 %v1646, 4294901760
        %v4678 = vsub.f32 %v1646, %v4677
        %4679 = vmatpush.msra.mxu0 %v4678
        %v4680 = vand.u32 %v1643, 4294901760
        %v4681 = vsub.f32 %v1643, %v4680
        %4682 = vmatpush.msra.mxu0 %v4681
        %v4683 = vand.u32 %v1640, 4294901760
        %v4684 = vsub.f32 %v1640, %v4683
        %4685 = vmatpush.msra.mxu0 %v4684
        %v4686 = vand.u32 %v1637, 4294901760
        %v4687 = vsub.f32 %v1637, %v4686
        %4688 = vmatpush.msra.mxu0 %v4687
        %v4689 = vand.u32 %v1634, 4294901760
        %v4690 = vsub.f32 %v1634, %v4689
        %4691 = vmatpush.msra.mxu0 %v4690
        %v4692 = vand.u32 %v1631, 4294901760
        %v4693 = vsub.f32 %v1631, %v4692
        %4694 = vmatpush.msra.mxu0 %v4693
        %v4695 = vand.u32 %v1628, 4294901760
        %v4696 = vsub.f32 %v1628, %v4695
        %4697 = vmatpush.msra.mxu0 %v4696
        %v4698 = vand.u32 %v1625, 4294901760
        %v4699 = vsub.f32 %v1625, %v4698
        %4700 = vmatpush.msra.mxu0 %v4699
        %v4701 = vand.u32 %v1622, 4294901760
        %v4702 = vsub.f32 %v1622, %v4701
        %4703 = vmatpush.msra.mxu0 %v4702
        %v4704 = vand.u32 %v1619, 4294901760
        %v4705 = vsub.f32 %v1619, %v4704
        %4706 = vmatpush.msra.mxu0 %v4705
        %v4707 = vand.u32 %v1616, 4294901760
        %v4708 = vsub.f32 %v1616, %v4707
        %4709 = vmatpush.msra.mxu0 %v4708
        %v4710 = vand.u32 %v1613, 4294901760
        %v4711 = vsub.f32 %v1613, %v4710
        %4712 = vmatpush.msra.mxu0 %v4711
        %v4713 = vand.u32 %v3828, 4294901760
        %v4714 = vsub.f32 %v3828, %v4713
        %4715 = vmatmul.f32.gmra.mxu0 %v4714
        %v4716 = vpop.f32.mrf.mxu0
        %v4717 = vadd.f32 %v4663, %v4716
        %4718 = vdwg.mxu0
        %v4719 = vand.u32 %v1658, 4294901760
        %4720 = vmatpush.msra.mxu0 %v4719
        %v4721 = vand.u32 %v1655, 4294901760
        %4722 = vmatpush.msra.mxu0 %v4721
        %v4723 = vand.u32 %v1652, 4294901760
        %4724 = vmatpush.msra.mxu0 %v4723
        %v4725 = vand.u32 %v1649, 4294901760
        %4726 = vmatpush.msra.mxu0 %v4725
        %v4727 = vand.u32 %v1646, 4294901760
        %4728 = vmatpush.msra.mxu0 %v4727
        %v4729 = vand.u32 %v1643, 4294901760
        %4730 = vmatpush.msra.mxu0 %v4729
        %v4731 = vand.u32 %v1640, 4294901760
        %4732 = vmatpush.msra.mxu0 %v4731
        %v4733 = vand.u32 %v1637, 4294901760
        %4734 = vmatpush.msra.mxu0 %v4733
        %v4735 = vand.u32 %v1634, 4294901760
        %4736 = vmatpush.msra.mxu0 %v4735
        %v4737 = vand.u32 %v1631, 4294901760
        %4738 = vmatpush.msra.mxu0 %v4737
        %v4739 = vand.u32 %v1628, 4294901760
        %4740 = vmatpush.msra.mxu0 %v4739
        %v4741 = vand.u32 %v1625, 4294901760
        %4742 = vmatpush.msra.mxu0 %v4741
        %v4743 = vand.u32 %v1622, 4294901760
        %4744 = vmatpush.msra.mxu0 %v4743
        %v4745 = vand.u32 %v1619, 4294901760
        %4746 = vmatpush.msra.mxu0 %v4745
        %v4747 = vand.u32 %v1616, 4294901760
        %4748 = vmatpush.msra.mxu0 %v4747
        %v4749 = vand.u32 %v1613, 4294901760
        %4750 = vmatpush.msra.mxu0 %v4749
        %v4751 = vand.u32 %v3828, 4294901760
        %v4752 = vsub.f32 %v3828, %v4751
        %v4753 = vand.u32 %v4752, 4294901760
        %4754 = vmatmul.f32.gmra.mxu0 %v4753
        %v4755 = vpop.f32.mrf.mxu0
        %v4756 = vadd.f32 %v4717, %v4755
        %4757 = vdwg.mxu0
        %v4758 = vand.u32 %v1658, 4294901760
        %v4759 = vsub.f32 %v1658, %v4758
        %v4760 = vand.u32 %v4759, 4294901760
        %4761 = vmatpush.msra.mxu0 %v4760
        %v4762 = vand.u32 %v1655, 4294901760
        %v4763 = vsub.f32 %v1655, %v4762
        %v4764 = vand.u32 %v4763, 4294901760
        %4765 = vmatpush.msra.mxu0 %v4764
        %v4766 = vand.u32 %v1652, 4294901760
        %v4767 = vsub.f32 %v1652, %v4766
        %v4768 = vand.u32 %v4767, 4294901760
        %4769 = vmatpush.msra.mxu0 %v4768
        %v4770 = vand.u32 %v1649, 4294901760
        %v4771 = vsub.f32 %v1649, %v4770
        %v4772 = vand.u32 %v4771, 4294901760
        %4773 = vmatpush.msra.mxu0 %v4772
        %v4774 = vand.u32 %v1646, 4294901760
        %v4775 = vsub.f32 %v1646, %v4774
        %v4776 = vand.u32 %v4775, 4294901760
        %4777 = vmatpush.msra.mxu0 %v4776
        %v4778 = vand.u32 %v1643, 4294901760
        %v4779 = vsub.f32 %v1643, %v4778
        %v4780 = vand.u32 %v4779, 4294901760
        %4781 = vmatpush.msra.mxu0 %v4780
        %v4782 = vand.u32 %v1640, 4294901760
        %v4783 = vsub.f32 %v1640, %v4782
        %v4784 = vand.u32 %v4783, 4294901760
        %4785 = vmatpush.msra.mxu0 %v4784
        %v4786 = vand.u32 %v1637, 4294901760
        %v4787 = vsub.f32 %v1637, %v4786
        %v4788 = vand.u32 %v4787, 4294901760
        %4789 = vmatpush.msra.mxu0 %v4788
        %v4790 = vand.u32 %v1634, 4294901760
        %v4791 = vsub.f32 %v1634, %v4790
        %v4792 = vand.u32 %v4791, 4294901760
        %4793 = vmatpush.msra.mxu0 %v4792
        %v4794 = vand.u32 %v1631, 4294901760
        %v4795 = vsub.f32 %v1631, %v4794
        %v4796 = vand.u32 %v4795, 4294901760
        %4797 = vmatpush.msra.mxu0 %v4796
        %v4798 = vand.u32 %v1628, 4294901760
        %v4799 = vsub.f32 %v1628, %v4798
        %v4800 = vand.u32 %v4799, 4294901760
        %4801 = vmatpush.msra.mxu0 %v4800
        %v4802 = vand.u32 %v1625, 4294901760
        %v4803 = vsub.f32 %v1625, %v4802
        %v4804 = vand.u32 %v4803, 4294901760
        %4805 = vmatpush.msra.mxu0 %v4804
        %v4806 = vand.u32 %v1622, 4294901760
        %v4807 = vsub.f32 %v1622, %v4806
        %v4808 = vand.u32 %v4807, 4294901760
        %4809 = vmatpush.msra.mxu0 %v4808
        %v4810 = vand.u32 %v1619, 4294901760
        %v4811 = vsub.f32 %v1619, %v4810
        %v4812 = vand.u32 %v4811, 4294901760
        %4813 = vmatpush.msra.mxu0 %v4812
        %v4814 = vand.u32 %v1616, 4294901760
        %v4815 = vsub.f32 %v1616, %v4814
        %v4816 = vand.u32 %v4815, 4294901760
        %4817 = vmatpush.msra.mxu0 %v4816
        %v4818 = vand.u32 %v1613, 4294901760
        %v4819 = vsub.f32 %v1613, %v4818
        %v4820 = vand.u32 %v4819, 4294901760
        %4821 = vmatpush.msra.mxu0 %v4820
        %v4822 = vand.u32 %v3828, 4294901760
        %4823 = vmatmul.f32.gmra.mxu0 %v4822
        %v4824 = vpop.f32.mrf.mxu0
        %v4825 = vadd.f32 %v4756, %v4824
        %4826 = vdwg.mxu0
        %v4827 = vand.u32 %v1658, 4294901760
        %4828 = vmatpush.msra.mxu0 %v4827
        %v4829 = vand.u32 %v1655, 4294901760
        %4830 = vmatpush.msra.mxu0 %v4829
        %v4831 = vand.u32 %v1652, 4294901760
        %4832 = vmatpush.msra.mxu0 %v4831
        %v4833 = vand.u32 %v1649, 4294901760
        %4834 = vmatpush.msra.mxu0 %v4833
        %v4835 = vand.u32 %v1646, 4294901760
        %4836 = vmatpush.msra.mxu0 %v4835
        %v4837 = vand.u32 %v1643, 4294901760
        %4838 = vmatpush.msra.mxu0 %v4837
        %v4839 = vand.u32 %v1640, 4294901760
        %4840 = vmatpush.msra.mxu0 %v4839
        %v4841 = vand.u32 %v1637, 4294901760
        %4842 = vmatpush.msra.mxu0 %v4841
        %v4843 = vand.u32 %v1634, 4294901760
        %4844 = vmatpush.msra.mxu0 %v4843
        %v4845 = vand.u32 %v1631, 4294901760
        %4846 = vmatpush.msra.mxu0 %v4845
        %v4847 = vand.u32 %v1628, 4294901760
        %4848 = vmatpush.msra.mxu0 %v4847
        %v4849 = vand.u32 %v1625, 4294901760
        %4850 = vmatpush.msra.mxu0 %v4849
        %v4851 = vand.u32 %v1622, 4294901760
        %4852 = vmatpush.msra.mxu0 %v4851
        %v4853 = vand.u32 %v1619, 4294901760
        %4854 = vmatpush.msra.mxu0 %v4853
        %v4855 = vand.u32 %v1616, 4294901760
        %4856 = vmatpush.msra.mxu0 %v4855
        %v4857 = vand.u32 %v1613, 4294901760
        %4858 = vmatpush.msra.mxu0 %v4857
        %v4859 = vand.u32 %v3828, 4294901760
        %4860 = vmatmul.f32.gmra.mxu0 %v4859
        %v4861 = vpop.f32.mrf.mxu0
        %v4862 = vadd.f32 %v4825, %v4861
        %4863 = vdwg.mxu0
        %v4864 = vadd.f32 %v3838, %v4180
        %v4865 = vxor.u32 %v4864, 2147483648
        %v4866 = vmul.f32 %v4865, 1.442695
        %v4867 = vpow.pop %v4866
        %v4868 = vadd.f32 %v4867, 1.0
        %v4869 = vrcp.pop %v4868
        %v4870 = vmul.f32 %v4868, %v4869
        %v4871 = vsub.f32 1.0, %v4870
        %v4872 = vmul.f32 %v4869, %v4871
        %v4873 = vadd.f32 %v4869, %v4872
        %vm4874 = vweird.f32 %v4868
        %vm4875 = vweird.f32 %v4869
        %vm4876 = vmor %vm4874, %vm4875
        %v4877 = vsel %vm4876, %v4869, %v4873
        %v4878 = vand.u32 2147483647, %v4868
        %vm4879 = vcmp.eq.f32.partialorder %v4878, 8.507059e+37
        %v4880 = vand.u32 %v4868, 2147483648
        %v4881 = vor.u32 1.1754944e-38, %v4880
        %v4882 = vsel %vm4879, %v4881, %v4877
        %v4883 = vmul.f32 1.0, %v4882
        %v4884 = vadd.f32 %v3839, %v4521
        %v4885 = vxor.u32 %v4884, 2147483648
        %v4886 = vmul.f32 %v4885, 1.442695
        %v4887 = vpow.pop %v4886
        %v4888 = vadd.f32 %v4887, 1.0
        %v4889 = vrcp.pop %v4888
        %v4890 = vmul.f32 %v4888, %v4889
        %v4891 = vsub.f32 1.0, %v4890
        %v4892 = vmul.f32 %v4889, %v4891
        %v4893 = vadd.f32 %v4889, %v4892
        %vm4894 = vweird.f32 %v4888
        %vm4895 = vweird.f32 %v4889
        %vm4896 = vmor %vm4894, %vm4895
        %v4897 = vsel %vm4896, %v4889, %v4893
        %v4898 = vand.u32 2147483647, %v4888
        %vm4899 = vcmp.eq.f32.partialorder %v4898, 8.507059e+37
        %v4900 = vand.u32 %v4888, 2147483648
        %v4901 = vor.u32 1.1754944e-38, %v4900
        %v4902 = vsel %vm4899, %v4901, %v4897
        %v4903 = vmul.f32 1.0, %v4902
        %v4904 = vmul.f32 %v4883, %v4862
        %v4905 = vadd.f32 %v3840, %v4904
        %v4906 = vtanh.pop %v4905
        %v4907 = vsub.f32 1.0, %v4903
        %v4908 = vmul.f32 %v4907, %v4906
        %v4909 = vmul.f32 %v4903, %v3828
        %v4910 = vadd.f32 %v4908, %v4909
        %s4911 = scalar_lea.vmem %s424, %s3832 [#allocation9]
        %4912 = vst [vmem:[%s4911] sm:$0xff] %v4910
        %s4913 = smul.u32 %s31, 4294967293
        %s4914 = sadd.s32 %s4913, 3
        %s4915 = smul.u32 %s4914, 8
        %s4916 = sshra.s32 %s4915, 3
        %s4917 = sand.u32 %s4915, 7
        %s4918 = smul.u32 %s4916, 3
        %s4919 = smul.addr %s4918, 8
        %s4920 = scalar_lea.vmem [#allocation2], %s4919
        %v4921 = vld [vmem:[%s4920] sm:$0xff]
        %v4922 = vld [vmem:[%s4920 + $0x8] sm:$0xff]
        %v4923 = vld [vmem:[%s4920 + $0x10] sm:$0xff]
        %v4924 = vand.u32 %v1656, 4294901760
        %4925 = vmatpush.msra.mxu0 %v4924
        %v4926 = vand.u32 %v1653, 4294901760
        %4927 = vmatpush.msra.mxu0 %v4926
        %v4928 = vand.u32 %v1650, 4294901760
        %4929 = vmatpush.msra.mxu0 %v4928
        %v4930 = vand.u32 %v1647, 4294901760
        %4931 = vmatpush.msra.mxu0 %v4930
        %v4932 = vand.u32 %v1644, 4294901760
        %4933 = vmatpush.msra.mxu0 %v4932
        %v4934 = vand.u32 %v1641, 4294901760
        %4935 = vmatpush.msra.mxu0 %v4934
        %v4936 = vand.u32 %v1638, 4294901760
        %4937 = vmatpush.msra.mxu0 %v4936
        %v4938 = vand.u32 %v1635, 4294901760
        %4939 = vmatpush.msra.mxu0 %v4938
        %v4940 = vand.u32 %v1632, 4294901760
        %4941 = vmatpush.msra.mxu0 %v4940
        %v4942 = vand.u32 %v1629, 4294901760
        %4943 = vmatpush.msra.mxu0 %v4942
        %v4944 = vand.u32 %v1626, 4294901760
        %4945 = vmatpush.msra.mxu0 %v4944
        %v4946 = vand.u32 %v1623, 4294901760
        %4947 = vmatpush.msra.mxu0 %v4946
        %v4948 = vand.u32 %v1620, 4294901760
        %4949 = vmatpush.msra.mxu0 %v4948
        %v4950 = vand.u32 %v1617, 4294901760
        %4951 = vmatpush.msra.mxu0 %v4950
        %v4952 = vand.u32 %v1614, 4294901760
        %4953 = vmatpush.msra.mxu0 %v4952
        %v4954 = vand.u32 %v1611, 4294901760
        %4955 = vmatpush.msra.mxu0 %v4954
        %v4956 = vand.u32 %v4910, 4294901760
        %v4957 = vsub.f32 %v4910, %v4956
        %v4958 = vand.u32 %v4957, 4294901760
        %v4959 = vsub.f32 %v4957, %v4958
        %v4960 = vand.u32 %v4959, 4294901760
        %4961 = vmatmul.f32.gmra.mxu0 %v4960
        %v4962 = vpop.f32.mrf.mxu0
        %v4963 = vadd.f32 %v1671, %v4962
        %4964 = vdwg.mxu0
        %v4965 = vand.u32 %v1656, 4294901760
        %v4966 = vsub.f32 %v1656, %v4965
        %v4967 = vand.u32 %v4966, 4294901760
        %v4968 = vsub.f32 %v4966, %v4967
        %v4969 = vand.u32 %v4968, 4294901760
        %4970 = vmatpush.msra.mxu0 %v4969
        %v4971 = vand.u32 %v1653, 4294901760
        %v4972 = vsub.f32 %v1653, %v4971
        %v4973 = vand.u32 %v4972, 4294901760
        %v4974 = vsub.f32 %v4972, %v4973
        %v4975 = vand.u32 %v4974, 4294901760
        %4976 = vmatpush.msra.mxu0 %v4975
        %v4977 = vand.u32 %v1650, 4294901760
        %v4978 = vsub.f32 %v1650, %v4977
        %v4979 = vand.u32 %v4978, 4294901760
        %v4980 = vsub.f32 %v4978, %v4979
        %v4981 = vand.u32 %v4980, 4294901760
        %4982 = vmatpush.msra.mxu0 %v4981
        %v4983 = vand.u32 %v1647, 4294901760
        %v4984 = vsub.f32 %v1647, %v4983
        %v4985 = vand.u32 %v4984, 4294901760
        %v4986 = vsub.f32 %v4984, %v4985
        %v4987 = vand.u32 %v4986, 4294901760
        %4988 = vmatpush.msra.mxu0 %v4987
        %v4989 = vand.u32 %v1644, 4294901760
        %v4990 = vsub.f32 %v1644, %v4989
        %v4991 = vand.u32 %v4990, 4294901760
        %v4992 = vsub.f32 %v4990, %v4991
        %v4993 = vand.u32 %v4992, 4294901760
        %4994 = vmatpush.msra.mxu0 %v4993
        %v4995 = vand.u32 %v1641, 4294901760
        %v4996 = vsub.f32 %v1641, %v4995
        %v4997 = vand.u32 %v4996, 4294901760
        %v4998 = vsub.f32 %v4996, %v4997
        %v4999 = vand.u32 %v4998, 4294901760
        %5000 = vmatpush.msra.mxu0 %v4999
        %v5001 = vand.u32 %v1638, 4294901760
        %v5002 = vsub.f32 %v1638, %v5001
        %v5003 = vand.u32 %v5002, 4294901760
        %v5004 = vsub.f32 %v5002, %v5003
        %v5005 = vand.u32 %v5004, 4294901760
        %5006 = vmatpush.msra.mxu0 %v5005
        %v5007 = vand.u32 %v1635, 4294901760
        %v5008 = vsub.f32 %v1635, %v5007
        %v5009 = vand.u32 %v5008, 4294901760
        %v5010 = vsub.f32 %v5008, %v5009
        %v5011 = vand.u32 %v5010, 4294901760
        %5012 = vmatpush.msra.mxu0 %v5011
        %v5013 = vand.u32 %v1632, 4294901760
        %v5014 = vsub.f32 %v1632, %v5013
        %v5015 = vand.u32 %v5014, 4294901760
        %v5016 = vsub.f32 %v5014, %v5015
        %v5017 = vand.u32 %v5016, 4294901760
        %5018 = vmatpush.msra.mxu0 %v5017
        %v5019 = vand.u32 %v1629, 4294901760
        %v5020 = vsub.f32 %v1629, %v5019
        %v5021 = vand.u32 %v5020, 4294901760
        %v5022 = vsub.f32 %v5020, %v5021
        %v5023 = vand.u32 %v5022, 4294901760
        %5024 = vmatpush.msra.mxu0 %v5023
        %v5025 = vand.u32 %v1626, 4294901760
        %v5026 = vsub.f32 %v1626, %v5025
        %v5027 = vand.u32 %v5026, 4294901760
        %v5028 = vsub.f32 %v5026, %v5027
        %v5029 = vand.u32 %v5028, 4294901760
        %5030 = vmatpush.msra.mxu0 %v5029
        %v5031 = vand.u32 %v1623, 4294901760
        %v5032 = vsub.f32 %v1623, %v5031
        %v5033 = vand.u32 %v5032, 4294901760
        %v5034 = vsub.f32 %v5032, %v5033
        %v5035 = vand.u32 %v5034, 4294901760
        %5036 = vmatpush.msra.mxu0 %v5035
        %v5037 = vand.u32 %v1620, 4294901760
        %v5038 = vsub.f32 %v1620, %v5037
        %v5039 = vand.u32 %v5038, 4294901760
        %v5040 = vsub.f32 %v5038, %v5039
        %v5041 = vand.u32 %v5040, 4294901760
        %5042 = vmatpush.msra.mxu0 %v5041
        %v5043 = vand.u32 %v1617, 4294901760
        %v5044 = vsub.f32 %v1617, %v5043
        %v5045 = vand.u32 %v5044, 4294901760
        %v5046 = vsub.f32 %v5044, %v5045
        %v5047 = vand.u32 %v5046, 4294901760
        %5048 = vmatpush.msra.mxu0 %v5047
        %v5049 = vand.u32 %v1614, 4294901760
        %v5050 = vsub.f32 %v1614, %v5049
        %v5051 = vand.u32 %v5050, 4294901760
        %v5052 = vsub.f32 %v5050, %v5051
        %v5053 = vand.u32 %v5052, 4294901760
        %5054 = vmatpush.msra.mxu0 %v5053
        %v5055 = vand.u32 %v1611, 4294901760
        %v5056 = vsub.f32 %v1611, %v5055
        %v5057 = vand.u32 %v5056, 4294901760
        %v5058 = vsub.f32 %v5056, %v5057
        %v5059 = vand.u32 %v5058, 4294901760
        %5060 = vmatpush.msra.mxu0 %v5059
        %v5061 = vand.u32 %v4910, 4294901760
        %5062 = vmatmul.f32.gmra.mxu0 %v5061
        %v5063 = vpop.f32.mrf.mxu0
        %v5064 = vadd.f32 %v4963, %v5063
        %5065 = vdwg.mxu0
        %v5066 = vand.u32 %v1656, 4294901760
        %v5067 = vsub.f32 %v1656, %v5066
        %5068 = vmatpush.msra.mxu0 %v5067
        %v5069 = vand.u32 %v1653, 4294901760
        %v5070 = vsub.f32 %v1653, %v5069
        %5071 = vmatpush.msra.mxu0 %v5070
        %v5072 = vand.u32 %v1650, 4294901760
        %v5073 = vsub.f32 %v1650, %v5072
        %5074 = vmatpush.msra.mxu0 %v5073
        %v5075 = vand.u32 %v1647, 4294901760
        %v5076 = vsub.f32 %v1647, %v5075
        %5077 = vmatpush.msra.mxu0 %v5076
        %v5078 = vand.u32 %v1644, 4294901760
        %v5079 = vsub.f32 %v1644, %v5078
        %5080 = vmatpush.msra.mxu0 %v5079
        %v5081 = vand.u32 %v1641, 4294901760
        %v5082 = vsub.f32 %v1641, %v5081
        %5083 = vmatpush.msra.mxu0 %v5082
        %v5084 = vand.u32 %v1638, 4294901760
        %v5085 = vsub.f32 %v1638, %v5084
        %5086 = vmatpush.msra.mxu0 %v5085
        %v5087 = vand.u32 %v1635, 4294901760
        %v5088 = vsub.f32 %v1635, %v5087
        %5089 = vmatpush.msra.mxu0 %v5088
        %v5090 = vand.u32 %v1632, 4294901760
        %v5091 = vsub.f32 %v1632, %v5090
        %5092 = vmatpush.msra.mxu0 %v5091
        %v5093 = vand.u32 %v1629, 4294901760
        %v5094 = vsub.f32 %v1629, %v5093
        %5095 = vmatpush.msra.mxu0 %v5094
        %v5096 = vand.u32 %v1626, 4294901760
        %v5097 = vsub.f32 %v1626, %v5096
        %5098 = vmatpush.msra.mxu0 %v5097
        %v5099 = vand.u32 %v1623, 4294901760
        %v5100 = vsub.f32 %v1623, %v5099
        %5101 = vmatpush.msra.mxu0 %v5100
        %v5102 = vand.u32 %v1620, 4294901760
        %v5103 = vsub.f32 %v1620, %v5102
        %5104 = vmatpush.msra.mxu0 %v5103
        %v5105 = vand.u32 %v1617, 4294901760
        %v5106 = vsub.f32 %v1617, %v5105
        %5107 = vmatpush.msra.mxu0 %v5106
        %v5108 = vand.u32 %v1614, 4294901760
        %v5109 = vsub.f32 %v1614, %v5108
        %5110 = vmatpush.msra.mxu0 %v5109
        %v5111 = vand.u32 %v1611, 4294901760
        %v5112 = vsub.f32 %v1611, %v5111
        %5113 = vmatpush.msra.mxu0 %v5112
        %v5114 = vand.u32 %v4910, 4294901760
        %v5115 = vsub.f32 %v4910, %v5114
        %5116 = vmatmul.f32.gmra.mxu0 %v5115
        %v5117 = vpop.f32.mrf.mxu0
        %v5118 = vadd.f32 %v5064, %v5117
        %5119 = vdwg.mxu0
        %v5120 = vand.u32 %v1656, 4294901760
        %5121 = vmatpush.msra.mxu0 %v5120
        %v5122 = vand.u32 %v1653, 4294901760
        %5123 = vmatpush.msra.mxu0 %v5122
        %v5124 = vand.u32 %v1650, 4294901760
        %5125 = vmatpush.msra.mxu0 %v5124
        %v5126 = vand.u32 %v1647, 4294901760
        %5127 = vmatpush.msra.mxu0 %v5126
        %v5128 = vand.u32 %v1644, 4294901760
        %5129 = vmatpush.msra.mxu0 %v5128
        %v5130 = vand.u32 %v1641, 4294901760
        %5131 = vmatpush.msra.mxu0 %v5130
        %v5132 = vand.u32 %v1638, 4294901760
        %5133 = vmatpush.msra.mxu0 %v5132
        %v5134 = vand.u32 %v1635, 4294901760
        %5135 = vmatpush.msra.mxu0 %v5134
        %v5136 = vand.u32 %v1632, 4294901760
        %5137 = vmatpush.msra.mxu0 %v5136
        %v5138 = vand.u32 %v1629, 4294901760
        %5139 = vmatpush.msra.mxu0 %v5138
        %v5140 = vand.u32 %v1626, 4294901760
        %5141 = vmatpush.msra.mxu0 %v5140
        %v5142 = vand.u32 %v1623, 4294901760
        %5143 = vmatpush.msra.mxu0 %v5142
        %v5144 = vand.u32 %v1620, 4294901760
        %5145 = vmatpush.msra.mxu0 %v5144
        %v5146 = vand.u32 %v1617, 4294901760
        %5147 = vmatpush.msra.mxu0 %v5146
        %v5148 = vand.u32 %v1614, 4294901760
        %5149 = vmatpush.msra.mxu0 %v5148
        %v5150 = vand.u32 %v1611, 4294901760
        %5151 = vmatpush.msra.mxu0 %v5150
        %v5152 = vand.u32 %v4910, 4294901760
        %v5153 = vsub.f32 %v4910, %v5152
        %v5154 = vand.u32 %v5153, 4294901760
        %5155 = vmatmul.f32.gmra.mxu0 %v5154
        %v5156 = vpop.f32.mrf.mxu0
        %v5157 = vadd.f32 %v5118, %v5156
        %5158 = vdwg.mxu0
        %v5159 = vand.u32 %v1656, 4294901760
        %v5160 = vsub.f32 %v1656, %v5159
        %v5161 = vand.u32 %v5160, 4294901760
        %5162 = vmatpush.msra.mxu0 %v5161
        %v5163 = vand.u32 %v1653, 4294901760
        %v5164 = vsub.f32 %v1653, %v5163
        %v5165 = vand.u32 %v5164, 4294901760
        %5166 = vmatpush.msra.mxu0 %v5165
        %v5167 = vand.u32 %v1650, 4294901760
        %v5168 = vsub.f32 %v1650, %v5167
        %v5169 = vand.u32 %v5168, 4294901760
        %5170 = vmatpush.msra.mxu0 %v5169
        %v5171 = vand.u32 %v1647, 4294901760
        %v5172 = vsub.f32 %v1647, %v5171
        %v5173 = vand.u32 %v5172, 4294901760
        %5174 = vmatpush.msra.mxu0 %v5173
        %v5175 = vand.u32 %v1644, 4294901760
        %v5176 = vsub.f32 %v1644, %v5175
        %v5177 = vand.u32 %v5176, 4294901760
        %5178 = vmatpush.msra.mxu0 %v5177
        %v5179 = vand.u32 %v1641, 4294901760
        %v5180 = vsub.f32 %v1641, %v5179
        %v5181 = vand.u32 %v5180, 4294901760
        %5182 = vmatpush.msra.mxu0 %v5181
        %v5183 = vand.u32 %v1638, 4294901760
        %v5184 = vsub.f32 %v1638, %v5183
        %v5185 = vand.u32 %v5184, 4294901760
        %5186 = vmatpush.msra.mxu0 %v5185
        %v5187 = vand.u32 %v1635, 4294901760
        %v5188 = vsub.f32 %v1635, %v5187
        %v5189 = vand.u32 %v5188, 4294901760
        %5190 = vmatpush.msra.mxu0 %v5189
        %v5191 = vand.u32 %v1632, 4294901760
        %v5192 = vsub.f32 %v1632, %v5191
        %v5193 = vand.u32 %v5192, 4294901760
        %5194 = vmatpush.msra.mxu0 %v5193
        %v5195 = vand.u32 %v1629, 4294901760
        %v5196 = vsub.f32 %v1629, %v5195
        %v5197 = vand.u32 %v5196, 4294901760
        %5198 = vmatpush.msra.mxu0 %v5197
        %v5199 = vand.u32 %v1626, 4294901760
        %v5200 = vsub.f32 %v1626, %v5199
        %v5201 = vand.u32 %v5200, 4294901760
        %5202 = vmatpush.msra.mxu0 %v5201
        %v5203 = vand.u32 %v1623, 4294901760
        %v5204 = vsub.f32 %v1623, %v5203
        %v5205 = vand.u32 %v5204, 4294901760
        %5206 = vmatpush.msra.mxu0 %v5205
        %v5207 = vand.u32 %v1620, 4294901760
        %v5208 = vsub.f32 %v1620, %v5207
        %v5209 = vand.u32 %v5208, 4294901760
        %5210 = vmatpush.msra.mxu0 %v5209
        %v5211 = vand.u32 %v1617, 4294901760
        %v5212 = vsub.f32 %v1617, %v5211
        %v5213 = vand.u32 %v5212, 4294901760
        %5214 = vmatpush.msra.mxu0 %v5213
        %v5215 = vand.u32 %v1614, 4294901760
        %v5216 = vsub.f32 %v1614, %v5215
        %v5217 = vand.u32 %v5216, 4294901760
        %5218 = vmatpush.msra.mxu0 %v5217
        %v5219 = vand.u32 %v1611, 4294901760
        %v5220 = vsub.f32 %v1611, %v5219
        %v5221 = vand.u32 %v5220, 4294901760
        %5222 = vmatpush.msra.mxu0 %v5221
        %v5223 = vand.u32 %v4910, 4294901760
        %5224 = vmatmul.f32.gmra.mxu0 %v5223
        %v5225 = vpop.f32.mrf.mxu0
        %v5226 = vadd.f32 %v5157, %v5225
        %5227 = vdwg.mxu0
        %v5228 = vand.u32 %v1656, 4294901760
        %5229 = vmatpush.msra.mxu0 %v5228
        %v5230 = vand.u32 %v1653, 4294901760
        %5231 = vmatpush.msra.mxu0 %v5230
        %v5232 = vand.u32 %v1650, 4294901760
        %5233 = vmatpush.msra.mxu0 %v5232
        %v5234 = vand.u32 %v1647, 4294901760
        %5235 = vmatpush.msra.mxu0 %v5234
        %v5236 = vand.u32 %v1644, 4294901760
        %5237 = vmatpush.msra.mxu0 %v5236
        %v5238 = vand.u32 %v1641, 4294901760
        %5239 = vmatpush.msra.mxu0 %v5238
        %v5240 = vand.u32 %v1638, 4294901760
        %5241 = vmatpush.msra.mxu0 %v5240
        %v5242 = vand.u32 %v1635, 4294901760
        %5243 = vmatpush.msra.mxu0 %v5242
        %v5244 = vand.u32 %v1632, 4294901760
        %5245 = vmatpush.msra.mxu0 %v5244
        %v5246 = vand.u32 %v1629, 4294901760
        %5247 = vmatpush.msra.mxu0 %v5246
        %v5248 = vand.u32 %v1626, 4294901760
        %5249 = vmatpush.msra.mxu0 %v5248
        %v5250 = vand.u32 %v1623, 4294901760
        %5251 = vmatpush.msra.mxu0 %v5250
        %v5252 = vand.u32 %v1620, 4294901760
        %5253 = vmatpush.msra.mxu0 %v5252
        %v5254 = vand.u32 %v1617, 4294901760
        %5255 = vmatpush.msra.mxu0 %v5254
        %v5256 = vand.u32 %v1614, 4294901760
        %5257 = vmatpush.msra.mxu0 %v5256
        %v5258 = vand.u32 %v1611, 4294901760
        %5259 = vmatpush.msra.mxu0 %v5258
        %v5260 = vand.u32 %v4910, 4294901760
        %5261 = vmatmul.f32.gmra.mxu0 %v5260
        %v5262 = vpop.f32.mrf.mxu0
        %v5263 = vadd.f32 %v5226, %v5262
        %5264 = vdwg.mxu0
        %v5265 = vand.u32 %v1657, 4294901760
        %5266 = vmatpush.msra.mxu0 %v5265
        %v5267 = vand.u32 %v1654, 4294901760
        %5268 = vmatpush.msra.mxu0 %v5267
        %v5269 = vand.u32 %v1651, 4294901760
        %5270 = vmatpush.msra.mxu0 %v5269
        %v5271 = vand.u32 %v1648, 4294901760
        %5272 = vmatpush.msra.mxu0 %v5271
        %v5273 = vand.u32 %v1645, 4294901760
        %5274 = vmatpush.msra.mxu0 %v5273
        %v5275 = vand.u32 %v1642, 4294901760
        %5276 = vmatpush.msra.mxu0 %v5275
        %v5277 = vand.u32 %v1639, 4294901760
        %5278 = vmatpush.msra.mxu0 %v5277
        %v5279 = vand.u32 %v1636, 4294901760
        %5280 = vmatpush.msra.mxu0 %v5279
        %v5281 = vand.u32 %v1633, 4294901760
        %5282 = vmatpush.msra.mxu0 %v5281
        %v5283 = vand.u32 %v1630, 4294901760
        %5284 = vmatpush.msra.mxu0 %v5283
        %v5285 = vand.u32 %v1627, 4294901760
        %5286 = vmatpush.msra.mxu0 %v5285
        %v5287 = vand.u32 %v1624, 4294901760
        %5288 = vmatpush.msra.mxu0 %v5287
        %v5289 = vand.u32 %v1621, 4294901760
        %5290 = vmatpush.msra.mxu0 %v5289
        %v5291 = vand.u32 %v1618, 4294901760
        %5292 = vmatpush.msra.mxu0 %v5291
        %v5293 = vand.u32 %v1615, 4294901760
        %5294 = vmatpush.msra.mxu0 %v5293
        %v5295 = vand.u32 %v1612, 4294901760
        %5296 = vmatpush.msra.mxu0 %v5295
        %v5297 = vand.u32 %v4910, 4294901760
        %v5298 = vsub.f32 %v4910, %v5297
        %v5299 = vand.u32 %v5298, 4294901760
        %v5300 = vsub.f32 %v5298, %v5299
        %v5301 = vand.u32 %v5300, 4294901760
        %5302 = vmatmul.f32.gmra.mxu0 %v5301
        %v5303 = vpop.f32.mrf.mxu0
        %v5304 = vadd.f32 %v1672, %v5303
        %5305 = vdwg.mxu0
        %v5306 = vand.u32 %v1657, 4294901760
        %v5307 = vsub.f32 %v1657, %v5306
        %v5308 = vand.u32 %v5307, 4294901760
        %v5309 = vsub.f32 %v5307, %v5308
        %v5310 = vand.u32 %v5309, 4294901760
        %5311 = vmatpush.msra.mxu0 %v5310
        %v5312 = vand.u32 %v1654, 4294901760
        %v5313 = vsub.f32 %v1654, %v5312
        %v5314 = vand.u32 %v5313, 4294901760
        %v5315 = vsub.f32 %v5313, %v5314
        %v5316 = vand.u32 %v5315, 4294901760
        %5317 = vmatpush.msra.mxu0 %v5316
        %v5318 = vand.u32 %v1651, 4294901760
        %v5319 = vsub.f32 %v1651, %v5318
        %v5320 = vand.u32 %v5319, 4294901760
        %v5321 = vsub.f32 %v5319, %v5320
        %v5322 = vand.u32 %v5321, 4294901760
        %5323 = vmatpush.msra.mxu0 %v5322
        %v5324 = vand.u32 %v1648, 4294901760
        %v5325 = vsub.f32 %v1648, %v5324
        %v5326 = vand.u32 %v5325, 4294901760
        %v5327 = vsub.f32 %v5325, %v5326
        %v5328 = vand.u32 %v5327, 4294901760
        %5329 = vmatpush.msra.mxu0 %v5328
        %v5330 = vand.u32 %v1645, 4294901760
        %v5331 = vsub.f32 %v1645, %v5330
        %v5332 = vand.u32 %v5331, 4294901760
        %v5333 = vsub.f32 %v5331, %v5332
        %v5334 = vand.u32 %v5333, 4294901760
        %5335 = vmatpush.msra.mxu0 %v5334
        %v5336 = vand.u32 %v1642, 4294901760
        %v5337 = vsub.f32 %v1642, %v5336
        %v5338 = vand.u32 %v5337, 4294901760
        %v5339 = vsub.f32 %v5337, %v5338
        %v5340 = vand.u32 %v5339, 4294901760
        %5341 = vmatpush.msra.mxu0 %v5340
        %v5342 = vand.u32 %v1639, 4294901760
        %v5343 = vsub.f32 %v1639, %v5342
        %v5344 = vand.u32 %v5343, 4294901760
        %v5345 = vsub.f32 %v5343, %v5344
        %v5346 = vand.u32 %v5345, 4294901760
        %5347 = vmatpush.msra.mxu0 %v5346
        %v5348 = vand.u32 %v1636, 4294901760
        %v5349 = vsub.f32 %v1636, %v5348
        %v5350 = vand.u32 %v5349, 4294901760
        %v5351 = vsub.f32 %v5349, %v5350
        %v5352 = vand.u32 %v5351, 4294901760
        %5353 = vmatpush.msra.mxu0 %v5352
        %v5354 = vand.u32 %v1633, 4294901760
        %v5355 = vsub.f32 %v1633, %v5354
        %v5356 = vand.u32 %v5355, 4294901760
        %v5357 = vsub.f32 %v5355, %v5356
        %v5358 = vand.u32 %v5357, 4294901760
        %5359 = vmatpush.msra.mxu0 %v5358
        %v5360 = vand.u32 %v1630, 4294901760
        %v5361 = vsub.f32 %v1630, %v5360
        %v5362 = vand.u32 %v5361, 4294901760
        %v5363 = vsub.f32 %v5361, %v5362
        %v5364 = vand.u32 %v5363, 4294901760
        %5365 = vmatpush.msra.mxu0 %v5364
        %v5366 = vand.u32 %v1627, 4294901760
        %v5367 = vsub.f32 %v1627, %v5366
        %v5368 = vand.u32 %v5367, 4294901760
        %v5369 = vsub.f32 %v5367, %v5368
        %v5370 = vand.u32 %v5369, 4294901760
        %5371 = vmatpush.msra.mxu0 %v5370
        %v5372 = vand.u32 %v1624, 4294901760
        %v5373 = vsub.f32 %v1624, %v5372
        %v5374 = vand.u32 %v5373, 4294901760
        %v5375 = vsub.f32 %v5373, %v5374
        %v5376 = vand.u32 %v5375, 4294901760
        %5377 = vmatpush.msra.mxu0 %v5376
        %v5378 = vand.u32 %v1621, 4294901760
        %v5379 = vsub.f32 %v1621, %v5378
        %v5380 = vand.u32 %v5379, 4294901760
        %v5381 = vsub.f32 %v5379, %v5380
        %v5382 = vand.u32 %v5381, 4294901760
        %5383 = vmatpush.msra.mxu0 %v5382
        %v5384 = vand.u32 %v1618, 4294901760
        %v5385 = vsub.f32 %v1618, %v5384
        %v5386 = vand.u32 %v5385, 4294901760
        %v5387 = vsub.f32 %v5385, %v5386
        %v5388 = vand.u32 %v5387, 4294901760
        %5389 = vmatpush.msra.mxu0 %v5388
        %v5390 = vand.u32 %v1615, 4294901760
        %v5391 = vsub.f32 %v1615, %v5390
        %v5392 = vand.u32 %v5391, 4294901760
        %v5393 = vsub.f32 %v5391, %v5392
        %v5394 = vand.u32 %v5393, 4294901760
        %5395 = vmatpush.msra.mxu0 %v5394
        %v5396 = vand.u32 %v1612, 4294901760
        %v5397 = vsub.f32 %v1612, %v5396
        %v5398 = vand.u32 %v5397, 4294901760
        %v5399 = vsub.f32 %v5397, %v5398
        %v5400 = vand.u32 %v5399, 4294901760
        %5401 = vmatpush.msra.mxu0 %v5400
        %v5402 = vand.u32 %v4910, 4294901760
        %5403 = vmatmul.f32.gmra.mxu0 %v5402
        %v5404 = vpop.f32.mrf.mxu0
        %v5405 = vadd.f32 %v5304, %v5404
        %5406 = vdwg.mxu0
        %v5407 = vand.u32 %v1657, 4294901760
        %v5408 = vsub.f32 %v1657, %v5407
        %5409 = vmatpush.msra.mxu0 %v5408
        %v5410 = vand.u32 %v1654, 4294901760
        %v5411 = vsub.f32 %v1654, %v5410
        %5412 = vmatpush.msra.mxu0 %v5411
        %v5413 = vand.u32 %v1651, 4294901760
        %v5414 = vsub.f32 %v1651, %v5413
        %5415 = vmatpush.msra.mxu0 %v5414
        %v5416 = vand.u32 %v1648, 4294901760
        %v5417 = vsub.f32 %v1648, %v5416
        %5418 = vmatpush.msra.mxu0 %v5417
        %v5419 = vand.u32 %v1645, 4294901760
        %v5420 = vsub.f32 %v1645, %v5419
        %5421 = vmatpush.msra.mxu0 %v5420
        %v5422 = vand.u32 %v1642, 4294901760
        %v5423 = vsub.f32 %v1642, %v5422
        %5424 = vmatpush.msra.mxu0 %v5423
        %v5425 = vand.u32 %v1639, 4294901760
        %v5426 = vsub.f32 %v1639, %v5425
        %5427 = vmatpush.msra.mxu0 %v5426
        %v5428 = vand.u32 %v1636, 4294901760
        %v5429 = vsub.f32 %v1636, %v5428
        %5430 = vmatpush.msra.mxu0 %v5429
        %v5431 = vand.u32 %v1633, 4294901760
        %v5432 = vsub.f32 %v1633, %v5431
        %5433 = vmatpush.msra.mxu0 %v5432
        %v5434 = vand.u32 %v1630, 4294901760
        %v5435 = vsub.f32 %v1630, %v5434
        %5436 = vmatpush.msra.mxu0 %v5435
        %v5437 = vand.u32 %v1627, 4294901760
        %v5438 = vsub.f32 %v1627, %v5437
        %5439 = vmatpush.msra.mxu0 %v5438
        %v5440 = vand.u32 %v1624, 4294901760
        %v5441 = vsub.f32 %v1624, %v5440
        %5442 = vmatpush.msra.mxu0 %v5441
        %v5443 = vand.u32 %v1621, 4294901760
        %v5444 = vsub.f32 %v1621, %v5443
        %5445 = vmatpush.msra.mxu0 %v5444
        %v5446 = vand.u32 %v1618, 4294901760
        %v5447 = vsub.f32 %v1618, %v5446
        %5448 = vmatpush.msra.mxu0 %v5447
        %v5449 = vand.u32 %v1615, 4294901760
        %v5450 = vsub.f32 %v1615, %v5449
        %5451 = vmatpush.msra.mxu0 %v5450
        %v5452 = vand.u32 %v1612, 4294901760
        %v5453 = vsub.f32 %v1612, %v5452
        %5454 = vmatpush.msra.mxu0 %v5453
        %v5455 = vand.u32 %v4910, 4294901760
        %v5456 = vsub.f32 %v4910, %v5455
        %5457 = vmatmul.f32.gmra.mxu0 %v5456
        %v5458 = vpop.f32.mrf.mxu0
        %v5459 = vadd.f32 %v5405, %v5458
        %5460 = vdwg.mxu0
        %v5461 = vand.u32 %v1657, 4294901760
        %5462 = vmatpush.msra.mxu0 %v5461
        %v5463 = vand.u32 %v1654, 4294901760
        %5464 = vmatpush.msra.mxu0 %v5463
        %v5465 = vand.u32 %v1651, 4294901760
        %5466 = vmatpush.msra.mxu0 %v5465
        %v5467 = vand.u32 %v1648, 4294901760
        %5468 = vmatpush.msra.mxu0 %v5467
        %v5469 = vand.u32 %v1645, 4294901760
        %5470 = vmatpush.msra.mxu0 %v5469
        %v5471 = vand.u32 %v1642, 4294901760
        %5472 = vmatpush.msra.mxu0 %v5471
        %v5473 = vand.u32 %v1639, 4294901760
        %5474 = vmatpush.msra.mxu0 %v5473
        %v5475 = vand.u32 %v1636, 4294901760
        %5476 = vmatpush.msra.mxu0 %v5475
        %v5477 = vand.u32 %v1633, 4294901760
        %5478 = vmatpush.msra.mxu0 %v5477
        %v5479 = vand.u32 %v1630, 4294901760
        %5480 = vmatpush.msra.mxu0 %v5479
        %v5481 = vand.u32 %v1627, 4294901760
        %5482 = vmatpush.msra.mxu0 %v5481
        %v5483 = vand.u32 %v1624, 4294901760
        %5484 = vmatpush.msra.mxu0 %v5483
        %v5485 = vand.u32 %v1621, 4294901760
        %5486 = vmatpush.msra.mxu0 %v5485
        %v5487 = vand.u32 %v1618, 4294901760
        %5488 = vmatpush.msra.mxu0 %v5487
        %v5489 = vand.u32 %v1615, 4294901760
        %5490 = vmatpush.msra.mxu0 %v5489
        %v5491 = vand.u32 %v1612, 4294901760
        %5492 = vmatpush.msra.mxu0 %v5491
        %v5493 = vand.u32 %v4910, 4294901760
        %v5494 = vsub.f32 %v4910, %v5493
        %v5495 = vand.u32 %v5494, 4294901760
        %5496 = vmatmul.f32.gmra.mxu0 %v5495
        %v5497 = vpop.f32.mrf.mxu0
        %v5498 = vadd.f32 %v5459, %v5497
        %5499 = vdwg.mxu0
        %v5500 = vand.u32 %v1657, 4294901760
        %v5501 = vsub.f32 %v1657, %v5500
        %v5502 = vand.u32 %v5501, 4294901760
        %5503 = vmatpush.msra.mxu0 %v5502
        %v5504 = vand.u32 %v1654, 4294901760
        %v5505 = vsub.f32 %v1654, %v5504
        %v5506 = vand.u32 %v5505, 4294901760
        %5507 = vmatpush.msra.mxu0 %v5506
        %v5508 = vand.u32 %v1651, 4294901760
        %v5509 = vsub.f32 %v1651, %v5508
        %v5510 = vand.u32 %v5509, 4294901760
        %5511 = vmatpush.msra.mxu0 %v5510
        %v5512 = vand.u32 %v1648, 4294901760
        %v5513 = vsub.f32 %v1648, %v5512
        %v5514 = vand.u32 %v5513, 4294901760
        %5515 = vmatpush.msra.mxu0 %v5514
        %v5516 = vand.u32 %v1645, 4294901760
        %v5517 = vsub.f32 %v1645, %v5516
        %v5518 = vand.u32 %v5517, 4294901760
        %5519 = vmatpush.msra.mxu0 %v5518
        %v5520 = vand.u32 %v1642, 4294901760
        %v5521 = vsub.f32 %v1642, %v5520
        %v5522 = vand.u32 %v5521, 4294901760
        %5523 = vmatpush.msra.mxu0 %v5522
        %v5524 = vand.u32 %v1639, 4294901760
        %v5525 = vsub.f32 %v1639, %v5524
        %v5526 = vand.u32 %v5525, 4294901760
        %5527 = vmatpush.msra.mxu0 %v5526
        %v5528 = vand.u32 %v1636, 4294901760
        %v5529 = vsub.f32 %v1636, %v5528
        %v5530 = vand.u32 %v5529, 4294901760
        %5531 = vmatpush.msra.mxu0 %v5530
        %v5532 = vand.u32 %v1633, 4294901760
        %v5533 = vsub.f32 %v1633, %v5532
        %v5534 = vand.u32 %v5533, 4294901760
        %5535 = vmatpush.msra.mxu0 %v5534
        %v5536 = vand.u32 %v1630, 4294901760
        %v5537 = vsub.f32 %v1630, %v5536
        %v5538 = vand.u32 %v5537, 4294901760
        %5539 = vmatpush.msra.mxu0 %v5538
        %v5540 = vand.u32 %v1627, 4294901760
        %v5541 = vsub.f32 %v1627, %v5540
        %v5542 = vand.u32 %v5541, 4294901760
        %5543 = vmatpush.msra.mxu0 %v5542
        %v5544 = vand.u32 %v1624, 4294901760
        %v5545 = vsub.f32 %v1624, %v5544
        %v5546 = vand.u32 %v5545, 4294901760
        %5547 = vmatpush.msra.mxu0 %v5546
        %v5548 = vand.u32 %v1621, 4294901760
        %v5549 = vsub.f32 %v1621, %v5548
        %v5550 = vand.u32 %v5549, 4294901760
        %5551 = vmatpush.msra.mxu0 %v5550
        %v5552 = vand.u32 %v1618, 4294901760
        %v5553 = vsub.f32 %v1618, %v5552
        %v5554 = vand.u32 %v5553, 4294901760
        %5555 = vmatpush.msra.mxu0 %v5554
        %v5556 = vand.u32 %v1615, 4294901760
        %v5557 = vsub.f32 %v1615, %v5556
        %v5558 = vand.u32 %v5557, 4294901760
        %5559 = vmatpush.msra.mxu0 %v5558
        %v5560 = vand.u32 %v1612, 4294901760
        %v5561 = vsub.f32 %v1612, %v5560
        %v5562 = vand.u32 %v5561, 4294901760
        %5563 = vmatpush.msra.mxu0 %v5562
        %v5564 = vand.u32 %v4910, 4294901760
        %5565 = vmatmul.f32.gmra.mxu0 %v5564
        %v5566 = vpop.f32.mrf.mxu0
        %v5567 = vadd.f32 %v5498, %v5566
        %5568 = vdwg.mxu0
        %v5569 = vand.u32 %v1657, 4294901760
        %5570 = vmatpush.msra.mxu0 %v5569
        %v5571 = vand.u32 %v1654, 4294901760
        %5572 = vmatpush.msra.mxu0 %v5571
        %v5573 = vand.u32 %v1651, 4294901760
        %5574 = vmatpush.msra.mxu0 %v5573
        %v5575 = vand.u32 %v1648, 4294901760
        %5576 = vmatpush.msra.mxu0 %v5575
        %v5577 = vand.u32 %v1645, 4294901760
        %5578 = vmatpush.msra.mxu0 %v5577
        %v5579 = vand.u32 %v1642, 4294901760
        %5580 = vmatpush.msra.mxu0 %v5579
        %v5581 = vand.u32 %v1639, 4294901760
        %5582 = vmatpush.msra.mxu0 %v5581
        %v5583 = vand.u32 %v1636, 4294901760
        %5584 = vmatpush.msra.mxu0 %v5583
        %v5585 = vand.u32 %v1633, 4294901760
        %5586 = vmatpush.msra.mxu0 %v5585
        %v5587 = vand.u32 %v1630, 4294901760
        %5588 = vmatpush.msra.mxu0 %v5587
        %v5589 = vand.u32 %v1627, 4294901760
        %5590 = vmatpush.msra.mxu0 %v5589
        %v5591 = vand.u32 %v1624, 4294901760
        %5592 = vmatpush.msra.mxu0 %v5591
        %v5593 = vand.u32 %v1621, 4294901760
        %5594 = vmatpush.msra.mxu0 %v5593
        %v5595 = vand.u32 %v1618, 4294901760
        %5596 = vmatpush.msra.mxu0 %v5595
        %v5597 = vand.u32 %v1615, 4294901760
        %5598 = vmatpush.msra.mxu0 %v5597
        %v5599 = vand.u32 %v1612, 4294901760
        %5600 = vmatpush.msra.mxu0 %v5599
        %v5601 = vand.u32 %v4910, 4294901760
        %5602 = vmatmul.f32.gmra.mxu0 %v5601
        %v5603 = vpop.f32.mrf.mxu0
        %v5604 = vadd.f32 %v5567, %v5603
        %5605 = vdwg.mxu0
        %v5606 = vand.u32 %v1658, 4294901760
        %5607 = vmatpush.msra.mxu0 %v5606
        %v5608 = vand.u32 %v1655, 4294901760
        %5609 = vmatpush.msra.mxu0 %v5608
        %v5610 = vand.u32 %v1652, 4294901760
        %5611 = vmatpush.msra.mxu0 %v5610
        %v5612 = vand.u32 %v1649, 4294901760
        %5613 = vmatpush.msra.mxu0 %v5612
        %v5614 = vand.u32 %v1646, 4294901760
        %5615 = vmatpush.msra.mxu0 %v5614
        %v5616 = vand.u32 %v1643, 4294901760
        %5617 = vmatpush.msra.mxu0 %v5616
        %v5618 = vand.u32 %v1640, 4294901760
        %5619 = vmatpush.msra.mxu0 %v5618
        %v5620 = vand.u32 %v1637, 4294901760
        %5621 = vmatpush.msra.mxu0 %v5620
        %v5622 = vand.u32 %v1634, 4294901760
        %5623 = vmatpush.msra.mxu0 %v5622
        %v5624 = vand.u32 %v1631, 4294901760
        %5625 = vmatpush.msra.mxu0 %v5624
        %v5626 = vand.u32 %v1628, 4294901760
        %5627 = vmatpush.msra.mxu0 %v5626
        %v5628 = vand.u32 %v1625, 4294901760
        %5629 = vmatpush.msra.mxu0 %v5628
        %v5630 = vand.u32 %v1622, 4294901760
        %5631 = vmatpush.msra.mxu0 %v5630
        %v5632 = vand.u32 %v1619, 4294901760
        %5633 = vmatpush.msra.mxu0 %v5632
        %v5634 = vand.u32 %v1616, 4294901760
        %5635 = vmatpush.msra.mxu0 %v5634
        %v5636 = vand.u32 %v1613, 4294901760
        %5637 = vmatpush.msra.mxu0 %v5636
        %v5638 = vand.u32 %v4910, 4294901760
        %v5639 = vsub.f32 %v4910, %v5638
        %v5640 = vand.u32 %v5639, 4294901760
        %v5641 = vsub.f32 %v5639, %v5640
        %v5642 = vand.u32 %v5641, 4294901760
        %5643 = vmatmul.f32.gmra.mxu0 %v5642
        %v5644 = vpop.f32.mrf.mxu0
        %v5645 = vadd.f32 %v1673, %v5644
        %5646 = vdwg.mxu0
        %v5647 = vand.u32 %v1658, 4294901760
        %v5648 = vsub.f32 %v1658, %v5647
        %v5649 = vand.u32 %v5648, 4294901760
        %v5650 = vsub.f32 %v5648, %v5649
        %v5651 = vand.u32 %v5650, 4294901760
        %5652 = vmatpush.msra.mxu0 %v5651
        %v5653 = vand.u32 %v1655, 4294901760
        %v5654 = vsub.f32 %v1655, %v5653
        %v5655 = vand.u32 %v5654, 4294901760
        %v5656 = vsub.f32 %v5654, %v5655
        %v5657 = vand.u32 %v5656, 4294901760
        %5658 = vmatpush.msra.mxu0 %v5657
        %v5659 = vand.u32 %v1652, 4294901760
        %v5660 = vsub.f32 %v1652, %v5659
        %v5661 = vand.u32 %v5660, 4294901760
        %v5662 = vsub.f32 %v5660, %v5661
        %v5663 = vand.u32 %v5662, 4294901760
        %5664 = vmatpush.msra.mxu0 %v5663
        %v5665 = vand.u32 %v1649, 4294901760
        %v5666 = vsub.f32 %v1649, %v5665
        %v5667 = vand.u32 %v5666, 4294901760
        %v5668 = vsub.f32 %v5666, %v5667
        %v5669 = vand.u32 %v5668, 4294901760
        %5670 = vmatpush.msra.mxu0 %v5669
        %v5671 = vand.u32 %v1646, 4294901760
        %v5672 = vsub.f32 %v1646, %v5671
        %v5673 = vand.u32 %v5672, 4294901760
        %v5674 = vsub.f32 %v5672, %v5673
        %v5675 = vand.u32 %v5674, 4294901760
        %5676 = vmatpush.msra.mxu0 %v5675
        %v5677 = vand.u32 %v1643, 4294901760
        %v5678 = vsub.f32 %v1643, %v5677
        %v5679 = vand.u32 %v5678, 4294901760
        %v5680 = vsub.f32 %v5678, %v5679
        %v5681 = vand.u32 %v5680, 4294901760
        %5682 = vmatpush.msra.mxu0 %v5681
        %v5683 = vand.u32 %v1640, 4294901760
        %v5684 = vsub.f32 %v1640, %v5683
        %v5685 = vand.u32 %v5684, 4294901760
        %v5686 = vsub.f32 %v5684, %v5685
        %v5687 = vand.u32 %v5686, 4294901760
        %5688 = vmatpush.msra.mxu0 %v5687
        %v5689 = vand.u32 %v1637, 4294901760
        %v5690 = vsub.f32 %v1637, %v5689
        %v5691 = vand.u32 %v5690, 4294901760
        %v5692 = vsub.f32 %v5690, %v5691
        %v5693 = vand.u32 %v5692, 4294901760
        %5694 = vmatpush.msra.mxu0 %v5693
        %v5695 = vand.u32 %v1634, 4294901760
        %v5696 = vsub.f32 %v1634, %v5695
        %v5697 = vand.u32 %v5696, 4294901760
        %v5698 = vsub.f32 %v5696, %v5697
        %v5699 = vand.u32 %v5698, 4294901760
        %5700 = vmatpush.msra.mxu0 %v5699
        %v5701 = vand.u32 %v1631, 4294901760
        %v5702 = vsub.f32 %v1631, %v5701
        %v5703 = vand.u32 %v5702, 4294901760
        %v5704 = vsub.f32 %v5702, %v5703
        %v5705 = vand.u32 %v5704, 4294901760
        %5706 = vmatpush.msra.mxu0 %v5705
        %v5707 = vand.u32 %v1628, 4294901760
        %v5708 = vsub.f32 %v1628, %v5707
        %v5709 = vand.u32 %v5708, 4294901760
        %v5710 = vsub.f32 %v5708, %v5709
        %v5711 = vand.u32 %v5710, 4294901760
        %5712 = vmatpush.msra.mxu0 %v5711
        %v5713 = vand.u32 %v1625, 4294901760
        %v5714 = vsub.f32 %v1625, %v5713
        %v5715 = vand.u32 %v5714, 4294901760
        %v5716 = vsub.f32 %v5714, %v5715
        %v5717 = vand.u32 %v5716, 4294901760
        %5718 = vmatpush.msra.mxu0 %v5717
        %v5719 = vand.u32 %v1622, 4294901760
        %v5720 = vsub.f32 %v1622, %v5719
        %v5721 = vand.u32 %v5720, 4294901760
        %v5722 = vsub.f32 %v5720, %v5721
        %v5723 = vand.u32 %v5722, 4294901760
        %5724 = vmatpush.msra.mxu0 %v5723
        %v5725 = vand.u32 %v1619, 4294901760
        %v5726 = vsub.f32 %v1619, %v5725
        %v5727 = vand.u32 %v5726, 4294901760
        %v5728 = vsub.f32 %v5726, %v5727
        %v5729 = vand.u32 %v5728, 4294901760
        %5730 = vmatpush.msra.mxu0 %v5729
        %v5731 = vand.u32 %v1616, 4294901760
        %v5732 = vsub.f32 %v1616, %v5731
        %v5733 = vand.u32 %v5732, 4294901760
        %v5734 = vsub.f32 %v5732, %v5733
        %v5735 = vand.u32 %v5734, 4294901760
        %5736 = vmatpush.msra.mxu0 %v5735
        %v5737 = vand.u32 %v1613, 4294901760
        %v5738 = vsub.f32 %v1613, %v5737
        %v5739 = vand.u32 %v5738, 4294901760
        %v5740 = vsub.f32 %v5738, %v5739
        %v5741 = vand.u32 %v5740, 4294901760
        %5742 = vmatpush.msra.mxu0 %v5741
        %v5743 = vand.u32 %v4910, 4294901760
        %5744 = vmatmul.f32.gmra.mxu0 %v5743
        %v5745 = vpop.f32.mrf.mxu0
        %v5746 = vadd.f32 %v5645, %v5745
        %5747 = vdwg.mxu0
        %v5748 = vand.u32 %v1658, 4294901760
        %v5749 = vsub.f32 %v1658, %v5748
        %5750 = vmatpush.msra.mxu0 %v5749
        %v5751 = vand.u32 %v1655, 4294901760
        %v5752 = vsub.f32 %v1655, %v5751
        %5753 = vmatpush.msra.mxu0 %v5752
        %v5754 = vand.u32 %v1652, 4294901760
        %v5755 = vsub.f32 %v1652, %v5754
        %5756 = vmatpush.msra.mxu0 %v5755
        %v5757 = vand.u32 %v1649, 4294901760
        %v5758 = vsub.f32 %v1649, %v5757
        %5759 = vmatpush.msra.mxu0 %v5758
        %v5760 = vand.u32 %v1646, 4294901760
        %v5761 = vsub.f32 %v1646, %v5760
        %5762 = vmatpush.msra.mxu0 %v5761
        %v5763 = vand.u32 %v1643, 4294901760
        %v5764 = vsub.f32 %v1643, %v5763
        %5765 = vmatpush.msra.mxu0 %v5764
        %v5766 = vand.u32 %v1640, 4294901760
        %v5767 = vsub.f32 %v1640, %v5766
        %5768 = vmatpush.msra.mxu0 %v5767
        %v5769 = vand.u32 %v1637, 4294901760
        %v5770 = vsub.f32 %v1637, %v5769
        %5771 = vmatpush.msra.mxu0 %v5770
        %v5772 = vand.u32 %v1634, 4294901760
        %v5773 = vsub.f32 %v1634, %v5772
        %5774 = vmatpush.msra.mxu0 %v5773
        %v5775 = vand.u32 %v1631, 4294901760
        %v5776 = vsub.f32 %v1631, %v5775
        %5777 = vmatpush.msra.mxu0 %v5776
        %v5778 = vand.u32 %v1628, 4294901760
        %v5779 = vsub.f32 %v1628, %v5778
        %5780 = vmatpush.msra.mxu0 %v5779
        %v5781 = vand.u32 %v1625, 4294901760
        %v5782 = vsub.f32 %v1625, %v5781
        %5783 = vmatpush.msra.mxu0 %v5782
        %v5784 = vand.u32 %v1622, 4294901760
        %v5785 = vsub.f32 %v1622, %v5784
        %5786 = vmatpush.msra.mxu0 %v5785
        %v5787 = vand.u32 %v1619, 4294901760
        %v5788 = vsub.f32 %v1619, %v5787
        %5789 = vmatpush.msra.mxu0 %v5788
        %v5790 = vand.u32 %v1616, 4294901760
        %v5791 = vsub.f32 %v1616, %v5790
        %5792 = vmatpush.msra.mxu0 %v5791
        %v5793 = vand.u32 %v1613, 4294901760
        %v5794 = vsub.f32 %v1613, %v5793
        %5795 = vmatpush.msra.mxu0 %v5794
        %v5796 = vand.u32 %v4910, 4294901760
        %v5797 = vsub.f32 %v4910, %v5796
        %5798 = vmatmul.f32.gmra.mxu0 %v5797
        %v5799 = vpop.f32.mrf.mxu0
        %v5800 = vadd.f32 %v5746, %v5799
        %5801 = vdwg.mxu0
        %v5802 = vand.u32 %v1658, 4294901760
        %5803 = vmatpush.msra.mxu0 %v5802
        %v5804 = vand.u32 %v1655, 4294901760
        %5805 = vmatpush.msra.mxu0 %v5804
        %v5806 = vand.u32 %v1652, 4294901760
        %5807 = vmatpush.msra.mxu0 %v5806
        %v5808 = vand.u32 %v1649, 4294901760
        %5809 = vmatpush.msra.mxu0 %v5808
        %v5810 = vand.u32 %v1646, 4294901760
        %5811 = vmatpush.msra.mxu0 %v5810
        %v5812 = vand.u32 %v1643, 4294901760
        %5813 = vmatpush.msra.mxu0 %v5812
        %v5814 = vand.u32 %v1640, 4294901760
        %5815 = vmatpush.msra.mxu0 %v5814
        %v5816 = vand.u32 %v1637, 4294901760
        %5817 = vmatpush.msra.mxu0 %v5816
        %v5818 = vand.u32 %v1634, 4294901760
        %5819 = vmatpush.msra.mxu0 %v5818
        %v5820 = vand.u32 %v1631, 4294901760
        %5821 = vmatpush.msra.mxu0 %v5820
        %v5822 = vand.u32 %v1628, 4294901760
        %5823 = vmatpush.msra.mxu0 %v5822
        %v5824 = vand.u32 %v1625, 4294901760
        %5825 = vmatpush.msra.mxu0 %v5824
        %v5826 = vand.u32 %v1622, 4294901760
        %5827 = vmatpush.msra.mxu0 %v5826
        %v5828 = vand.u32 %v1619, 4294901760
        %5829 = vmatpush.msra.mxu0 %v5828
        %v5830 = vand.u32 %v1616, 4294901760
        %5831 = vmatpush.msra.mxu0 %v5830
        %v5832 = vand.u32 %v1613, 4294901760
        %5833 = vmatpush.msra.mxu0 %v5832
        %v5834 = vand.u32 %v4910, 4294901760
        %v5835 = vsub.f32 %v4910, %v5834
        %v5836 = vand.u32 %v5835, 4294901760
        %5837 = vmatmul.f32.gmra.mxu0 %v5836
        %v5838 = vpop.f32.mrf.mxu0
        %v5839 = vadd.f32 %v5800, %v5838
        %5840 = vdwg.mxu0
        %v5841 = vand.u32 %v1658, 4294901760
        %v5842 = vsub.f32 %v1658, %v5841
        %v5843 = vand.u32 %v5842, 4294901760
        %5844 = vmatpush.msra.mxu0 %v5843
        %v5845 = vand.u32 %v1655, 4294901760
        %v5846 = vsub.f32 %v1655, %v5845
        %v5847 = vand.u32 %v5846, 4294901760
        %5848 = vmatpush.msra.mxu0 %v5847
        %v5849 = vand.u32 %v1652, 4294901760
        %v5850 = vsub.f32 %v1652, %v5849
        %v5851 = vand.u32 %v5850, 4294901760
        %5852 = vmatpush.msra.mxu0 %v5851
        %v5853 = vand.u32 %v1649, 4294901760
        %v5854 = vsub.f32 %v1649, %v5853
        %v5855 = vand.u32 %v5854, 4294901760
        %5856 = vmatpush.msra.mxu0 %v5855
        %v5857 = vand.u32 %v1646, 4294901760
        %v5858 = vsub.f32 %v1646, %v5857
        %v5859 = vand.u32 %v5858, 4294901760
        %5860 = vmatpush.msra.mxu0 %v5859
        %v5861 = vand.u32 %v1643, 4294901760
        %v5862 = vsub.f32 %v1643, %v5861
        %v5863 = vand.u32 %v5862, 4294901760
        %5864 = vmatpush.msra.mxu0 %v5863
        %v5865 = vand.u32 %v1640, 4294901760
        %v5866 = vsub.f32 %v1640, %v5865
        %v5867 = vand.u32 %v5866, 4294901760
        %5868 = vmatpush.msra.mxu0 %v5867
        %v5869 = vand.u32 %v1637, 4294901760
        %v5870 = vsub.f32 %v1637, %v5869
        %v5871 = vand.u32 %v5870, 4294901760
        %5872 = vmatpush.msra.mxu0 %v5871
        %v5873 = vand.u32 %v1634, 4294901760
        %v5874 = vsub.f32 %v1634, %v5873
        %v5875 = vand.u32 %v5874, 4294901760
        %5876 = vmatpush.msra.mxu0 %v5875
        %v5877 = vand.u32 %v1631, 4294901760
        %v5878 = vsub.f32 %v1631, %v5877
        %v5879 = vand.u32 %v5878, 4294901760
        %5880 = vmatpush.msra.mxu0 %v5879
        %v5881 = vand.u32 %v1628, 4294901760
        %v5882 = vsub.f32 %v1628, %v5881
        %v5883 = vand.u32 %v5882, 4294901760
        %5884 = vmatpush.msra.mxu0 %v5883
        %v5885 = vand.u32 %v1625, 4294901760
        %v5886 = vsub.f32 %v1625, %v5885
        %v5887 = vand.u32 %v5886, 4294901760
        %5888 = vmatpush.msra.mxu0 %v5887
        %v5889 = vand.u32 %v1622, 4294901760
        %v5890 = vsub.f32 %v1622, %v5889
        %v5891 = vand.u32 %v5890, 4294901760
        %5892 = vmatpush.msra.mxu0 %v5891
        %v5893 = vand.u32 %v1619, 4294901760
        %v5894 = vsub.f32 %v1619, %v5893
        %v5895 = vand.u32 %v5894, 4294901760
        %5896 = vmatpush.msra.mxu0 %v5895
        %v5897 = vand.u32 %v1616, 4294901760
        %v5898 = vsub.f32 %v1616, %v5897
        %v5899 = vand.u32 %v5898, 4294901760
        %5900 = vmatpush.msra.mxu0 %v5899
        %v5901 = vand.u32 %v1613, 4294901760
        %v5902 = vsub.f32 %v1613, %v5901
        %v5903 = vand.u32 %v5902, 4294901760
        %5904 = vmatpush.msra.mxu0 %v5903
        %v5905 = vand.u32 %v4910, 4294901760
        %5906 = vmatmul.f32.gmra.mxu0 %v5905
        %v5907 = vpop.f32.mrf.mxu0
        %v5908 = vadd.f32 %v5839, %v5907
        %5909 = vdwg.mxu0
        %v5910 = vand.u32 %v1658, 4294901760
        %5911 = vmatpush.msra.mxu0 %v5910
        %v5912 = vand.u32 %v1655, 4294901760
        %5913 = vmatpush.msra.mxu0 %v5912
        %v5914 = vand.u32 %v1652, 4294901760
        %5915 = vmatpush.msra.mxu0 %v5914
        %v5916 = vand.u32 %v1649, 4294901760
        %5917 = vmatpush.msra.mxu0 %v5916
        %v5918 = vand.u32 %v1646, 4294901760
        %5919 = vmatpush.msra.mxu0 %v5918
        %v5920 = vand.u32 %v1643, 4294901760
        %5921 = vmatpush.msra.mxu0 %v5920
        %v5922 = vand.u32 %v1640, 4294901760
        %5923 = vmatpush.msra.mxu0 %v5922
        %v5924 = vand.u32 %v1637, 4294901760
        %5925 = vmatpush.msra.mxu0 %v5924
        %v5926 = vand.u32 %v1634, 4294901760
        %5927 = vmatpush.msra.mxu0 %v5926
        %v5928 = vand.u32 %v1631, 4294901760
        %5929 = vmatpush.msra.mxu0 %v5928
        %v5930 = vand.u32 %v1628, 4294901760
        %5931 = vmatpush.msra.mxu0 %v5930
        %v5932 = vand.u32 %v1625, 4294901760
        %5933 = vmatpush.msra.mxu0 %v5932
        %v5934 = vand.u32 %v1622, 4294901760
        %5935 = vmatpush.msra.mxu0 %v5934
        %v5936 = vand.u32 %v1619, 4294901760
        %5937 = vmatpush.msra.mxu0 %v5936
        %v5938 = vand.u32 %v1616, 4294901760
        %5939 = vmatpush.msra.mxu0 %v5938
        %v5940 = vand.u32 %v1613, 4294901760
        %5941 = vmatpush.msra.mxu0 %v5940
        %v5942 = vand.u32 %v4910, 4294901760
        %5943 = vmatmul.f32.gmra.mxu0 %v5942
        %v5944 = vpop.f32.mrf.mxu0
        %v5945 = vadd.f32 %v5908, %v5944
        %5946 = vdwg.mxu0
        %v5947 = vadd.f32 %v4921, %v5263
        %v5948 = vxor.u32 %v5947, 2147483648
        %v5949 = vmul.f32 %v5948, 1.442695
        %v5950 = vpow.pop %v5949
        %v5951 = vadd.f32 %v5950, 1.0
        %v5952 = vrcp.pop %v5951
        %v5953 = vmul.f32 %v5951, %v5952
        %v5954 = vsub.f32 1.0, %v5953
        %v5955 = vmul.f32 %v5952, %v5954
        %v5956 = vadd.f32 %v5952, %v5955
        %vm5957 = vweird.f32 %v5951
        %vm5958 = vweird.f32 %v5952
        %vm5959 = vmor %vm5957, %vm5958
        %v5960 = vsel %vm5959, %v5952, %v5956
        %v5961 = vand.u32 2147483647, %v5951
        %vm5962 = vcmp.eq.f32.partialorder %v5961, 8.507059e+37
        %v5963 = vand.u32 %v5951, 2147483648
        %v5964 = vor.u32 1.1754944e-38, %v5963
        %v5965 = vsel %vm5962, %v5964, %v5960
        %v5966 = vmul.f32 1.0, %v5965
        %v5967 = vadd.f32 %v4922, %v5604
        %v5968 = vxor.u32 %v5967, 2147483648
        %v5969 = vmul.f32 %v5968, 1.442695
        %v5970 = vpow.pop %v5969
        %v5971 = vadd.f32 %v5970, 1.0
        %v5972 = vrcp.pop %v5971
        %v5973 = vmul.f32 %v5971, %v5972
        %v5974 = vsub.f32 1.0, %v5973
        %v5975 = vmul.f32 %v5972, %v5974
        %v5976 = vadd.f32 %v5972, %v5975
        %vm5977 = vweird.f32 %v5971
        %vm5978 = vweird.f32 %v5972
        %vm5979 = vmor %vm5977, %vm5978
        %v5980 = vsel %vm5979, %v5972, %v5976
        %v5981 = vand.u32 2147483647, %v5971
        %vm5982 = vcmp.eq.f32.partialorder %v5981, 8.507059e+37
        %v5983 = vand.u32 %v5971, 2147483648
        %v5984 = vor.u32 1.1754944e-38, %v5983
        %v5985 = vsel %vm5982, %v5984, %v5980
        %v5986 = vmul.f32 1.0, %v5985
        %v5987 = vmul.f32 %v5966, %v5945
        %v5988 = vadd.f32 %v4923, %v5987
        %v5989 = vtanh.pop %v5988
        %v5990 = vsub.f32 1.0, %v5986
        %v5991 = vmul.f32 %v5990, %v5989
        %v5992 = vmul.f32 %v5986, %v4910
        %v5993 = vadd.f32 %v5991, %v5992
        %s5994 = scalar_lea.vmem %s424, %s4915 [#allocation9]
        %5995 = vst [vmem:[%s5994] sm:$0xff] %v5993
        %5996 = vst [vmem:[#allocation3] sm:$0xff] %v5993
        %s5997 = sand.u32 %s237, 1
        %s5998 = scalar_lea.sflag [#allocation6], %s5997
        %s5999 = sand.u32 %s237, 1
        %s6000 = smul.addr %s5999, 32
        %s6001 = scalar_lea.vmem [#allocation9], %s6000
        // Predicated region
        $region61: #{tpu_custom_call.1} parent=47 // pred_check
          %p6002 = pneg %p247
        $region62: #{tpu_custom_call.1} parent=47 // pred_check_branch
          %6004 = sbr.rel (%p6002) target = $region64
        $region63: #{tpu_custom_call.1} parent=47 // pred_region
          %s6005 = smul.u32 %s32, 2
          %s6006 = ssub.s32 1, %s6005
          %s6007 = smul.u32 %s31, %s6006
          %s6008 = sadd.s32 %s32, %s6007
          %s6009 = smul.u32 4, %s6008
          %6011 = vsyncadd %s5998, 0
          %s6012 = smul.addr %s31, 8
          %s6013 = sadd.s32 %s6009, %s6012
          %s6014 = smul.addr %s6013, 8
          %s6015 = scalar_lea.hbm %s7, %s6014
          %s6016 = sshll.u32 %s6001, 4
          %s6017 = int_to_ptr.vmem [resolvable:$true] %s6016
          %s6018 = sshll.u32 %s6015, 4
          %s6019 = int_to_ptr.hbm [resolvable:$true] %s6018
          %6024 = dma.vmem_to_hbm [thread:$0]  %s6017, 512, %s6019, %s5998, 128, 128, 8
        $region64: #{tpu_custom_call.1} parent=47 // pred_fallthru
          _
      $region48: #{tpu_custom_call.1} parent=5 // pred_fallthru
        _
      %p6025 = scmp.le.s32.totalorder 2, %s22
      // Predicated region
      $region65: #{tpu_custom_call.1} parent=5 // pred_check
        %p6026 = pneg %p6025
      $region66: #{tpu_custom_call.1} parent=5 // pred_check_branch
        %6028 = sbr.rel (%p6026) target = $region68
      $region67: #{tpu_custom_call.1} parent=5 // pred_region
        %s6029 = ssub.s32 %s22, 2
        // Predicated region
        $region69: #{tpu_custom_call.1} parent=67 // pred_check
          %p6030 = pneg %p253
        $region70: #{tpu_custom_call.1} parent=67 // pred_check_branch
          %6032 = sbr.rel (%p6030) target = $region72
        $region71: #{tpu_custom_call.1} parent=67 // pred_region
          %s6033 = sand.u32 %s238, 1
          %s6034 = scalar_lea.sflag [#allocation6], %s6033
          %s6035 = sand.u32 %s238, 1
          %s6036 = smul.addr %s6035, 32
          %s6037 = scalar_lea.vmem [#allocation9], %s6036
          %6039 = dma.done %s6034, 512
        $region72: #{tpu_custom_call.1} parent=67 // pred_fallthru
          _
      $region68: #{tpu_custom_call.1} parent=5 // pred_fallthru
        _
    $region6: #{tpu_custom_call.1} parent=1 // loop_footer
      %s26 = sadd.s32 1, %s22
    $region7: #{tpu_custom_call.1} parent=1 // loop_footer_branch
      %21 = sbr.rel target = $region3
    $region8: #{tpu_custom_call.1} parent=1 // loop_exit
      _
    %6040 = vsyncpa [#allocation5], 1
    %s6041 = scalar_lea.sflag [#allocation5], 1
    %6042 = vsyncpa %s6041, 1
    %6043 = vsyncpa [#allocation8], 1
    %s6044 = scalar_lea.sflag [#allocation8], 1
    %6045 = vsyncpa %s6044, 1
    %6046 = vsyncpa [#allocation6], 1
    %s6047 = scalar_lea.sflag [#allocation6], 1
    %6048 = vsyncpa %s6047, 1

</llo_original>
